<compile_context>
chip_gen: v6e
topology: v6e:2x2x1
jax: 0.10.0
libtpu: 0.0.40
codegen_flags: <defaults>
</compile_context>

<pallas_src>
import math
import functools

import jax
import jax.numpy as jnp
from jax.experimental import pallas as pl
from jax.experimental.pallas import tpu as pltpu


def _tpu_generation():
    """Best-effort TPU generation sniff (5 / 6 / 7, 0 if unknown)."""
    try:
        kind = jax.devices()[0].device_kind.lower()
    except Exception:
        return 0
    if "v7" in kind or "tpu7" in kind:
        return 7
    if "v6" in kind:
        return 6
    if "v5" in kind:
        return 5
    return 0


def _mha_kernel(q_ref, k_ref, v_ref,
                wqkv_ref, bqkv_ref, wo_ref, bo_ref,
                out_ref, *, heads, d_k, compute_dtype, exp_dtype, approx_recip):
    bt, S, D = q_ref.shape
    M = bt * S
    BH = bt * heads
    cdt = compute_dtype

    # Fold batch tile into the GEMM M dimension; MXU inputs in compute dtype.
    q2 = q_ref[...].reshape(M, D).astype(cdt)
    k2 = k_ref[...].reshape(M, D).astype(cdt)
    v2 = v_ref[...].reshape(M, D).astype(cdt)

    # Input projections (PyTorch nn.Linear: y = x W^T + b; weights already
    # transposed, and Wq/bq already carry the 1/sqrt(d_k) scale).  f32 accum.
    qp = jnp.dot(q2, wqkv_ref[0], preferred_element_type=jnp.float32) + bqkv_ref[0]
    kp = jnp.dot(k2, wqkv_ref[1], preferred_element_type=jnp.float32) + bqkv_ref[1]
    vp = jnp.dot(v2, wqkv_ref[2], preferred_element_type=jnp.float32) + bqkv_ref[2]

    def to_heads(x):
        # (M, D) f32 -> (bt*H, S, d_k) in compute dtype: one relayout per tensor
        # (in the narrow dtype), instead of 3*bt small transposes.
        return (x.astype(cdt)
                 .reshape(bt, S, heads, d_k)
                 .transpose(0, 2, 1, 3)
                 .reshape(BH, S, d_k))

    qh = to_heads(qp)
    kh = to_heads(kp)
    vh = to_heads(vp)

    # Scores already include 1/sqrt(d_k) (folded into Wq/bq): one leading-batch
    # MXU pass over all bt*H heads at once.
    s = jnp.einsum('bqd,bkd->bqk', qh, kh,
                   preferred_element_type=jnp.float32)            # (BH, S, S) f32

    # Numerically-stable softmax with deferred normalization.  On v6e/v7x the
    # exponent is taken in bf16 (EUP supports bf16); the row-sum accumulates
    # in f32.  On v5e exp stays in f32.
    m = jnp.max(s, axis=-1, keepdims=True)
    e = jnp.exp((s - m).astype(exp_dtype))
    l = jnp.sum(e, axis=-1, keepdims=True, dtype=jnp.float32)     # (BH, S, 1)

    ctx = jnp.einsum('bqk,bkd->bqd', e.astype(cdt), vh,
                     preferred_element_type=jnp.float32)          # (BH, S, dk) f32
    inv_l = pl.reciprocal(l, approx=approx_recip)                 # EUP, not VALU
    ctx = ctx * inv_l                                             # O(M*D), not O(BH*S*S)

    # Merge heads back to (M, D): single relayout in the compute dtype, fed
    # straight into the output GEMM (no concatenate).
    merged = (ctx.astype(cdt)
                 .reshape(bt, heads, S, d_k)
                 .transpose(0, 2, 1, 3)
                 .reshape(M, D))

    out = jnp.dot(merged, wo_ref[...], preferred_element_type=jnp.float32) + bo_ref[0]
    out_ref[...] = out.reshape(bt, S, D).astype(out_ref.dtype)


def prepare_params(params, heads, compute_dtype=jnp.bfloat16):
    """One-time weight prep (hoisted out of the per-call path).

    - transpose to x @ W layout
    - fold the 1/sqrt(d_k) attention scale into Wq/bq
    - stack Wq/Wk/Wv and bq/bk/bv into single arrays (fewer BlockSpecs/DMAs)
    - cast weights to the MXU compute dtype (biases stay f32: added to f32 acc)
    """
    d_model = params['wq'].shape[0]
    assert d_model % heads == 0, "d_model must be divisible by heads"
    d_k = d_model // heads
    scale = 1.0 / math.sqrt(d_k)

    wqkv = jnp.stack([
        (params['wq'].T * scale).astype(compute_dtype),
        params['wk'].T.astype(compute_dtype),
        params['wv'].T.astype(compute_dtype),
    ], axis=0)                                                   # (3, D, D)
    bqkv = jnp.stack([
        params['bq'] * scale, params['bk'], params['bv'],
    ], axis=0).astype(jnp.float32)                               # (3, D)
    wo = params['wo'].T.astype(compute_dtype)                    # (D, D)
    bo = params['bo'].reshape(1, d_model).astype(jnp.float32)    # (1, D)
    return {'wqkv': wqkv, 'bqkv': bqkv, 'wo': wo, 'bo': bo}


def multi_head_attention(q, k, v, prepped, heads, *, batch_tile=None):
    """q, k, v: (B, S, D).  prepped: output of prepare_params()."""
    B, S, D = q.shape
    assert D % heads == 0, "d_model must be divisible by heads"
    d_k = D // heads
    cdt = prepped['wqkv'].dtype
    out_dtype = q.dtype

    gen = _tpu_generation()
    # Leave headroom under the physical VMEM size (v7x: 64 MiB total).
    vmem_cap = {7: 56, 6: 110, 5: 100}.get(gen, 64) * 1024 * 1024

    # Stream activations in the compute dtype when it is narrower (halves the
    # per-step DMA bytes and the double-buffer footprint; biggest win on v5e's
    # low HBM bandwidth).  All element-wise / accumulation math stays f32.
    if jnp.dtype(cdt).itemsize < jnp.dtype(q.dtype).itemsize:
        q = q.astype(cdt)
        k = k.astype(cdt)
        v = v.astype(cdt)

    io_size = jnp.dtype(q.dtype).itemsize
    out_size = jnp.dtype(out_dtype).itemsize
    cdt_size = jnp.dtype(cdt).itemsize
    use_bf16_exp = (gen >= 6) and (cdt == jnp.bfloat16)
    exp_dtype = cdt if use_bf16_exp else jnp.float32
    exp_size = jnp.dtype(exp_dtype).itemsize

    # Resident weights/biases are single-buffered (x1, see pl.Buffered(1) below).
    w_bytes = ((prepped['wqkv'].size + prepped['wo'].size) * cdt_size
               + (prepped['bqkv'].size + prepped['bo'].size) * 4)

    def vmem_estimate(bt):
        M = bt * S
        streamed = 2 * M * D * (3 * io_size + out_size)        # double-buffered q/k/v/out tiles
        proj = 3 * M * D * (4 + 2 * cdt_size)                  # qp/kp/vp f32 + cast + head relayout
        attn = bt * heads * S * S * (4 + exp_size)             # scores f32 + exp tensor
        ctxb = M * D * (4 + cdt_size) + M * D * 4              # ctx f32 + merged cdt + out f32
        return w_bytes + streamed + int(1.25 * (proj + attn + ctxb))

    if batch_tile is None:
        # M target: 256 rows for the 2x256 MXU generations, 128 for v5e.
        m_target = 256 if gen >= 6 else 128
        bt_target = max(1, -(-m_target // S))
        bt_cap = B
        if gen == 7 and B >= 2:
            bt_cap = max(1, B // 2)   # keep >= 2 grid steps so both v7x TCs get work
        batch_tile = 1
        for d in range(1, B + 1):
            if B % d == 0 and d <= min(bt_target, bt_cap) and vmem_estimate(d) <= vmem_cap:
                batch_tile = d
    assert B % batch_tile == 0, "batch_tile must divide batch"
    bt = batch_tile

    vmem_limit = int(min(vmem_cap,
                         max(32 * 1024 * 1024, vmem_estimate(bt) + 8 * 1024 * 1024)))

    kernel = functools.partial(
        _mha_kernel, heads=heads, d_k=d_k, compute_dtype=cdt,
        exp_dtype=exp_dtype, approx_recip=bool(cdt != jnp.float32))

    def build_and_call(single_buffer_weights):
        # Weights/biases have a constant index_map -> single-buffer them so
        # they only occupy 1x their size in VMEM instead of 2x.
        wkw = {'pipeline_mode': pl.Buffered(1)} if single_buffer_weights else {}
        qkv_spec = pl.BlockSpec((bt, S, D), lambda i: (i, 0, 0))
        out_spec = pl.BlockSpec((bt, S, D), lambda i: (i, 0, 0))
        wqkv_spec = pl.BlockSpec((3, D, D), lambda i: (0, 0, 0), **wkw)
        bqkv_spec = pl.BlockSpec((3, D), lambda i: (0, 0), **wkw)
        wo_spec = pl.BlockSpec((D, D), lambda i: (0, 0), **wkw)
        bo_spec = pl.BlockSpec((1, D), lambda i: (0, 0), **wkw)

        return pl.pallas_call(
            kernel,
            out_shape=jax.ShapeDtypeStruct((B, S, D), out_dtype),
            grid_spec=pltpu.PrefetchScalarGridSpec(
                num_scalar_prefetch=0,
                grid=(B // bt,),
                in_specs=[qkv_spec, qkv_spec, qkv_spec,
                          wqkv_spec, bqkv_spec, wo_spec, bo_spec],
                out_specs=out_spec,
            ),
            compiler_params=pltpu.CompilerParams(
                dimension_semantics=("parallel",),
                vmem_limit_bytes=vmem_limit),
        )(q, k, v, prepped['wqkv'], prepped['bqkv'], prepped['wo'], prepped['bo'])

    try:
        return build_and_call(True)
    except Exception:
        # Fallback for jax versions where pipeline_mode=pl.Buffered(1) is not
        # supported on the top-level pallas_call pipeline: double-buffer weights.
        return build_and_call(False)


def _reference(q, k, v, params, heads):
    """Plain-JAX reference mirroring the PyTorch forward (eval mode, f32)."""
    B, S, D = q.shape
    d_k = D // heads

    def lin(x, w, b):
        return jnp.einsum('bsd,od->bso', x, w) + b

    qp = lin(q, params['wq'], params['bq']).reshape(B, S, heads, d_k).transpose(0, 2, 1, 3)
    kp = lin(k, params['wk'], params['bk']).reshape(B, S, heads, d_k).transpose(0, 2, 1, 3)
    vp = lin(v, params['wv'], params['bv']).reshape(B, S, heads, d_k).transpose(0, 2, 1, 3)

    scores = jnp.einsum('bhqd,bhkd->bhqk', qp, kp) / math.sqrt(d_k)
    p = jax.nn.softmax(scores, axis=-1)
    ctx = jnp.einsum('bhqk,bhkd->bhqd', p, vp)
    concat = ctx.transpose(0, 2, 1, 3).reshape(B, S, D)
    return lin(concat, params['wo'], params['bo'])


def init_params(key, d_model):
    """Deterministic nn.Linear-style init: U(-1/sqrt(in), 1/sqrt(in))."""
    bound = 1.0 / math.sqrt(d_model)
    keys = jax.random.split(key, 8)
    u = lambda kk, shape: jax.random.uniform(kk, shape, jnp.float32, -bound, bound)
    return {
        'wq': u(keys[0], (d_model, d_model)), 'bq': u(keys[1], (d_model,)),
        'wk': u(keys[2], (d_model, d_model)), 'bk': u(keys[3], (d_model,)),
        'wv': u(keys[4], (d_model, d_model)), 'bv': u(keys[5], (d_model,)),
        'wo': u(keys[6], (d_model, d_model)), 'bo': u(keys[7], (d_model,)),
    }


if __name__ == "__main__":
    B, S, D, H = 2, 8, 32, 4   # batch, seq, d_model, heads (d_k = 8)

    root = jax.random.PRNGKey(0)
    k_param, k_q, k_k, k_v = jax.random.split(root, 4)

    params = init_params(k_param, D)
    q = jax.random.normal(k_q, (B, S, D), jnp.float32)
    k = jax.random.normal(k_k, (B, S, D), jnp.float32)
    v = jax.random.normal(k_v, (B, S, D), jnp.float32)

    ref = _reference(q, k, v, params, heads=H)

    # Fast path: bf16 MXU inputs / bf16 activation IO, f32 accumulation.
    prepped_bf16 = prepare_params(params, heads=H, compute_dtype=jnp.bfloat16)
    out_bf16 = jax.block_until_ready(
        multi_head_attention(q, k, v, prepped_bf16, heads=H))
    assert out_bf16.shape == (B, S, D)
    assert jnp.allclose(out_bf16, ref, atol=1e-1, rtol=1e-1), \
        "bf16 path mismatch vs JAX reference"

    # Full-precision path: exact check against the f32 reference.
    prepped_f32 = prepare_params(params, heads=H, compute_dtype=jnp.float32)
    out_f32 = jax.block_until_ready(
        multi_head_attention(q, k, v, prepped_f32, heads=H))
    assert jnp.allclose(out_f32, ref, atol=1e-4, rtol=1e-4), \
        "f32 path mismatch vs JAX reference"

    print("KERNEL_OK")
</pallas_src>

<mosaic_0001>
module attributes {stable_mosaic.version = 11 : i64} {
  func.func @_mha_kernel(%arg0: i32, %arg1: memref<2x8x32xbf16, #tpu.memory_space<vmem>>, %arg2: memref<2x8x32xbf16, #tpu.memory_space<vmem>>, %arg3: memref<2x8x32xbf16, #tpu.memory_space<vmem>>, %arg4: memref<3x32x32xbf16, #tpu.memory_space<vmem>>, %arg5: memref<3x32xf32, #tpu.memory_space<vmem>>, %arg6: memref<32x32xbf16, #tpu.memory_space<vmem>>, %arg7: memref<1x32xf32, #tpu.memory_space<vmem>>, %arg8: memref<2x8x32xf32, #tpu.memory_space<vmem>>) attributes {dimension_semantics = [#tpu.dimension_semantics<parallel>], iteration_bounds = array<i64: 1>, scalar_prefetch = 0 : i64, scratch_operands = 0 : i64, tpu.core_type = #tpu.core_type<tc>, window_params = [{transform_indices = @transform_0, window_bounds = array<i64: 2, 8, 32>}, {transform_indices = @transform_1, window_bounds = array<i64: 2, 8, 32>}, {transform_indices = @transform_2, window_bounds = array<i64: 2, 8, 32>}, {pipeline_mode = #tpu.pipeline_mode<synchronous>, transform_indices = @transform_3, window_bounds = array<i64: 3, 32, 32>}, {pipeline_mode = #tpu.pipeline_mode<synchronous>, transform_indices = @transform_4, window_bounds = array<i64: 3, 32>}, {pipeline_mode = #tpu.pipeline_mode<synchronous>, transform_indices = @transform_5, window_bounds = array<i64: 32, 32>}, {pipeline_mode = #tpu.pipeline_mode<synchronous>, transform_indices = @transform_6, window_bounds = array<i64: 1, 32>}, {transform_indices = @transform_7, window_bounds = array<i64: 2, 8, 32>}]} {
    %c0 = arith.constant 0 : index
    %c0_0 = arith.constant 0 : index
    %c0_1 = arith.constant 0 : index
    %0 = vector.load %arg1[%c0, %c0_0, %c0_1] : memref<2x8x32xbf16, #tpu.memory_space<vmem>>, vector<2x8x32xbf16>
    %1 = vector.shape_cast %0 : vector<2x8x32xbf16> to vector<16x32xbf16>
    %c0_2 = arith.constant 0 : index
    %c0_3 = arith.constant 0 : index
    %c0_4 = arith.constant 0 : index
    %2 = vector.load %arg2[%c0_2, %c0_3, %c0_4] : memref<2x8x32xbf16, #tpu.memory_space<vmem>>, vector<2x8x32xbf16>
    %3 = vector.shape_cast %2 : vector<2x8x32xbf16> to vector<16x32xbf16>
    %c0_5 = arith.constant 0 : index
    %c0_6 = arith.constant 0 : index
    %c0_7 = arith.constant 0 : index
    %4 = vector.load %arg3[%c0_5, %c0_6, %c0_7] : memref<2x8x32xbf16, #tpu.memory_space<vmem>>, vector<2x8x32xbf16>
    %5 = vector.shape_cast %4 : vector<2x8x32xbf16> to vector<16x32xbf16>
    %c0_8 = arith.constant 0 : index
    %c0_9 = arith.constant 0 : index
    %c0_10 = arith.constant 0 : index
    %6 = vector.load %arg4[%c0_8, %c0_9, %c0_10] : memref<3x32x32xbf16, #tpu.memory_space<vmem>>, vector<1x32x32xbf16>
    %7 = vector.shape_cast %6 : vector<1x32x32xbf16> to vector<32x32xbf16>
    %cst = arith.constant dense<0.000000e+00> : vector<16x32xf32>
    %8 = tpu.matmul %1, %7, %cst {dimension_numbers = #tpu.dot_dimension_numbers<[1], [0], [0], [1], [0, 0, 1, 1], [], []>} : vector<16x32xbf16>, vector<32x32xbf16>, vector<16x32xf32> -> vector<16x32xf32>
    %c0_11 = arith.constant 0 : index
    %c0_12 = arith.constant 0 : index
    %9 = vector.load %arg5[%c0_11, %c0_12] : memref<3x32xf32, #tpu.memory_space<vmem>>, vector<1x32xf32>
    %10 = vector.shape_cast %9 : vector<1x32xf32> to vector<32xf32>
    %11 = vector.shape_cast %10 : vector<32xf32> to vector<1x32xf32>
    %12 = vector.broadcast %11 : vector<1x32xf32> to vector<16x32xf32>
    %13 = arith.addf %8, %12 : vector<16x32xf32>
    %c1 = arith.constant 1 : index
    %c0_13 = arith.constant 0 : index
    %c0_14 = arith.constant 0 : index
    %14 = vector.load %arg4[%c1, %c0_13, %c0_14] : memref<3x32x32xbf16, #tpu.memory_space<vmem>>, vector<1x32x32xbf16>
    %15 = vector.shape_cast %14 : vector<1x32x32xbf16> to vector<32x32xbf16>
    %cst_15 = arith.constant dense<0.000000e+00> : vector<16x32xf32>
    %16 = tpu.matmul %3, %15, %cst_15 {dimension_numbers = #tpu.dot_dimension_numbers<[1], [0], [0], [1], [0, 0, 1, 1], [], []>} : vector<16x32xbf16>, vector<32x32xbf16>, vector<16x32xf32> -> vector<16x32xf32>
    %c1_16 = arith.constant 1 : index
    %c0_17 = arith.constant 0 : index
    %17 = vector.load %arg5[%c1_16, %c0_17] : memref<3x32xf32, #tpu.memory_space<vmem>>, vector<1x32xf32>
    %18 = vector.shape_cast %17 : vector<1x32xf32> to vector<32xf32>
    %19 = vector.shape_cast %18 : vector<32xf32> to vector<1x32xf32>
    %20 = vector.broadcast %19 : vector<1x32xf32> to vector<16x32xf32>
    %21 = arith.addf %16, %20 : vector<16x32xf32>
    %c2 = arith.constant 2 : index
    %c0_18 = arith.constant 0 : index
    %c0_19 = arith.constant 0 : index
    %22 = vector.load %arg4[%c2, %c0_18, %c0_19] : memref<3x32x32xbf16, #tpu.memory_space<vmem>>, vector<1x32x32xbf16>
    %23 = vector.shape_cast %22 : vector<1x32x32xbf16> to vector<32x32xbf16>
    %cst_20 = arith.constant dense<0.000000e+00> : vector<16x32xf32>
    %24 = tpu.matmul %5, %23, %cst_20 {dimension_numbers = #tpu.dot_dimension_numbers<[1], [0], [0], [1], [0, 0, 1, 1], [], []>} : vector<16x32xbf16>, vector<32x32xbf16>, vector<16x32xf32> -> vector<16x32xf32>
    %c2_21 = arith.constant 2 : index
    %c0_22 = arith.constant 0 : index
    %25 = vector.load %arg5[%c2_21, %c0_22] : memref<3x32xf32, #tpu.memory_space<vmem>>, vector<1x32xf32>
    %26 = vector.shape_cast %25 : vector<1x32xf32> to vector<32xf32>
    %27 = vector.shape_cast %26 : vector<32xf32> to vector<1x32xf32>
    %28 = vector.broadcast %27 : vector<1x32xf32> to vector<16x32xf32>
    %29 = arith.addf %24, %28 : vector<16x32xf32>
    %30 = arith.truncf %13 : vector<16x32xf32> to vector<16x32xbf16>
    %31 = vector.shape_cast %30 : vector<16x32xbf16> to vector<2x8x4x8xbf16>
    %32 = tpu.transpose %31, [0, 2, 1, 3] : vector<2x8x4x8xbf16> -> vector<2x4x8x8xbf16>
    %33 = vector.shape_cast %32 : vector<2x4x8x8xbf16> to vector<8x8x8xbf16>
    %34 = arith.truncf %21 : vector<16x32xf32> to vector<16x32xbf16>
    %35 = vector.shape_cast %34 : vector<16x32xbf16> to vector<2x8x4x8xbf16>
    %36 = tpu.transpose %35, [0, 2, 1, 3] : vector<2x8x4x8xbf16> -> vector<2x4x8x8xbf16>
    %37 = vector.shape_cast %36 : vector<2x4x8x8xbf16> to vector<8x8x8xbf16>
    %38 = arith.truncf %29 : vector<16x32xf32> to vector<16x32xbf16>
    %39 = vector.shape_cast %38 : vector<16x32xbf16> to vector<2x8x4x8xbf16>
    %40 = tpu.transpose %39, [0, 2, 1, 3] : vector<2x8x4x8xbf16> -> vector<2x4x8x8xbf16>
    %41 = vector.shape_cast %40 : vector<2x4x8x8xbf16> to vector<8x8x8xbf16>
    "tpu.trace_start"() <{level = 10 : i32, message = "bqd,bkd->bqk"}> : () -> ()
    %cst_23 = arith.constant dense<0.000000e+00> : vector<8x8x8xf32>
    %42 = tpu.matmul %33, %37, %cst_23 {dimension_numbers = #tpu.dot_dimension_numbers<[2], [2], [1], [1], [0, 0, 0, 1, 1, 1], [0], [0]>} : vector<8x8x8xbf16>, vector<8x8x8xbf16>, vector<8x8x8xf32> -> vector<8x8x8xf32>
    "tpu.trace_stop"() : () -> ()
    %cst_24 = arith.constant dense<0xFF800000> : vector<8x8xf32>
    %43 = vector.multi_reduction <maximumf>, %42, %cst_24 [2] : vector<8x8x8xf32> to vector<8x8xf32>
    %44 = vector.shape_cast %43 : vector<8x8xf32> to vector<8x8x1xf32>
    %45 = vector.broadcast %44 : vector<8x8x1xf32> to vector<8x8x8xf32>
    %46 = arith.subf %42, %45 : vector<8x8x8xf32>
    %47 = math.exp %46 : vector<8x8x8xf32>
    %cst_25 = arith.constant dense<0.000000e+00> : vector<8x8xf32>
    %48 = vector.multi_reduction <add>, %47, %cst_25 [2] : vector<8x8x8xf32> to vector<8x8xf32>
    %49 = vector.shape_cast %48 : vector<8x8xf32> to vector<8x8x1xf32>
    %50 = arith.truncf %47 : vector<8x8x8xf32> to vector<8x8x8xbf16>
    "tpu.trace_start"() <{level = 10 : i32, message = "bqk,bkd->bqd"}> : () -> ()
    %cst_26 = arith.constant dense<0.000000e+00> : vector<8x8x8xf32>
    %51 = tpu.matmul %50, %41, %cst_26 {dimension_numbers = #tpu.dot_dimension_numbers<[2], [1], [1], [2], [0, 0, 0, 1, 1, 2], [0], [0]>} : vector<8x8x8xbf16>, vector<8x8x8xbf16>, vector<8x8x8xf32> -> vector<8x8x8xf32>
    "tpu.trace_stop"() : () -> ()
    %52 = tpu.reciprocal %49 {approx = true} : vector<8x8x1xf32> -> vector<8x8x1xf32>
    %53 = vector.broadcast %52 : vector<8x8x1xf32> to vector<8x8x8xf32>
    %54 = arith.mulf %51, %53 : vector<8x8x8xf32>
    %55 = arith.truncf %54 : vector<8x8x8xf32> to vector<8x8x8xbf16>
    %56 = vector.shape_cast %55 : vector<8x8x8xbf16> to vector<2x4x8x8xbf16>
    %57 = tpu.transpose %56, [0, 2, 1, 3] : vector<2x4x8x8xbf16> -> vector<2x8x4x8xbf16>
    %58 = vector.shape_cast %57 : vector<2x8x4x8xbf16> to vector<16x32xbf16>
    %c0_27 = arith.constant 0 : index
    %c0_28 = arith.constant 0 : index
    %59 = vector.load %arg6[%c0_27, %c0_28] : memref<32x32xbf16, #tpu.memory_space<vmem>>, vector<32x32xbf16>
    %cst_29 = arith.constant dense<0.000000e+00> : vector<16x32xf32>
    %60 = tpu.matmul %58, %59, %cst_29 {dimension_numbers = #tpu.dot_dimension_numbers<[1], [0], [0], [1], [0, 0, 1, 1], [], []>} : vector<16x32xbf16>, vector<32x32xbf16>, vector<16x32xf32> -> vector<16x32xf32>
    %c0_30 = arith.constant 0 : index
    %c0_31 = arith.constant 0 : index
    %61 = vector.load %arg7[%c0_30, %c0_31] : memref<1x32xf32, #tpu.memory_space<vmem>>, vector<1x32xf32>
    %62 = vector.shape_cast %61 : vector<1x32xf32> to vector<32xf32>
    %63 = vector.shape_cast %62 : vector<32xf32> to vector<1x32xf32>
    %64 = vector.broadcast %63 : vector<1x32xf32> to vector<16x32xf32>
    %65 = arith.addf %60, %64 : vector<16x32xf32>
    %66 = vector.shape_cast %65 : vector<16x32xf32> to vector<2x8x32xf32>
    %c0_32 = arith.constant 0 : index
    %c0_33 = arith.constant 0 : index
    %c0_34 = arith.constant 0 : index
    %67 = vector.load %arg8[%c0_32, %c0_33, %c0_34] : memref<2x8x32xf32, #tpu.memory_space<vmem>>, vector<2x8x32xf32>
    tpu.vector_store %arg8[%c0_32, %c0_33, %c0_34], %66 {strides = array<i32>} : memref<2x8x32xf32, #tpu.memory_space<vmem>>, vector<2x8x32xf32>,
    return
  }
  func.func @transform_0(%arg0: i32) -> (i32, i32, i32) {
    %c0_i32 = arith.constant 0 : i32
    %c0_i32_0 = arith.constant 0 : i32
    %c0_i32_1 = arith.constant 0 : i32
    return %arg0, %c0_i32, %c0_i32_0 : i32, i32, i32
  }
  func.func @transform_1(%arg0: i32) -> (i32, i32, i32) {
    %c0_i32 = arith.constant 0 : i32
    %c0_i32_0 = arith.constant 0 : i32
    %c0_i32_1 = arith.constant 0 : i32
    return %arg0, %c0_i32, %c0_i32_0 : i32, i32, i32
  }
  func.func @transform_2(%arg0: i32) -> (i32, i32, i32) {
    %c0_i32 = arith.constant 0 : i32
    %c0_i32_0 = arith.constant 0 : i32
    %c0_i32_1 = arith.constant 0 : i32
    return %arg0, %c0_i32, %c0_i32_0 : i32, i32, i32
  }
  func.func @transform_3(%arg0: i32) -> (i32, i32, i32) {
    %c0_i32 = arith.constant 0 : i32
    %c0_i32_0 = arith.constant 0 : i32
    %c0_i32_1 = arith.constant 0 : i32
    %c0_i32_2 = arith.constant 0 : i32
    return %c0_i32, %c0_i32_0, %c0_i32_1 : i32, i32, i32
  }
  func.func @transform_4(%arg0: i32) -> (i32, i32) {
    %c0_i32 = arith.constant 0 : i32
    %c0_i32_0 = arith.constant 0 : i32
    %c0_i32_1 = arith.constant 0 : i32
    return %c0_i32, %c0_i32_0 : i32, i32
  }
  func.func @transform_5(%arg0: i32) -> (i32, i32) {
    %c0_i32 = arith.constant 0 : i32
    %c0_i32_0 = arith.constant 0 : i32
    %c0_i32_1 = arith.constant 0 : i32
    return %c0_i32, %c0_i32_0 : i32, i32
  }
  func.func @transform_6(%arg0: i32) -> (i32, i32) {
    %c0_i32 = arith.constant 0 : i32
    %c0_i32_0 = arith.constant 0 : i32
    %c0_i32_1 = arith.constant 0 : i32
    return %c0_i32, %c0_i32_0 : i32, i32
  }
  func.func @transform_7(%arg0: i32) -> (i32, i32, i32) {
    %c0_i32 = arith.constant 0 : i32
    %c0_i32_0 = arith.constant 0 : i32
    %c0_i32_1 = arith.constant 0 : i32
    return %arg0, %c0_i32, %c0_i32_0 : i32, i32, i32
  }
}

module attributes {stable_mosaic.version = 11 : i64} {
  func.func @_mha_kernel(%arg0: i32, %arg1: memref<2x8x32xbf16, #tpu.memory_space<vmem>>, %arg2: memref<2x8x32xbf16, #tpu.memory_space<vmem>>, %arg3: memref<2x8x32xbf16, #tpu.memory_space<vmem>>, %arg4: memref<3x32x32xbf16, #tpu.memory_space<vmem>>, %arg5: memref<3x32xf32, #tpu.memory_space<vmem>>, %arg6: memref<32x32xbf16, #tpu.memory_space<vmem>>, %arg7: memref<1x32xf32, #tpu.memory_space<vmem>>, %arg8: memref<2x8x32xf32, #tpu.memory_space<vmem>>) attributes {dimension_semantics = [#tpu.dimension_semantics<parallel>], iteration_bounds = array<i64: 1>, scalar_prefetch = 0 : i64, scratch_operands = 0 : i64, tpu.core_type = #tpu.core_type<tc>, window_params = [{transform_indices = @transform_0, window_bounds = array<i64: 2, 8, 32>}, {transform_indices = @transform_1, window_bounds = array<i64: 2, 8, 32>}, {transform_indices = @transform_2, window_bounds = array<i64: 2, 8, 32>}, {pipeline_mode = #tpu.pipeline_mode<synchronous>, transform_indices = @transform_3, window_bounds = array<i64: 3, 32, 32>}, {pipeline_mode = #tpu.pipeline_mode<synchronous>, transform_indices = @transform_4, window_bounds = array<i64: 3, 32>}, {pipeline_mode = #tpu.pipeline_mode<synchronous>, transform_indices = @transform_5, window_bounds = array<i64: 32, 32>}, {pipeline_mode = #tpu.pipeline_mode<synchronous>, transform_indices = @transform_6, window_bounds = array<i64: 1, 32>}, {transform_indices = @transform_7, window_bounds = array<i64: 2, 8, 32>}]} {
    %c0 = arith.constant 0 : index
    %c0_0 = arith.constant 0 : index
    %c0_1 = arith.constant 0 : index
    %0 = vector.load %arg1[%c0, %c0_0, %c0_1] : memref<2x8x32xbf16, #tpu.memory_space<vmem>>, vector<2x8x32xbf16>
    %1 = vector.shape_cast %0 : vector<2x8x32xbf16> to vector<16x32xbf16>
    %c0_2 = arith.constant 0 : index
    %c0_3 = arith.constant 0 : index
    %c0_4 = arith.constant 0 : index
    %2 = vector.load %arg2[%c0_2, %c0_3, %c0_4] : memref<2x8x32xbf16, #tpu.memory_space<vmem>>, vector<2x8x32xbf16>
    %3 = vector.shape_cast %2 : vector<2x8x32xbf16> to vector<16x32xbf16>
    %c0_5 = arith.constant 0 : index
    %c0_6 = arith.constant 0 : index
    %c0_7 = arith.constant 0 : index
    %4 = vector.load %arg3[%c0_5, %c0_6, %c0_7] : memref<2x8x32xbf16, #tpu.memory_space<vmem>>, vector<2x8x32xbf16>
    %5 = vector.shape_cast %4 : vector<2x8x32xbf16> to vector<16x32xbf16>
    %c0_8 = arith.constant 0 : index
    %c0_9 = arith.constant 0 : index
    %c0_10 = arith.constant 0 : index
    %6 = vector.load %arg4[%c0_8, %c0_9, %c0_10] : memref<3x32x32xbf16, #tpu.memory_space<vmem>>, vector<1x32x32xbf16>
    %7 = vector.shape_cast %6 : vector<1x32x32xbf16> to vector<32x32xbf16>
    %cst = arith.constant dense<0.000000e+00> : vector<16x32xf32>
    %8 = tpu.matmul %1, %7, %cst {dimension_numbers = #tpu.dot_dimension_numbers<[1], [0], [0], [1], [0, 0, 1, 1], [], []>} : vector<16x32xbf16>, vector<32x32xbf16>, vector<16x32xf32> -> vector<16x32xf32>
    %c0_11 = arith.constant 0 : index
    %c0_12 = arith.constant 0 : index
    %9 = vector.load %arg5[%c0_11, %c0_12] : memref<3x32xf32, #tpu.memory_space<vmem>>, vector<1x32xf32>
    %10 = vector.shape_cast %9 : vector<1x32xf32> to vector<32xf32>
    %11 = vector.shape_cast %10 : vector<32xf32> to vector<1x32xf32>
    %12 = vector.broadcast %11 : vector<1x32xf32> to vector<16x32xf32>
    %13 = arith.addf %8, %12 : vector<16x32xf32>
    %c1 = arith.constant 1 : index
    %c0_13 = arith.constant 0 : index
    %c0_14 = arith.constant 0 : index
    %14 = vector.load %arg4[%c1, %c0_13, %c0_14] : memref<3x32x32xbf16, #tpu.memory_space<vmem>>, vector<1x32x32xbf16>
    %15 = vector.shape_cast %14 : vector<1x32x32xbf16> to vector<32x32xbf16>
    %cst_15 = arith.constant dense<0.000000e+00> : vector<16x32xf32>
    %16 = tpu.matmul %3, %15, %cst_15 {dimension_numbers = #tpu.dot_dimension_numbers<[1], [0], [0], [1], [0, 0, 1, 1], [], []>} : vector<16x32xbf16>, vector<32x32xbf16>, vector<16x32xf32> -> vector<16x32xf32>
    %c1_16 = arith.constant 1 : index
    %c0_17 = arith.constant 0 : index
    %17 = vector.load %arg5[%c1_16, %c0_17] : memref<3x32xf32, #tpu.memory_space<vmem>>, vector<1x32xf32>
    %18 = vector.shape_cast %17 : vector<1x32xf32> to vector<32xf32>
    %19 = vector.shape_cast %18 : vector<32xf32> to vector<1x32xf32>
    %20 = vector.broadcast %19 : vector<1x32xf32> to vector<16x32xf32>
    %21 = arith.addf %16, %20 : vector<16x32xf32>
    %c2 = arith.constant 2 : index
    %c0_18 = arith.constant 0 : index
    %c0_19 = arith.constant 0 : index
    %22 = vector.load %arg4[%c2, %c0_18, %c0_19] : memref<3x32x32xbf16, #tpu.memory_space<vmem>>, vector<1x32x32xbf16>
    %23 = vector.shape_cast %22 : vector<1x32x32xbf16> to vector<32x32xbf16>
    %cst_20 = arith.constant dense<0.000000e+00> : vector<16x32xf32>
    %24 = tpu.matmul %5, %23, %cst_20 {dimension_numbers = #tpu.dot_dimension_numbers<[1], [0], [0], [1], [0, 0, 1, 1], [], []>} : vector<16x32xbf16>, vector<32x32xbf16>, vector<16x32xf32> -> vector<16x32xf32>
    %c2_21 = arith.constant 2 : index
    %c0_22 = arith.constant 0 : index
    %25 = vector.load %arg5[%c2_21, %c0_22] : memref<3x32xf32, #tpu.memory_space<vmem>>, vector<1x32xf32>
    %26 = vector.shape_cast %25 : vector<1x32xf32> to vector<32xf32>
    %27 = vector.shape_cast %26 : vector<32xf32> to vector<1x32xf32>
    %28 = vector.broadcast %27 : vector<1x32xf32> to vector<16x32xf32>
    %29 = arith.addf %24, %28 : vector<16x32xf32>
    %30 = arith.truncf %13 : vector<16x32xf32> to vector<16x32xbf16>
    %31 = vector.shape_cast %30 : vector<16x32xbf16> to vector<2x8x4x8xbf16>
    %32 = tpu.transpose %31, [0, 2, 1, 3] : vector<2x8x4x8xbf16> -> vector<2x4x8x8xbf16>
    %33 = vector.shape_cast %32 : vector<2x4x8x8xbf16> to vector<8x8x8xbf16>
    %34 = arith.truncf %21 : vector<16x32xf32> to vector<16x32xbf16>
    %35 = vector.shape_cast %34 : vector<16x32xbf16> to vector<2x8x4x8xbf16>
    %36 = tpu.transpose %35, [0, 2, 1, 3] : vector<2x8x4x8xbf16> -> vector<2x4x8x8xbf16>
    %37 = vector.shape_cast %36 : vector<2x4x8x8xbf16> to vector<8x8x8xbf16>
    %38 = arith.truncf %29 : vector<16x32xf32> to vector<16x32xbf16>
    %39 = vector.shape_cast %38 : vector<16x32xbf16> to vector<2x8x4x8xbf16>
    %40 = tpu.transpose %39, [0, 2, 1, 3] : vector<2x8x4x8xbf16> -> vector<2x4x8x8xbf16>
    %41 = vector.shape_cast %40 : vector<2x4x8x8xbf16> to vector<8x8x8xbf16>
    "tpu.trace_start"() <{level = 10 : i32, message = "bqd,bkd->bqk"}> : () -> ()
    %cst_23 = arith.constant dense<0.000000e+00> : vector<8x8x8xf32>
    %42 = tpu.matmul %33, %37, %cst_23 {dimension_numbers = #tpu.dot_dimension_numbers<[2], [2], [1], [1], [0, 0, 0, 1, 1, 1], [0], [0]>} : vector<8x8x8xbf16>, vector<8x8x8xbf16>, vector<8x8x8xf32> -> vector<8x8x8xf32>
    "tpu.trace_stop"() : () -> ()
    %cst_24 = arith.constant dense<0xFF800000> : vector<8x8xf32>
    %43 = vector.multi_reduction <maximumf>, %42, %cst_24 [2] : vector<8x8x8xf32> to vector<8x8xf32>
    %44 = vector.shape_cast %43 : vector<8x8xf32> to vector<8x8x1xf32>
    %45 = vector.broadcast %44 : vector<8x8x1xf32> to vector<8x8x8xf32>
    %46 = arith.subf %42, %45 : vector<8x8x8xf32>
    %47 = math.exp %46 : vector<8x8x8xf32>
    %cst_25 = arith.constant dense<0.000000e+00> : vector<8x8xf32>
    %48 = vector.multi_reduction <add>, %47, %cst_25 [2] : vector<8x8x8xf32> to vector<8x8xf32>
    %49 = vector.shape_cast %48 : vector<8x8xf32> to vector<8x8x1xf32>
    %50 = arith.truncf %47 : vector<8x8x8xf32> to vector<8x8x8xbf16>
    "tpu.trace_start"() <{level = 10 : i32, message = "bqk,bkd->bqd"}> : () -> ()
    %cst_26 = arith.constant dense<0.000000e+00> : vector<8x8x8xf32>
    %51 = tpu.matmul %50, %41, %cst_26 {dimension_numbers = #tpu.dot_dimension_numbers<[2], [1], [1], [2], [0, 0, 0, 1, 1, 2], [0], [0]>} : vector<8x8x8xbf16>, vector<8x8x8xbf16>, vector<8x8x8xf32> -> vector<8x8x8xf32>
    "tpu.trace_stop"() : () -> ()
    %52 = tpu.reciprocal %49 {approx = true} : vector<8x8x1xf32> -> vector<8x8x1xf32>
    %53 = vector.broadcast %52 : vector<8x8x1xf32> to vector<8x8x8xf32>
    %54 = arith.mulf %51, %53 : vector<8x8x8xf32>
    %55 = arith.truncf %54 : vector<8x8x8xf32> to vector<8x8x8xbf16>
    %56 = vector.shape_cast %55 : vector<8x8x8xbf16> to vector<2x4x8x8xbf16>
    %57 = tpu.transpose %56, [0, 2, 1, 3] : vector<2x4x8x8xbf16> -> vector<2x8x4x8xbf16>
    %58 = vector.shape_cast %57 : vector<2x8x4x8xbf16> to vector<16x32xbf16>
    %c0_27 = arith.constant 0 : index
    %c0_28 = arith.constant 0 : index
    %59 = vector.load %arg6[%c0_27, %c0_28] : memref<32x32xbf16, #tpu.memory_space<vmem>>, vector<32x32xbf16>
    %cst_29 = arith.constant dense<0.000000e+00> : vector<16x32xf32>
    %60 = tpu.matmul %58, %59, %cst_29 {dimension_numbers = #tpu.dot_dimension_numbers<[1], [0], [0], [1], [0, 0, 1, 1], [], []>} : vector<16x32xbf16>, vector<32x32xbf16>, vector<16x32xf32> -> vector<16x32xf32>
    %c0_30 = arith.constant 0 : index
    %c0_31 = arith.constant 0 : index
    %61 = vector.load %arg7[%c0_30, %c0_31] : memref<1x32xf32, #tpu.memory_space<vmem>>, vector<1x32xf32>
    %62 = vector.shape_cast %61 : vector<1x32xf32> to vector<32xf32>
    %63 = vector.shape_cast %62 : vector<32xf32> to vector<1x32xf32>
    %64 = vector.broadcast %63 : vector<1x32xf32> to vector<16x32xf32>
    %65 = arith.addf %60, %64 : vector<16x32xf32>
    %66 = vector.shape_cast %65 : vector<16x32xf32> to vector<2x8x32xf32>
    %c0_32 = arith.constant 0 : index
    %c0_33 = arith.constant 0 : index
    %c0_34 = arith.constant 0 : index
    %67 = vector.load %arg8[%c0_32, %c0_33, %c0_34] : memref<2x8x32xf32, #tpu.memory_space<vmem>>, vector<2x8x32xf32>
    tpu.vector_store %arg8[%c0_32, %c0_33, %c0_34], %66 {strides = array<i32>} : memref<2x8x32xf32, #tpu.memory_space<vmem>>, vector<2x8x32xf32>,
    return
  }
  func.func @transform_0(%arg0: i32) -> (i32, i32, i32) {
    %c0_i32 = arith.constant 0 : i32
    %c0_i32_0 = arith.constant 0 : i32
    %c0_i32_1 = arith.constant 0 : i32
    return %arg0, %c0_i32, %c0_i32_0 : i32, i32, i32
  }
  func.func @transform_1(%arg0: i32) -> (i32, i32, i32) {
    %c0_i32 = arith.constant 0 : i32
    %c0_i32_0 = arith.constant 0 : i32
    %c0_i32_1 = arith.constant 0 : i32
    return %arg0, %c0_i32, %c0_i32_0 : i32, i32, i32
  }
  func.func @transform_2(%arg0: i32) -> (i32, i32, i32) {
    %c0_i32 = arith.constant 0 : i32
    %c0_i32_0 = arith.constant 0 : i32
    %c0_i32_1 = arith.constant 0 : i32
    return %arg0, %c0_i32, %c0_i32_0 : i32, i32, i32
  }
  func.func @transform_3(%arg0: i32) -> (i32, i32, i32) {
    %c0_i32 = arith.constant 0 : i32
    %c0_i32_0 = arith.constant 0 : i32
    %c0_i32_1 = arith.constant 0 : i32
    %c0_i32_2 = arith.constant 0 : i32
    return %c0_i32, %c0_i32_0, %c0_i32_1 : i32, i32, i32
  }
  func.func @transform_4(%arg0: i32) -> (i32, i32) {
    %c0_i32 = arith.constant 0 : i32
    %c0_i32_0 = arith.constant 0 : i32
    %c0_i32_1 = arith.constant 0 : i32
    return %c0_i32, %c0_i32_0 : i32, i32
  }
  func.func @transform_5(%arg0: i32) -> (i32, i32) {
    %c0_i32 = arith.constant 0 : i32
    %c0_i32_0 = arith.constant 0 : i32
    %c0_i32_1 = arith.constant 0 : i32
    return %c0_i32, %c0_i32_0 : i32, i32
  }
  func.func @transform_6(%arg0: i32) -> (i32, i32) {
    %c0_i32 = arith.constant 0 : i32
    %c0_i32_0 = arith.constant 0 : i32
    %c0_i32_1 = arith.constant 0 : i32
    return %c0_i32, %c0_i32_0 : i32, i32
  }
  func.func @transform_7(%arg0: i32) -> (i32, i32, i32) {
    %c0_i32 = arith.constant 0 : i32
    %c0_i32_0 = arith.constant 0 : i32
    %c0_i32_1 = arith.constant 0 : i32
    return %arg0, %c0_i32, %c0_i32_0 : i32, i32, i32
  }
}

</mosaic_0001>

<llo_original>
// kernel: tpu_custom_call.1
$region0: #{tpu_custom_call.1}
  #allocation0 [shape = 'u32[]', space=smem, size = 0x4, offset = 0x4, fixed_abs, tag = 'smem constant byte address 0x4 - core index']
  #allocation1 [shape = 'u32[144,128]{1,0:T(1,128)}', space=vmem, size = 0x12000, scoped, tag = 'internal scratch']
  %s0 = inlined_call_operand.hbm [shape: bf16[2,8,32], index: 0, kind: input, shape index: {}]
  %s1 = inlined_call_operand.hbm [shape: bf16[2,8,32], index: 1, kind: input, shape index: {}]
  %s2 = inlined_call_operand.hbm [shape: bf16[2,8,32], index: 2, kind: input, shape index: {}]
  %s3 = inlined_call_operand.hbm [shape: bf16[3,32,32], index: 3, kind: input, shape index: {}]
  %s4 = inlined_call_operand.vmem [shape: f32[3,32], index: 4, kind: input, shape index: {}]
  %s5 = inlined_call_operand.hbm [shape: bf16[32,32], index: 5, kind: input, shape index: {}]
  %s6 = inlined_call_operand.vmem [shape: f32[1,32], index: 6, kind: input, shape index: {}]
  %s7 = inlined_call_operand.hbm [shape: f32[2,8,32], index: 7, kind: output, shape index: {}]
  %s8 = sld [smem:[#allocation0]]
  $region58: #{tpu_custom_call.1} parent=0
    _
  %s10 = ssub.s32 1, %s8
  %s11 = scalar_select 0, %s10, %s8
  $region1: #{tpu_custom_call.1} parent=0
    #allocation2 [shape = 'u8[4096]{0}', space=vmem, size = 0x1000, scoped, tag = 'input window, operand 0, single buffered']
    #allocation3 [shape = 's32[1]{0}', space=sflag, size = 0x4, scoped, tag = 'scoped memory for tpu_custom_call.1']
    #allocation4 [shape = 's32[1]{0}', space=sflag, size = 0x4, scoped, tag = 'scoped memory for tpu_custom_call.1']
    #allocation5 [shape = 'u8[4096]{0}', space=vmem, size = 0x1000, scoped, tag = 'input window, operand 1, single buffered']
    #allocation6 [shape = 's32[1]{0}', space=sflag, size = 0x4, scoped, tag = 'scoped memory for tpu_custom_call.1']
    #allocation7 [shape = 'u8[4096]{0}', space=vmem, size = 0x1000, scoped, tag = 'input window, operand 2, single buffered']
    #allocation8 [shape = 'u8[24576]{0}', space=vmem, size = 0x6000, scoped, tag = 'input window, operand 3, single buffered']
    #allocation9 [shape = 's32[1]{0}', space=sflag, size = 0x4, scoped, tag = 'scoped memory for tpu_custom_call.1']
    #allocation10 [shape = 'u8[8192]{0}', space=vmem, size = 0x2000, scoped, tag = 'input window, operand 5, single buffered']
    #allocation11 [shape = 'u8[8192]{0}', space=vmem, size = 0x2000, scoped, tag = 'output window, operand 0, single buffered']
    %12 = vsyncpa [#allocation3], 0
    %13 = vsyncpa [#allocation6], 0
    %14 = vsyncpa [#allocation9], 0
    %15 = vsyncpa [#allocation4], 0
    // Predicated region
    $region2: #{tpu_custom_call.1} parent=1 // pred_check
      _
    $region3: #{tpu_custom_call.1} parent=1 // pred_check_branch
      %17 = sbr.rel (0) target = $region5
    $region4: #{tpu_custom_call.1} parent=1 // pred_region
      %s19 = ssub.s32 128, 128
      %20 = vsyncadd [#allocation3], %s19
      %s21 = sshll.u32 [#allocation2], 4
      %s22 = int_to_ptr.vmem [resolvable:$true] %s21
      %27 = dma.hbm_to_vmem [thread:$0]  %s0, 128, %s22, [#allocation3], 64, 64, 4
    $region5: #{tpu_custom_call.1} parent=1 // pred_fallthru
      _
    // Predicated region
    $region6: #{tpu_custom_call.1} parent=1 // pred_check
      _
    $region7: #{tpu_custom_call.1} parent=1 // pred_check_branch
      %29 = sbr.rel (0) target = $region9
    $region8: #{tpu_custom_call.1} parent=1 // pred_region
      %s31 = ssub.s32 128, 128
      %32 = vsyncadd [#allocation6], %s31
      %s33 = sshll.u32 [#allocation5], 4
      %s34 = int_to_ptr.vmem [resolvable:$true] %s33
      %39 = dma.hbm_to_vmem [thread:$0]  %s1, 128, %s34, [#allocation6], 64, 64, 4
    $region9: #{tpu_custom_call.1} parent=1 // pred_fallthru
      _
    // Predicated region
    $region10: #{tpu_custom_call.1} parent=1 // pred_check
      _
    $region11: #{tpu_custom_call.1} parent=1 // pred_check_branch
      %41 = sbr.rel (0) target = $region13
    $region12: #{tpu_custom_call.1} parent=1 // pred_region
      %s43 = ssub.s32 128, 128
      %44 = vsyncadd [#allocation6], %s43
      %s45 = sshll.u32 [#allocation7], 4
      %s46 = int_to_ptr.vmem [resolvable:$true] %s45
      %51 = dma.hbm_to_vmem [thread:$0]  %s2, 128, %s46, [#allocation6], 64, 64, 4
    $region13: #{tpu_custom_call.1} parent=1 // pred_fallthru
      _
    // Predicated region
    $region14: #{tpu_custom_call.1} parent=1 // pred_check
      _
    $region15: #{tpu_custom_call.1} parent=1 // pred_check_branch
      %53 = sbr.rel (0) target = $region17
    $region16: #{tpu_custom_call.1} parent=1 // pred_region
      %s55 = ssub.s32 768, 768
      %56 = vsyncadd [#allocation9], %s55
      %s57 = sshll.u32 [#allocation8], 4
      %s58 = int_to_ptr.vmem [resolvable:$true] %s57
      %63 = dma.hbm_to_vmem [thread:$0]  %s3, 768, %s58, [#allocation9], 64, 64, 4
    $region17: #{tpu_custom_call.1} parent=1 // pred_fallthru
      _
    // Predicated region
    $region18: #{tpu_custom_call.1} parent=1 // pred_check
      _
    $region19: #{tpu_custom_call.1} parent=1 // pred_check_branch
      %65 = sbr.rel (0) target = $region21
    $region20: #{tpu_custom_call.1} parent=1 // pred_region
      _
    $region21: #{tpu_custom_call.1} parent=1 // pred_fallthru
      _
    // Predicated region
    $region22: #{tpu_custom_call.1} parent=1 // pred_check
      _
    $region23: #{tpu_custom_call.1} parent=1 // pred_check_branch
      %67 = sbr.rel (0) target = $region25
    $region24: #{tpu_custom_call.1} parent=1 // pred_region
      %s69 = ssub.s32 256, 256
      %70 = vsyncadd [#allocation9], %s69
      %s71 = sshll.u32 [#allocation10], 4
      %s72 = int_to_ptr.vmem [resolvable:$true] %s71
      %77 = dma.hbm_to_vmem [thread:$0]  %s5, 256, %s72, [#allocation9], 64, 64, 4
    $region25: #{tpu_custom_call.1} parent=1 // pred_fallthru
      _
    // Predicated region
    $region26: #{tpu_custom_call.1} parent=1 // pred_check
      _
    $region27: #{tpu_custom_call.1} parent=1 // pred_check_branch
      %79 = sbr.rel (0) target = $region29
    $region28: #{tpu_custom_call.1} parent=1 // pred_region
      _
    $region29: #{tpu_custom_call.1} parent=1 // pred_fallthru
      _
    // Predicated region
    $region30: #{tpu_custom_call.1} parent=1 // pred_check
      _
    $region31: #{tpu_custom_call.1} parent=1 // pred_check_branch
      %81 = sbr.rel (0) target = $region33
    $region32: #{tpu_custom_call.1} parent=1 // pred_region
      %82 = dma.done [#allocation3], 128
    $region33: #{tpu_custom_call.1} parent=1 // pred_fallthru
      _
    // Predicated region
    $region34: #{tpu_custom_call.1} parent=1 // pred_check
      _
    $region35: #{tpu_custom_call.1} parent=1 // pred_check_branch
      %84 = sbr.rel (0) target = $region37
    $region36: #{tpu_custom_call.1} parent=1 // pred_region
      %85 = dma.done [#allocation6], 128
    $region37: #{tpu_custom_call.1} parent=1 // pred_fallthru
      _
    // Predicated region
    $region38: #{tpu_custom_call.1} parent=1 // pred_check
      _
    $region39: #{tpu_custom_call.1} parent=1 // pred_check_branch
      %87 = sbr.rel (0) target = $region41
    $region40: #{tpu_custom_call.1} parent=1 // pred_region
      %88 = dma.done [#allocation6], 128
    $region41: #{tpu_custom_call.1} parent=1 // pred_fallthru
      _
    // Predicated region
    $region42: #{tpu_custom_call.1} parent=1 // pred_check
      _
    $region43: #{tpu_custom_call.1} parent=1 // pred_check_branch
      %90 = sbr.rel (0) target = $region45
    $region44: #{tpu_custom_call.1} parent=1 // pred_region
      %91 = dma.done [#allocation9], 768
    $region45: #{tpu_custom_call.1} parent=1 // pred_fallthru
      _
    // Predicated region
    $region46: #{tpu_custom_call.1} parent=1 // pred_check
      _
    $region47: #{tpu_custom_call.1} parent=1 // pred_check_branch
      %93 = sbr.rel (0) target = $region49
    $region48: #{tpu_custom_call.1} parent=1 // pred_region
      %94 = dma.done [#allocation9], 256
    $region49: #{tpu_custom_call.1} parent=1 // pred_fallthru
      _
    %v96 = vld [vmem:[#allocation2] sm:$0xf]
    %v97 = vld [vmem:[#allocation2 + $0x4] sm:$0xf]
    %v98 = vld [vmem:[#allocation5] sm:$0xf]
    %v99 = vld [vmem:[#allocation5 + $0x4] sm:$0xf]
    %v100 = vld [vmem:[#allocation7] sm:$0xf]
    %v101 = vld [vmem:[#allocation7 + $0x4] sm:$0xf]
    %v102 = vld [vmem:[#allocation8] sm:$0xf]
    %v103 = vld [vmem:[#allocation8 + $0x4] sm:$0xf]
    %v104 = vld [vmem:[#allocation8 + $0x8] sm:$0xf]
    %v105 = vld [vmem:[#allocation8 + $0xc] sm:$0xf]
    %v106 = vld [vmem:[%s4] sm:$0x1]
    %v107 = vlaneseq
    %v108 = vshrl.u32 %v107, 7
    %v109 = vsub.s32 0, %v108
    %v110 = vrot.slane %v106, %v109
    %v113 = vunpack.c.l.b16 %v96
    %v114 = vunpack.c.l.b16 %v97
    %v115 = vpack.c.b16 %v114, %v113
    %v120 = vunpack.c.l.b16 %v102
    %v121 = vunpack.c.l.b16 %v103
    %v122 = vunpack.c.l.b16 %v104
    %v123 = vunpack.c.l.b16 %v105
    %v124 = vpack.c.b16 %v121, %v120
    %v125 = vpack.c.b16 %v123, %v122
    %vm128 = vcmask 261120
    %v130 = vsel %vm128, %v115, 0
    %132 = vmatprep.subr.bf16.mxu0 0
    %133 = vmatpush1.bf16.msra.mxu0 0
    %134 = vmatprep.subr.bf16.mxu0 0
    %135 = vmatpush1.bf16.msra.mxu0 0
    %136 = vmatprep.subr.bf16.mxu0 0
    %137 = vmatpush1.bf16.msra.mxu0 0
    %138 = vmatprep.subr.bf16.mxu0 0
    %139 = vmatpush1.bf16.msra.mxu0 0
    %140 = vmatprep.subr.bf16.mxu0 0
    %141 = vmatpush1.bf16.msra.mxu0 0
    %142 = vmatprep.subr.bf16.mxu0 0
    %143 = vmatpush1.bf16.msra.mxu0 0
    %144 = vmatprep.subr.bf16.mxu0 0
    %145 = vmatpush1.bf16.msra.mxu0 %v125
    %146 = vmatprep.subr.bf16.mxu0 0
    %147 = vmatpush1.bf16.msra.mxu0 %v124
    %148 = vmatprep.subr.bf16.mxu0 0
    %149 = vmatpush2.bf16.msra.mxu0 0
    %150 = vmatprep.subr.bf16.mxu0 0
    %151 = vmatpush2.bf16.msra.mxu0 0
    %152 = vmatprep.subr.bf16.mxu0 0
    %153 = vmatpush2.bf16.msra.mxu0 0
    %154 = vmatprep.subr.bf16.mxu0 0
    %155 = vmatpush2.bf16.msra.mxu0 0
    %156 = vmatprep.subr.bf16.mxu0 0
    %157 = vmatpush2.bf16.msra.mxu0 0
    %158 = vmatprep.subr.bf16.mxu0 0
    %159 = vmatpush2.bf16.msra.mxu0 0
    %160 = vmatprep.subr.bf16.mxu0 0
    %161 = vmatpush2.bf16.msra.mxu0 0
    %162 = vmatprep.subr.bf16.mxu0 0
    %163 = vmatpush2.bf16.msra.mxu0 0
    %164 = vmatprep.mubr.bf16.mxu0 0
    %165 = vmatmul.mubr.bf16.gmra.mxu0 %v130
    %v166 = vpop.f32.mrf.mxu0
    %v167 = vadd.f32 %v110, %v166
    %v168 = vpop.f32.mrf.mxu0
    %v169 = vpop.f32.mrf.mxu0
    %v170 = vadd.f32 %v110, %v169
    %v171 = vpop.f32.mrf.mxu0
    %172 = vdwg.mxu0
    %s173 = scalar_lea.vmem [#allocation8], 16
    %v174 = vld [vmem:[%s173] sm:$0xf]
    %v175 = vld [vmem:[%s173 + $0x4] sm:$0xf]
    %v176 = vld [vmem:[%s173 + $0x8] sm:$0xf]
    %v177 = vld [vmem:[%s173 + $0xc] sm:$0xf]
    %v178 = vld [vmem:[%s4 + $0x1] sm:$0x1]
    %v179 = vlaneseq
    %v180 = vshrl.u32 %v179, 7
    %v181 = vsub.s32 0, %v180
    %v182 = vrot.slane %v178, %v181
    %v185 = vunpack.c.l.b16 %v98
    %v186 = vunpack.c.l.b16 %v99
    %v187 = vpack.c.b16 %v186, %v185
    %v192 = vunpack.c.l.b16 %v174
    %v193 = vunpack.c.l.b16 %v175
    %v194 = vunpack.c.l.b16 %v176
    %v195 = vunpack.c.l.b16 %v177
    %v196 = vpack.c.b16 %v193, %v192
    %v197 = vpack.c.b16 %v195, %v194
    %v201 = vsel %vm128, %v187, 0
    %203 = vmatprep.subr.bf16.mxu0 0
    %204 = vmatpush1.bf16.msra.mxu0 0
    %205 = vmatprep.subr.bf16.mxu0 0
    %206 = vmatpush1.bf16.msra.mxu0 0
    %207 = vmatprep.subr.bf16.mxu0 0
    %208 = vmatpush1.bf16.msra.mxu0 0
    %209 = vmatprep.subr.bf16.mxu0 0
    %210 = vmatpush1.bf16.msra.mxu0 0
    %211 = vmatprep.subr.bf16.mxu0 0
    %212 = vmatpush1.bf16.msra.mxu0 0
    %213 = vmatprep.subr.bf16.mxu0 0
    %214 = vmatpush1.bf16.msra.mxu0 0
    %215 = vmatprep.subr.bf16.mxu0 0
    %216 = vmatpush1.bf16.msra.mxu0 %v197
    %217 = vmatprep.subr.bf16.mxu0 0
    %218 = vmatpush1.bf16.msra.mxu0 %v196
    %219 = vmatprep.subr.bf16.mxu0 0
    %220 = vmatpush2.bf16.msra.mxu0 0
    %221 = vmatprep.subr.bf16.mxu0 0
    %222 = vmatpush2.bf16.msra.mxu0 0
    %223 = vmatprep.subr.bf16.mxu0 0
    %224 = vmatpush2.bf16.msra.mxu0 0
    %225 = vmatprep.subr.bf16.mxu0 0
    %226 = vmatpush2.bf16.msra.mxu0 0
    %227 = vmatprep.subr.bf16.mxu0 0
    %228 = vmatpush2.bf16.msra.mxu0 0
    %229 = vmatprep.subr.bf16.mxu0 0
    %230 = vmatpush2.bf16.msra.mxu0 0
    %231 = vmatprep.subr.bf16.mxu0 0
    %232 = vmatpush2.bf16.msra.mxu0 0
    %233 = vmatprep.subr.bf16.mxu0 0
    %234 = vmatpush2.bf16.msra.mxu0 0
    %235 = vmatprep.mubr.bf16.mxu0 0
    %236 = vmatmul.mubr.bf16.gmra.mxu0 %v201
    %v237 = vpop.f32.mrf.mxu0
    %v238 = vadd.f32 %v182, %v237
    %v239 = vpop.f32.mrf.mxu0
    %v240 = vpop.f32.mrf.mxu0
    %v241 = vadd.f32 %v182, %v240
    %v242 = vpop.f32.mrf.mxu0
    %243 = vdwg.mxu0
    %s244 = scalar_lea.vmem [#allocation8], 32
    %v245 = vld [vmem:[%s244] sm:$0xf]
    %v246 = vld [vmem:[%s244 + $0x4] sm:$0xf]
    %v247 = vld [vmem:[%s244 + $0x8] sm:$0xf]
    %v248 = vld [vmem:[%s244 + $0xc] sm:$0xf]
    %v249 = vld [vmem:[%s4 + $0x2] sm:$0x1]
    %v250 = vlaneseq
    %v251 = vshrl.u32 %v250, 7
    %v252 = vsub.s32 0, %v251
    %v253 = vrot.slane %v249, %v252
    %v256 = vunpack.c.l.b16 %v100
    %v257 = vunpack.c.l.b16 %v101
    %v258 = vpack.c.b16 %v257, %v256
    %v263 = vunpack.c.l.b16 %v245
    %v264 = vunpack.c.l.b16 %v246
    %v265 = vunpack.c.l.b16 %v247
    %v266 = vunpack.c.l.b16 %v248
    %v267 = vpack.c.b16 %v264, %v263
    %v268 = vpack.c.b16 %v266, %v265
    %v272 = vsel %vm128, %v258, 0
    %274 = vmatprep.subr.bf16.mxu0 0
    %275 = vmatpush1.bf16.msra.mxu0 0
    %276 = vmatprep.subr.bf16.mxu0 0
    %277 = vmatpush1.bf16.msra.mxu0 0
    %278 = vmatprep.subr.bf16.mxu0 0
    %279 = vmatpush1.bf16.msra.mxu0 0
    %280 = vmatprep.subr.bf16.mxu0 0
    %281 = vmatpush1.bf16.msra.mxu0 0
    %282 = vmatprep.subr.bf16.mxu0 0
    %283 = vmatpush1.bf16.msra.mxu0 0
    %284 = vmatprep.subr.bf16.mxu0 0
    %285 = vmatpush1.bf16.msra.mxu0 0
    %286 = vmatprep.subr.bf16.mxu0 0
    %287 = vmatpush1.bf16.msra.mxu0 %v268
    %288 = vmatprep.subr.bf16.mxu0 0
    %289 = vmatpush1.bf16.msra.mxu0 %v267
    %290 = vmatprep.subr.bf16.mxu0 0
    %291 = vmatpush2.bf16.msra.mxu0 0
    %292 = vmatprep.subr.bf16.mxu0 0
    %293 = vmatpush2.bf16.msra.mxu0 0
    %294 = vmatprep.subr.bf16.mxu0 0
    %295 = vmatpush2.bf16.msra.mxu0 0
    %296 = vmatprep.subr.bf16.mxu0 0
    %297 = vmatpush2.bf16.msra.mxu0 0
    %298 = vmatprep.subr.bf16.mxu0 0
    %299 = vmatpush2.bf16.msra.mxu0 0
    %300 = vmatprep.subr.bf16.mxu0 0
    %301 = vmatpush2.bf16.msra.mxu0 0
    %302 = vmatprep.subr.bf16.mxu0 0
    %303 = vmatpush2.bf16.msra.mxu0 0
    %304 = vmatprep.subr.bf16.mxu0 0
    %305 = vmatpush2.bf16.msra.mxu0 0
    %306 = vmatprep.mubr.bf16.mxu0 0
    %307 = vmatmul.mubr.bf16.gmra.mxu0 %v272
    %v308 = vpop.f32.mrf.mxu0
    %v309 = vadd.f32 %v253, %v308
    %v310 = vpop.f32.mrf.mxu0
    %v311 = vpop.f32.mrf.mxu0
    %v312 = vadd.f32 %v253, %v311
    %v313 = vpop.f32.mrf.mxu0
    %314 = vdwg.mxu0
    %v315 = vpack.c.bf16 %v170, %v167
    %317 = vrot.lane.b32.xlu0 %v315, 120
    %v318 = vpop.permute.xlu0 %317
    %319 = vrot.lane.b32.xlu0 %v315, 112
    %v320 = vpop.permute.xlu0 %319
    %321 = vrot.lane.b32.xlu0 %v315, 104
    %v322 = vpop.permute.xlu0 %321
    %v325 = vpack.i.b16 %v318, %v315
    %v327 = vshrl.u32 %v315, 16
    %v328 = vshrl.u32 %v318, 16
    %v329 = vpack.i.b16 %v328, %v327
    %v333 = vpack.i.b16 %v322, %v320
    %v335 = vshrl.u32 %v320, 16
    %v336 = vshrl.u32 %v322, 16
    %v337 = vpack.i.b16 %v336, %v335
    %v340 = vpack.i.b16 0, 0
    %v342 = vshrl.u32 0, 16
    %v343 = vpack.i.b16 %v342, %v342
    %v345 = vcombine.high %v325, %v340
    %v347 = vunpack.c.l.s4 1983009808
    %v348 = vunpack.c.0.s8 %v347
    %v349 = vlaneseq
    %v350 = vshrl.u32 %v349, 7
    %v351 = vsub.s32 %v348, %v350
    %v352 = vrot.slane %v325, %v351
    %v354 = vunpack.c.l.s4 1983009808
    %v355 = vunpack.c.0.s8 %v354
    %v356 = vlaneseq
    %v357 = vshrl.u32 %v356, 7
    %v358 = vsub.s32 %v355, %v357
    %v359 = vrot.slane %v345, %v358
    %v360 = vcombine.high %v333, %v340
    %v362 = vunpack.c.l.s4 1983009808
    %v363 = vunpack.c.0.s8 %v362
    %v364 = vlaneseq
    %v365 = vshrl.u32 %v364, 7
    %v366 = vsub.s32 %v363, %v365
    %v367 = vrot.slane %v333, %v366
    %v369 = vunpack.c.l.s4 1983009808
    %v370 = vunpack.c.0.s8 %v369
    %v371 = vlaneseq
    %v372 = vshrl.u32 %v371, 7
    %v373 = vsub.s32 %v370, %v372
    %v374 = vrot.slane %v360, %v373
    %v375 = vcombine.low %v352, %v367
    %v376 = vcombine.high %v352, %v367
    %v378 = vunpack.c.l.s4 1934713408
    %v379 = vunpack.c.0.s8 %v378
    %v380 = vlaneseq
    %v381 = vshrl.u32 %v380, 7
    %v382 = vsub.s32 %v379, %v381
    %v383 = vrot.slane %v375, %v382
    %v385 = vunpack.c.l.s4 1934713408
    %v386 = vunpack.c.0.s8 %v385
    %v387 = vlaneseq
    %v388 = vshrl.u32 %v387, 7
    %v389 = vsub.s32 %v386, %v388
    %v390 = vrot.slane %v376, %v389
    %v391 = vcombine.low %v359, %v374
    %v392 = vcombine.high %v359, %v374
    %v394 = vunpack.c.l.s4 1934713408
    %v395 = vunpack.c.0.s8 %v394
    %v396 = vlaneseq
    %v397 = vshrl.u32 %v396, 7
    %v398 = vsub.s32 %v395, %v397
    %v399 = vrot.slane %v391, %v398
    %v401 = vunpack.c.l.s4 1934713408
    %v402 = vunpack.c.0.s8 %v401
    %v403 = vlaneseq
    %v404 = vshrl.u32 %v403, 7
    %v405 = vsub.s32 %v402, %v404
    %v406 = vrot.slane %v392, %v405
    %v407 = vcombine.high %v383, 0
    %v408 = vcombine.high %v390, 0
    %v409 = vcombine.high %v399, 0
    %v410 = vcombine.high %v406, 0
    %v411 = vcombine.high %v329, %v343
    %v413 = vunpack.c.l.s4 1983009808
    %v414 = vunpack.c.0.s8 %v413
    %v415 = vlaneseq
    %v416 = vshrl.u32 %v415, 7
    %v417 = vsub.s32 %v414, %v416
    %v418 = vrot.slane %v329, %v417
    %v420 = vunpack.c.l.s4 1983009808
    %v421 = vunpack.c.0.s8 %v420
    %v422 = vlaneseq
    %v423 = vshrl.u32 %v422, 7
    %v424 = vsub.s32 %v421, %v423
    %v425 = vrot.slane %v411, %v424
    %v426 = vcombine.high %v337, %v343
    %v428 = vunpack.c.l.s4 1983009808
    %v429 = vunpack.c.0.s8 %v428
    %v430 = vlaneseq
    %v431 = vshrl.u32 %v430, 7
    %v432 = vsub.s32 %v429, %v431
    %v433 = vrot.slane %v337, %v432
    %v435 = vunpack.c.l.s4 1983009808
    %v436 = vunpack.c.0.s8 %v435
    %v437 = vlaneseq
    %v438 = vshrl.u32 %v437, 7
    %v439 = vsub.s32 %v436, %v438
    %v440 = vrot.slane %v426, %v439
    %v441 = vcombine.low %v418, %v433
    %v442 = vcombine.high %v418, %v433
    %v444 = vunpack.c.l.s4 1934713408
    %v445 = vunpack.c.0.s8 %v444
    %v446 = vlaneseq
    %v447 = vshrl.u32 %v446, 7
    %v448 = vsub.s32 %v445, %v447
    %v449 = vrot.slane %v441, %v448
    %v451 = vunpack.c.l.s4 1934713408
    %v452 = vunpack.c.0.s8 %v451
    %v453 = vlaneseq
    %v454 = vshrl.u32 %v453, 7
    %v455 = vsub.s32 %v452, %v454
    %v456 = vrot.slane %v442, %v455
    %v457 = vcombine.low %v425, %v440
    %v458 = vcombine.high %v425, %v440
    %v460 = vunpack.c.l.s4 1934713408
    %v461 = vunpack.c.0.s8 %v460
    %v462 = vlaneseq
    %v463 = vshrl.u32 %v462, 7
    %v464 = vsub.s32 %v461, %v463
    %v465 = vrot.slane %v457, %v464
    %v467 = vunpack.c.l.s4 1934713408
    %v468 = vunpack.c.0.s8 %v467
    %v469 = vlaneseq
    %v470 = vshrl.u32 %v469, 7
    %v471 = vsub.s32 %v468, %v470
    %v472 = vrot.slane %v458, %v471
    %v473 = vcombine.high %v449, 0
    %v474 = vcombine.high %v456, 0
    %v475 = vcombine.high %v465, 0
    %v476 = vcombine.high %v472, 0
    %v477 = vcombine.low %v383, %v390
    %v479 = vunpack.c.l.s4 1983009808
    %v480 = vunpack.c.0.s8 %v479
    %v481 = vlaneseq
    %v482 = vshrl.u32 %v481, 7
    %v483 = vsub.s32 %v480, %v482
    %v484 = vrot.slane %v477, %v483
    %v485 = vcombine.low %v407, %v408
    %v487 = vunpack.c.l.s4 1983009808
    %v488 = vunpack.c.0.s8 %v487
    %v489 = vlaneseq
    %v490 = vshrl.u32 %v489, 7
    %v491 = vsub.s32 %v488, %v490
    %v492 = vrot.slane %v485, %v491
    %v493 = vcombine.low %v484, %v492
    %v495 = vunpack.c.l.s4 1934713408
    %v496 = vunpack.c.0.s8 %v495
    %v497 = vlaneseq
    %v498 = vshrl.u32 %v497, 7
    %v499 = vsub.s32 %v496, %v498
    %v500 = vrot.slane %v493, %v499
    %v501 = vcombine.high %v500, 0
    %v502 = vcombine.low %v449, %v456
    %v504 = vunpack.c.l.s4 1983009808
    %v505 = vunpack.c.0.s8 %v504
    %v506 = vlaneseq
    %v507 = vshrl.u32 %v506, 7
    %v508 = vsub.s32 %v505, %v507
    %v509 = vrot.slane %v502, %v508
    %v510 = vcombine.low %v473, %v474
    %v512 = vunpack.c.l.s4 1983009808
    %v513 = vunpack.c.0.s8 %v512
    %v514 = vlaneseq
    %v515 = vshrl.u32 %v514, 7
    %v516 = vsub.s32 %v513, %v515
    %v517 = vrot.slane %v510, %v516
    %v518 = vcombine.low %v509, %v517
    %v520 = vunpack.c.l.s4 1934713408
    %v521 = vunpack.c.0.s8 %v520
    %v522 = vlaneseq
    %v523 = vshrl.u32 %v522, 7
    %v524 = vsub.s32 %v521, %v523
    %v525 = vrot.slane %v518, %v524
    %v526 = vcombine.high %v525, 0
    %v527 = vcombine.low %v399, %v406
    %v529 = vunpack.c.l.s4 1983009808
    %v530 = vunpack.c.0.s8 %v529
    %v531 = vlaneseq
    %v532 = vshrl.u32 %v531, 7
    %v533 = vsub.s32 %v530, %v532
    %v534 = vrot.slane %v527, %v533
    %v535 = vcombine.low %v409, %v410
    %v537 = vunpack.c.l.s4 1983009808
    %v538 = vunpack.c.0.s8 %v537
    %v539 = vlaneseq
    %v540 = vshrl.u32 %v539, 7
    %v541 = vsub.s32 %v538, %v540
    %v542 = vrot.slane %v535, %v541
    %v543 = vcombine.low %v534, %v542
    %v545 = vunpack.c.l.s4 1934713408
    %v546 = vunpack.c.0.s8 %v545
    %v547 = vlaneseq
    %v548 = vshrl.u32 %v547, 7
    %v549 = vsub.s32 %v546, %v548
    %v550 = vrot.slane %v543, %v549
    %v551 = vcombine.high %v550, 0
    %v552 = vcombine.low %v465, %v472
    %v554 = vunpack.c.l.s4 1983009808
    %v555 = vunpack.c.0.s8 %v554
    %v556 = vlaneseq
    %v557 = vshrl.u32 %v556, 7
    %v558 = vsub.s32 %v555, %v557
    %v559 = vrot.slane %v552, %v558
    %v560 = vcombine.low %v475, %v476
    %v562 = vunpack.c.l.s4 1983009808
    %v563 = vunpack.c.0.s8 %v562
    %v564 = vlaneseq
    %v565 = vshrl.u32 %v564, 7
    %v566 = vsub.s32 %v563, %v565
    %v567 = vrot.slane %v560, %v566
    %v568 = vcombine.low %v559, %v567
    %v570 = vunpack.c.l.s4 1934713408
    %v571 = vunpack.c.0.s8 %v570
    %v572 = vlaneseq
    %v573 = vshrl.u32 %v572, 7
    %v574 = vsub.s32 %v571, %v573
    %v575 = vrot.slane %v568, %v574
    %v576 = vcombine.high %v575, 0
    %v579 = vpack.i.b16 %v525, %v500
    %v580 = vshrl.u32 %v500, 16
    %v581 = vshrl.u32 %v525, 16
    %v582 = vpack.i.b16 %v581, %v580
    %v585 = vpack.i.b16 %v526, %v501
    %v586 = vshrl.u32 %v501, 16
    %v587 = vshrl.u32 %v526, 16
    %v588 = vpack.i.b16 %v587, %v586
    %v591 = vpack.i.b16 %v575, %v550
    %v592 = vshrl.u32 %v550, 16
    %v593 = vshrl.u32 %v575, 16
    %v594 = vpack.i.b16 %v593, %v592
    %v597 = vpack.i.b16 %v576, %v551
    %v598 = vshrl.u32 %v551, 16
    %v599 = vshrl.u32 %v576, 16
    %v600 = vpack.i.b16 %v599, %v598
    %v601 = vpack.c.bf16 %v241, %v238
    %603 = vrot.lane.b32.xlu0 %v601, 120
    %v604 = vpop.permute.xlu0 %603
    %605 = vrot.lane.b32.xlu0 %v601, 112
    %v606 = vpop.permute.xlu0 %605
    %607 = vrot.lane.b32.xlu0 %v601, 104
    %v608 = vpop.permute.xlu0 %607
    %v611 = vpack.i.b16 %v604, %v601
    %v613 = vshrl.u32 %v601, 16
    %v614 = vshrl.u32 %v604, 16
    %v615 = vpack.i.b16 %v614, %v613
    %v619 = vpack.i.b16 %v608, %v606
    %v621 = vshrl.u32 %v606, 16
    %v622 = vshrl.u32 %v608, 16
    %v623 = vpack.i.b16 %v622, %v621
    %v625 = vcombine.high %v611, %v340
    %v627 = vunpack.c.l.s4 1983009808
    %v628 = vunpack.c.0.s8 %v627
    %v629 = vlaneseq
    %v630 = vshrl.u32 %v629, 7
    %v631 = vsub.s32 %v628, %v630
    %v632 = vrot.slane %v611, %v631
    %v634 = vunpack.c.l.s4 1983009808
    %v635 = vunpack.c.0.s8 %v634
    %v636 = vlaneseq
    %v637 = vshrl.u32 %v636, 7
    %v638 = vsub.s32 %v635, %v637
    %v639 = vrot.slane %v625, %v638
    %v640 = vcombine.high %v619, %v340
    %v642 = vunpack.c.l.s4 1983009808
    %v643 = vunpack.c.0.s8 %v642
    %v644 = vlaneseq
    %v645 = vshrl.u32 %v644, 7
    %v646 = vsub.s32 %v643, %v645
    %v647 = vrot.slane %v619, %v646
    %v649 = vunpack.c.l.s4 1983009808
    %v650 = vunpack.c.0.s8 %v649
    %v651 = vlaneseq
    %v652 = vshrl.u32 %v651, 7
    %v653 = vsub.s32 %v650, %v652
    %v654 = vrot.slane %v640, %v653
    %v655 = vcombine.low %v632, %v647
    %v656 = vcombine.high %v632, %v647
    %v658 = vunpack.c.l.s4 1934713408
    %v659 = vunpack.c.0.s8 %v658
    %v660 = vlaneseq
    %v661 = vshrl.u32 %v660, 7
    %v662 = vsub.s32 %v659, %v661
    %v663 = vrot.slane %v655, %v662
    %v665 = vunpack.c.l.s4 1934713408
    %v666 = vunpack.c.0.s8 %v665
    %v667 = vlaneseq
    %v668 = vshrl.u32 %v667, 7
    %v669 = vsub.s32 %v666, %v668
    %v670 = vrot.slane %v656, %v669
    %v671 = vcombine.low %v639, %v654
    %v672 = vcombine.high %v639, %v654
    %v674 = vunpack.c.l.s4 1934713408
    %v675 = vunpack.c.0.s8 %v674
    %v676 = vlaneseq
    %v677 = vshrl.u32 %v676, 7
    %v678 = vsub.s32 %v675, %v677
    %v679 = vrot.slane %v671, %v678
    %v681 = vunpack.c.l.s4 1934713408
    %v682 = vunpack.c.0.s8 %v681
    %v683 = vlaneseq
    %v684 = vshrl.u32 %v683, 7
    %v685 = vsub.s32 %v682, %v684
    %v686 = vrot.slane %v672, %v685
    %v687 = vcombine.high %v663, 0
    %v688 = vcombine.high %v670, 0
    %v689 = vcombine.high %v679, 0
    %v690 = vcombine.high %v686, 0
    %v691 = vcombine.high %v615, %v343
    %v693 = vunpack.c.l.s4 1983009808
    %v694 = vunpack.c.0.s8 %v693
    %v695 = vlaneseq
    %v696 = vshrl.u32 %v695, 7
    %v697 = vsub.s32 %v694, %v696
    %v698 = vrot.slane %v615, %v697
    %v700 = vunpack.c.l.s4 1983009808
    %v701 = vunpack.c.0.s8 %v700
    %v702 = vlaneseq
    %v703 = vshrl.u32 %v702, 7
    %v704 = vsub.s32 %v701, %v703
    %v705 = vrot.slane %v691, %v704
    %v706 = vcombine.high %v623, %v343
    %v708 = vunpack.c.l.s4 1983009808
    %v709 = vunpack.c.0.s8 %v708
    %v710 = vlaneseq
    %v711 = vshrl.u32 %v710, 7
    %v712 = vsub.s32 %v709, %v711
    %v713 = vrot.slane %v623, %v712
    %v715 = vunpack.c.l.s4 1983009808
    %v716 = vunpack.c.0.s8 %v715
    %v717 = vlaneseq
    %v718 = vshrl.u32 %v717, 7
    %v719 = vsub.s32 %v716, %v718
    %v720 = vrot.slane %v706, %v719
    %v721 = vcombine.low %v698, %v713
    %v722 = vcombine.high %v698, %v713
    %v724 = vunpack.c.l.s4 1934713408
    %v725 = vunpack.c.0.s8 %v724
    %v726 = vlaneseq
    %v727 = vshrl.u32 %v726, 7
    %v728 = vsub.s32 %v725, %v727
    %v729 = vrot.slane %v721, %v728
    %v731 = vunpack.c.l.s4 1934713408
    %v732 = vunpack.c.0.s8 %v731
    %v733 = vlaneseq
    %v734 = vshrl.u32 %v733, 7
    %v735 = vsub.s32 %v732, %v734
    %v736 = vrot.slane %v722, %v735
    %v737 = vcombine.low %v705, %v720
    %v738 = vcombine.high %v705, %v720
    %v740 = vunpack.c.l.s4 1934713408
    %v741 = vunpack.c.0.s8 %v740
    %v742 = vlaneseq
    %v743 = vshrl.u32 %v742, 7
    %v744 = vsub.s32 %v741, %v743
    %v745 = vrot.slane %v737, %v744
    %v747 = vunpack.c.l.s4 1934713408
    %v748 = vunpack.c.0.s8 %v747
    %v749 = vlaneseq
    %v750 = vshrl.u32 %v749, 7
    %v751 = vsub.s32 %v748, %v750
    %v752 = vrot.slane %v738, %v751
    %v753 = vcombine.high %v729, 0
    %v754 = vcombine.high %v736, 0
    %v755 = vcombine.high %v745, 0
    %v756 = vcombine.high %v752, 0
    %v757 = vcombine.low %v663, %v670
    %v759 = vunpack.c.l.s4 1983009808
    %v760 = vunpack.c.0.s8 %v759
    %v761 = vlaneseq
    %v762 = vshrl.u32 %v761, 7
    %v763 = vsub.s32 %v760, %v762
    %v764 = vrot.slane %v757, %v763
    %v765 = vcombine.low %v687, %v688
    %v767 = vunpack.c.l.s4 1983009808
    %v768 = vunpack.c.0.s8 %v767
    %v769 = vlaneseq
    %v770 = vshrl.u32 %v769, 7
    %v771 = vsub.s32 %v768, %v770
    %v772 = vrot.slane %v765, %v771
    %v773 = vcombine.low %v764, %v772
    %v775 = vunpack.c.l.s4 1934713408
    %v776 = vunpack.c.0.s8 %v775
    %v777 = vlaneseq
    %v778 = vshrl.u32 %v777, 7
    %v779 = vsub.s32 %v776, %v778
    %v780 = vrot.slane %v773, %v779
    %v781 = vcombine.high %v780, 0
    %v782 = vcombine.low %v729, %v736
    %v784 = vunpack.c.l.s4 1983009808
    %v785 = vunpack.c.0.s8 %v784
    %v786 = vlaneseq
    %v787 = vshrl.u32 %v786, 7
    %v788 = vsub.s32 %v785, %v787
    %v789 = vrot.slane %v782, %v788
    %v790 = vcombine.low %v753, %v754
    %v792 = vunpack.c.l.s4 1983009808
    %v793 = vunpack.c.0.s8 %v792
    %v794 = vlaneseq
    %v795 = vshrl.u32 %v794, 7
    %v796 = vsub.s32 %v793, %v795
    %v797 = vrot.slane %v790, %v796
    %v798 = vcombine.low %v789, %v797
    %v800 = vunpack.c.l.s4 1934713408
    %v801 = vunpack.c.0.s8 %v800
    %v802 = vlaneseq
    %v803 = vshrl.u32 %v802, 7
    %v804 = vsub.s32 %v801, %v803
    %v805 = vrot.slane %v798, %v804
    %v806 = vcombine.high %v805, 0
    %v807 = vcombine.low %v679, %v686
    %v809 = vunpack.c.l.s4 1983009808
    %v810 = vunpack.c.0.s8 %v809
    %v811 = vlaneseq
    %v812 = vshrl.u32 %v811, 7
    %v813 = vsub.s32 %v810, %v812
    %v814 = vrot.slane %v807, %v813
    %v815 = vcombine.low %v689, %v690
    %v817 = vunpack.c.l.s4 1983009808
    %v818 = vunpack.c.0.s8 %v817
    %v819 = vlaneseq
    %v820 = vshrl.u32 %v819, 7
    %v821 = vsub.s32 %v818, %v820
    %v822 = vrot.slane %v815, %v821
    %v823 = vcombine.low %v814, %v822
    %v825 = vunpack.c.l.s4 1934713408
    %v826 = vunpack.c.0.s8 %v825
    %v827 = vlaneseq
    %v828 = vshrl.u32 %v827, 7
    %v829 = vsub.s32 %v826, %v828
    %v830 = vrot.slane %v823, %v829
    %v831 = vcombine.high %v830, 0
    %v832 = vcombine.low %v745, %v752
    %v834 = vunpack.c.l.s4 1983009808
    %v835 = vunpack.c.0.s8 %v834
    %v836 = vlaneseq
    %v837 = vshrl.u32 %v836, 7
    %v838 = vsub.s32 %v835, %v837
    %v839 = vrot.slane %v832, %v838
    %v840 = vcombine.low %v755, %v756
    %v842 = vunpack.c.l.s4 1983009808
    %v843 = vunpack.c.0.s8 %v842
    %v844 = vlaneseq
    %v845 = vshrl.u32 %v844, 7
    %v846 = vsub.s32 %v843, %v845
    %v847 = vrot.slane %v840, %v846
    %v848 = vcombine.low %v839, %v847
    %v850 = vunpack.c.l.s4 1934713408
    %v851 = vunpack.c.0.s8 %v850
    %v852 = vlaneseq
    %v853 = vshrl.u32 %v852, 7
    %v854 = vsub.s32 %v851, %v853
    %v855 = vrot.slane %v848, %v854
    %v856 = vcombine.high %v855, 0
    %v859 = vpack.i.b16 %v805, %v780
    %v860 = vshrl.u32 %v780, 16
    %v861 = vshrl.u32 %v805, 16
    %v862 = vpack.i.b16 %v861, %v860
    %v865 = vpack.i.b16 %v806, %v781
    %v866 = vshrl.u32 %v781, 16
    %v867 = vshrl.u32 %v806, 16
    %v868 = vpack.i.b16 %v867, %v866
    %v871 = vpack.i.b16 %v855, %v830
    %v872 = vshrl.u32 %v830, 16
    %v873 = vshrl.u32 %v855, 16
    %v874 = vpack.i.b16 %v873, %v872
    %v877 = vpack.i.b16 %v856, %v831
    %v878 = vshrl.u32 %v831, 16
    %v879 = vshrl.u32 %v856, 16
    %v880 = vpack.i.b16 %v879, %v878
    %v881 = vpack.c.bf16 %v312, %v309
    %883 = vrot.lane.b32.xlu0 %v881, 120
    %v884 = vpop.permute.xlu0 %883
    %885 = vrot.lane.b32.xlu0 %v881, 112
    %v886 = vpop.permute.xlu0 %885
    %887 = vrot.lane.b32.xlu0 %v881, 104
    %v888 = vpop.permute.xlu0 %887
    %v891 = vpack.i.b16 %v884, %v881
    %v893 = vshrl.u32 %v881, 16
    %v894 = vshrl.u32 %v884, 16
    %v895 = vpack.i.b16 %v894, %v893
    %v899 = vpack.i.b16 %v888, %v886
    %v901 = vshrl.u32 %v886, 16
    %v902 = vshrl.u32 %v888, 16
    %v903 = vpack.i.b16 %v902, %v901
    %v905 = vcombine.high %v891, %v340
    %v907 = vunpack.c.l.s4 1983009808
    %v908 = vunpack.c.0.s8 %v907
    %v909 = vlaneseq
    %v910 = vshrl.u32 %v909, 7
    %v911 = vsub.s32 %v908, %v910
    %v912 = vrot.slane %v891, %v911
    %v914 = vunpack.c.l.s4 1983009808
    %v915 = vunpack.c.0.s8 %v914
    %v916 = vlaneseq
    %v917 = vshrl.u32 %v916, 7
    %v918 = vsub.s32 %v915, %v917
    %v919 = vrot.slane %v905, %v918
    %v920 = vcombine.high %v899, %v340
    %v922 = vunpack.c.l.s4 1983009808
    %v923 = vunpack.c.0.s8 %v922
    %v924 = vlaneseq
    %v925 = vshrl.u32 %v924, 7
    %v926 = vsub.s32 %v923, %v925
    %v927 = vrot.slane %v899, %v926
    %v929 = vunpack.c.l.s4 1983009808
    %v930 = vunpack.c.0.s8 %v929
    %v931 = vlaneseq
    %v932 = vshrl.u32 %v931, 7
    %v933 = vsub.s32 %v930, %v932
    %v934 = vrot.slane %v920, %v933
    %v935 = vcombine.low %v912, %v927
    %v936 = vcombine.high %v912, %v927
    %v938 = vunpack.c.l.s4 1934713408
    %v939 = vunpack.c.0.s8 %v938
    %v940 = vlaneseq
    %v941 = vshrl.u32 %v940, 7
    %v942 = vsub.s32 %v939, %v941
    %v943 = vrot.slane %v935, %v942
    %v945 = vunpack.c.l.s4 1934713408
    %v946 = vunpack.c.0.s8 %v945
    %v947 = vlaneseq
    %v948 = vshrl.u32 %v947, 7
    %v949 = vsub.s32 %v946, %v948
    %v950 = vrot.slane %v936, %v949
    %v951 = vcombine.low %v919, %v934
    %v952 = vcombine.high %v919, %v934
    %v954 = vunpack.c.l.s4 1934713408
    %v955 = vunpack.c.0.s8 %v954
    %v956 = vlaneseq
    %v957 = vshrl.u32 %v956, 7
    %v958 = vsub.s32 %v955, %v957
    %v959 = vrot.slane %v951, %v958
    %v961 = vunpack.c.l.s4 1934713408
    %v962 = vunpack.c.0.s8 %v961
    %v963 = vlaneseq
    %v964 = vshrl.u32 %v963, 7
    %v965 = vsub.s32 %v962, %v964
    %v966 = vrot.slane %v952, %v965
    %v967 = vcombine.high %v943, 0
    %v968 = vcombine.high %v950, 0
    %v969 = vcombine.high %v959, 0
    %v970 = vcombine.high %v966, 0
    %v971 = vcombine.high %v895, %v343
    %v973 = vunpack.c.l.s4 1983009808
    %v974 = vunpack.c.0.s8 %v973
    %v975 = vlaneseq
    %v976 = vshrl.u32 %v975, 7
    %v977 = vsub.s32 %v974, %v976
    %v978 = vrot.slane %v895, %v977
    %v980 = vunpack.c.l.s4 1983009808
    %v981 = vunpack.c.0.s8 %v980
    %v982 = vlaneseq
    %v983 = vshrl.u32 %v982, 7
    %v984 = vsub.s32 %v981, %v983
    %v985 = vrot.slane %v971, %v984
    %v986 = vcombine.high %v903, %v343
    %v988 = vunpack.c.l.s4 1983009808
    %v989 = vunpack.c.0.s8 %v988
    %v990 = vlaneseq
    %v991 = vshrl.u32 %v990, 7
    %v992 = vsub.s32 %v989, %v991
    %v993 = vrot.slane %v903, %v992
    %v995 = vunpack.c.l.s4 1983009808
    %v996 = vunpack.c.0.s8 %v995
    %v997 = vlaneseq
    %v998 = vshrl.u32 %v997, 7
    %v999 = vsub.s32 %v996, %v998
    %v1000 = vrot.slane %v986, %v999
    %v1001 = vcombine.low %v978, %v993
    %v1002 = vcombine.high %v978, %v993
    %v1004 = vunpack.c.l.s4 1934713408
    %v1005 = vunpack.c.0.s8 %v1004
    %v1006 = vlaneseq
    %v1007 = vshrl.u32 %v1006, 7
    %v1008 = vsub.s32 %v1005, %v1007
    %v1009 = vrot.slane %v1001, %v1008
    %v1011 = vunpack.c.l.s4 1934713408
    %v1012 = vunpack.c.0.s8 %v1011
    %v1013 = vlaneseq
    %v1014 = vshrl.u32 %v1013, 7
    %v1015 = vsub.s32 %v1012, %v1014
    %v1016 = vrot.slane %v1002, %v1015
    %v1017 = vcombine.low %v985, %v1000
    %v1018 = vcombine.high %v985, %v1000
    %v1020 = vunpack.c.l.s4 1934713408
    %v1021 = vunpack.c.0.s8 %v1020
    %v1022 = vlaneseq
    %v1023 = vshrl.u32 %v1022, 7
    %v1024 = vsub.s32 %v1021, %v1023
    %v1025 = vrot.slane %v1017, %v1024
    %v1027 = vunpack.c.l.s4 1934713408
    %v1028 = vunpack.c.0.s8 %v1027
    %v1029 = vlaneseq
    %v1030 = vshrl.u32 %v1029, 7
    %v1031 = vsub.s32 %v1028, %v1030
    %v1032 = vrot.slane %v1018, %v1031
    %v1033 = vcombine.high %v1009, 0
    %v1034 = vcombine.high %v1016, 0
    %v1035 = vcombine.high %v1025, 0
    %v1036 = vcombine.high %v1032, 0
    %v1037 = vcombine.low %v943, %v950
    %v1039 = vunpack.c.l.s4 1983009808
    %v1040 = vunpack.c.0.s8 %v1039
    %v1041 = vlaneseq
    %v1042 = vshrl.u32 %v1041, 7
    %v1043 = vsub.s32 %v1040, %v1042
    %v1044 = vrot.slane %v1037, %v1043
    %v1045 = vcombine.low %v967, %v968
    %v1047 = vunpack.c.l.s4 1983009808
    %v1048 = vunpack.c.0.s8 %v1047
    %v1049 = vlaneseq
    %v1050 = vshrl.u32 %v1049, 7
    %v1051 = vsub.s32 %v1048, %v1050
    %v1052 = vrot.slane %v1045, %v1051
    %v1053 = vcombine.low %v1044, %v1052
    %v1055 = vunpack.c.l.s4 1934713408
    %v1056 = vunpack.c.0.s8 %v1055
    %v1057 = vlaneseq
    %v1058 = vshrl.u32 %v1057, 7
    %v1059 = vsub.s32 %v1056, %v1058
    %v1060 = vrot.slane %v1053, %v1059
    %v1061 = vcombine.high %v1060, 0
    %v1062 = vcombine.low %v1009, %v1016
    %v1064 = vunpack.c.l.s4 1983009808
    %v1065 = vunpack.c.0.s8 %v1064
    %v1066 = vlaneseq
    %v1067 = vshrl.u32 %v1066, 7
    %v1068 = vsub.s32 %v1065, %v1067
    %v1069 = vrot.slane %v1062, %v1068
    %v1070 = vcombine.low %v1033, %v1034
    %v1072 = vunpack.c.l.s4 1983009808
    %v1073 = vunpack.c.0.s8 %v1072
    %v1074 = vlaneseq
    %v1075 = vshrl.u32 %v1074, 7
    %v1076 = vsub.s32 %v1073, %v1075
    %v1077 = vrot.slane %v1070, %v1076
    %v1078 = vcombine.low %v1069, %v1077
    %v1080 = vunpack.c.l.s4 1934713408
    %v1081 = vunpack.c.0.s8 %v1080
    %v1082 = vlaneseq
    %v1083 = vshrl.u32 %v1082, 7
    %v1084 = vsub.s32 %v1081, %v1083
    %v1085 = vrot.slane %v1078, %v1084
    %v1086 = vcombine.high %v1085, 0
    %v1087 = vcombine.low %v959, %v966
    %v1089 = vunpack.c.l.s4 1983009808
    %v1090 = vunpack.c.0.s8 %v1089
    %v1091 = vlaneseq
    %v1092 = vshrl.u32 %v1091, 7
    %v1093 = vsub.s32 %v1090, %v1092
    %v1094 = vrot.slane %v1087, %v1093
    %v1095 = vcombine.low %v969, %v970
    %v1097 = vunpack.c.l.s4 1983009808
    %v1098 = vunpack.c.0.s8 %v1097
    %v1099 = vlaneseq
    %v1100 = vshrl.u32 %v1099, 7
    %v1101 = vsub.s32 %v1098, %v1100
    %v1102 = vrot.slane %v1095, %v1101
    %v1103 = vcombine.low %v1094, %v1102
    %v1105 = vunpack.c.l.s4 1934713408
    %v1106 = vunpack.c.0.s8 %v1105
    %v1107 = vlaneseq
    %v1108 = vshrl.u32 %v1107, 7
    %v1109 = vsub.s32 %v1106, %v1108
    %v1110 = vrot.slane %v1103, %v1109
    %v1111 = vcombine.high %v1110, 0
    %v1112 = vcombine.low %v1025, %v1032
    %v1114 = vunpack.c.l.s4 1983009808
    %v1115 = vunpack.c.0.s8 %v1114
    %v1116 = vlaneseq
    %v1117 = vshrl.u32 %v1116, 7
    %v1118 = vsub.s32 %v1115, %v1117
    %v1119 = vrot.slane %v1112, %v1118
    %v1120 = vcombine.low %v1035, %v1036
    %v1122 = vunpack.c.l.s4 1983009808
    %v1123 = vunpack.c.0.s8 %v1122
    %v1124 = vlaneseq
    %v1125 = vshrl.u32 %v1124, 7
    %v1126 = vsub.s32 %v1123, %v1125
    %v1127 = vrot.slane %v1120, %v1126
    %v1128 = vcombine.low %v1119, %v1127
    %v1130 = vunpack.c.l.s4 1934713408
    %v1131 = vunpack.c.0.s8 %v1130
    %v1132 = vlaneseq
    %v1133 = vshrl.u32 %v1132, 7
    %v1134 = vsub.s32 %v1131, %v1133
    %v1135 = vrot.slane %v1128, %v1134
    %v1136 = vcombine.high %v1135, 0
    %v1139 = vpack.i.b16 %v1085, %v1060
    %v1140 = vshrl.u32 %v1060, 16
    %v1141 = vshrl.u32 %v1085, 16
    %v1142 = vpack.i.b16 %v1141, %v1140
    %v1145 = vpack.i.b16 %v1086, %v1061
    %v1146 = vshrl.u32 %v1061, 16
    %v1147 = vshrl.u32 %v1086, 16
    %v1148 = vpack.i.b16 %v1147, %v1146
    %v1151 = vpack.i.b16 %v1135, %v1110
    %v1152 = vshrl.u32 %v1110, 16
    %v1153 = vshrl.u32 %v1135, 16
    %v1154 = vpack.i.b16 %v1153, %v1152
    %v1157 = vpack.i.b16 %v1136, %v1111
    %v1158 = vshrl.u32 %v1111, 16
    %v1159 = vshrl.u32 %v1136, 16
    %v1160 = vpack.i.b16 %v1159, %v1158
    %vm1161 = vcmask 64512
    %v1163 = vsel %vm1161, %v579, 0
    %v1166 = vsel %vm1161, %v859, 0
    %1168 = vmatprep.subr.bf16.mxu0 0
    %1169 = vmatpush1.bf16.xpose.msra.mxu0 0
    %1170 = vmatprep.subr.bf16.mxu0 0
    %1171 = vmatpush1.bf16.xpose.msra.mxu0 0
    %1172 = vmatprep.subr.bf16.mxu0 0
    %1173 = vmatpush1.bf16.xpose.msra.mxu0 0
    %1174 = vmatprep.subr.bf16.mxu0 0
    %1175 = vmatpush1.bf16.xpose.msra.mxu0 0
    %1176 = vmatprep.subr.bf16.mxu0 0
    %1177 = vmatpush1.bf16.xpose.msra.mxu0 0
    %1178 = vmatprep.subr.bf16.mxu0 0
    %1179 = vmatpush1.bf16.xpose.msra.mxu0 0
    %1180 = vmatprep.subr.bf16.mxu0 0
    %1181 = vmatpush1.bf16.xpose.msra.mxu0 0
    %1182 = vmatprep.subr.bf16.mxu0 0
    %1183 = vmatpush1.bf16.xpose.msra.mxu0 %v1166
    %1184 = vmatprep.subr.bf16.mxu0 0
    %1185 = vmatpush2.bf16.xpose.msra.mxu0 0
    %1186 = vmatprep.subr.bf16.mxu0 0
    %1187 = vmatpush2.bf16.xpose.msra.mxu0 0
    %1188 = vmatprep.subr.bf16.mxu0 0
    %1189 = vmatpush2.bf16.xpose.msra.mxu0 0
    %1190 = vmatprep.subr.bf16.mxu0 0
    %1191 = vmatpush2.bf16.xpose.msra.mxu0 0
    %1192 = vmatprep.subr.bf16.mxu0 0
    %1193 = vmatpush2.bf16.xpose.msra.mxu0 0
    %1194 = vmatprep.subr.bf16.mxu0 0
    %1195 = vmatpush2.bf16.xpose.msra.mxu0 0
    %1196 = vmatprep.subr.bf16.mxu0 0
    %1197 = vmatpush2.bf16.xpose.msra.mxu0 0
    %1198 = vmatprep.subr.bf16.mxu0 0
    %1199 = vmatpush2.bf16.xpose.msra.mxu0 0
    %1200 = vmatprep.mubr.bf16.mxu0 0
    %1201 = vmatmul.mubr.bf16.gmra.mxu0 %v1163
    %v1202 = vpop.f32.mrf.mxu0
    %v1203 = vadd.f32 0.0, %v1202
    %v1204 = vpop.f32.mrf.mxu0
    %v1205 = vpop.f32.mrf.mxu0
    %v1206 = vpop.f32.mrf.mxu0
    %1207 = vdwg.mxu0
    %v1209 = vsel %vm1161, %v582, 0
    %v1212 = vsel %vm1161, %v862, 0
    %1214 = vmatprep.subr.bf16.mxu0 0
    %1215 = vmatpush1.bf16.xpose.msra.mxu0 0
    %1216 = vmatprep.subr.bf16.mxu0 0
    %1217 = vmatpush1.bf16.xpose.msra.mxu0 0
    %1218 = vmatprep.subr.bf16.mxu0 0
    %1219 = vmatpush1.bf16.xpose.msra.mxu0 0
    %1220 = vmatprep.subr.bf16.mxu0 0
    %1221 = vmatpush1.bf16.xpose.msra.mxu0 0
    %1222 = vmatprep.subr.bf16.mxu0 0
    %1223 = vmatpush1.bf16.xpose.msra.mxu0 0
    %1224 = vmatprep.subr.bf16.mxu0 0
    %1225 = vmatpush1.bf16.xpose.msra.mxu0 0
    %1226 = vmatprep.subr.bf16.mxu0 0
    %1227 = vmatpush1.bf16.xpose.msra.mxu0 0
    %1228 = vmatprep.subr.bf16.mxu0 0
    %1229 = vmatpush1.bf16.xpose.msra.mxu0 %v1212
    %1230 = vmatprep.subr.bf16.mxu0 0
    %1231 = vmatpush2.bf16.xpose.msra.mxu0 0
    %1232 = vmatprep.subr.bf16.mxu0 0
    %1233 = vmatpush2.bf16.xpose.msra.mxu0 0
    %1234 = vmatprep.subr.bf16.mxu0 0
    %1235 = vmatpush2.bf16.xpose.msra.mxu0 0
    %1236 = vmatprep.subr.bf16.mxu0 0
    %1237 = vmatpush2.bf16.xpose.msra.mxu0 0
    %1238 = vmatprep.subr.bf16.mxu0 0
    %1239 = vmatpush2.bf16.xpose.msra.mxu0 0
    %1240 = vmatprep.subr.bf16.mxu0 0
    %1241 = vmatpush2.bf16.xpose.msra.mxu0 0
    %1242 = vmatprep.subr.bf16.mxu0 0
    %1243 = vmatpush2.bf16.xpose.msra.mxu0 0
    %1244 = vmatprep.subr.bf16.mxu0 0
    %1245 = vmatpush2.bf16.xpose.msra.mxu0 0
    %1246 = vmatprep.mubr.bf16.mxu0 0
    %1247 = vmatmul.mubr.bf16.gmra.mxu0 %v1209
    %v1248 = vpop.f32.mrf.mxu0
    %v1249 = vadd.f32 0.0, %v1248
    %v1250 = vpop.f32.mrf.mxu0
    %v1251 = vpop.f32.mrf.mxu0
    %v1252 = vpop.f32.mrf.mxu0
    %1253 = vdwg.mxu0
    %v1255 = vsel %vm1161, %v585, 0
    %v1258 = vsel %vm1161, %v865, 0
    %1260 = vmatprep.subr.bf16.mxu0 0
    %1261 = vmatpush1.bf16.xpose.msra.mxu0 0
    %1262 = vmatprep.subr.bf16.mxu0 0
    %1263 = vmatpush1.bf16.xpose.msra.mxu0 0
    %1264 = vmatprep.subr.bf16.mxu0 0
    %1265 = vmatpush1.bf16.xpose.msra.mxu0 0
    %1266 = vmatprep.subr.bf16.mxu0 0
    %1267 = vmatpush1.bf16.xpose.msra.mxu0 0
    %1268 = vmatprep.subr.bf16.mxu0 0
    %1269 = vmatpush1.bf16.xpose.msra.mxu0 0
    %1270 = vmatprep.subr.bf16.mxu0 0
    %1271 = vmatpush1.bf16.xpose.msra.mxu0 0
    %1272 = vmatprep.subr.bf16.mxu0 0
    %1273 = vmatpush1.bf16.xpose.msra.mxu0 0
    %1274 = vmatprep.subr.bf16.mxu0 0
    %1275 = vmatpush1.bf16.xpose.msra.mxu0 %v1258
    %1276 = vmatprep.subr.bf16.mxu0 0
    %1277 = vmatpush2.bf16.xpose.msra.mxu0 0
    %1278 = vmatprep.subr.bf16.mxu0 0
    %1279 = vmatpush2.bf16.xpose.msra.mxu0 0
    %1280 = vmatprep.subr.bf16.mxu0 0
    %1281 = vmatpush2.bf16.xpose.msra.mxu0 0
    %1282 = vmatprep.subr.bf16.mxu0 0
    %1283 = vmatpush2.bf16.xpose.msra.mxu0 0
    %1284 = vmatprep.subr.bf16.mxu0 0
    %1285 = vmatpush2.bf16.xpose.msra.mxu0 0
    %1286 = vmatprep.subr.bf16.mxu0 0
    %1287 = vmatpush2.bf16.xpose.msra.mxu0 0
    %1288 = vmatprep.subr.bf16.mxu0 0
    %1289 = vmatpush2.bf16.xpose.msra.mxu0 0
    %1290 = vmatprep.subr.bf16.mxu0 0
    %1291 = vmatpush2.bf16.xpose.msra.mxu0 0
    %1292 = vmatprep.mubr.bf16.mxu0 0
    %1293 = vmatmul.mubr.bf16.gmra.mxu0 %v1255
    %v1294 = vpop.f32.mrf.mxu0
    %v1295 = vadd.f32 0.0, %v1294
    %v1296 = vpop.f32.mrf.mxu0
    %v1297 = vpop.f32.mrf.mxu0
    %v1298 = vpop.f32.mrf.mxu0
    %1299 = vdwg.mxu0
    %v1301 = vsel %vm1161, %v588, 0
    %v1304 = vsel %vm1161, %v868, 0
    %1306 = vmatprep.subr.bf16.mxu0 0
    %1307 = vmatpush1.bf16.xpose.msra.mxu0 0
    %1308 = vmatprep.subr.bf16.mxu0 0
    %1309 = vmatpush1.bf16.xpose.msra.mxu0 0
    %1310 = vmatprep.subr.bf16.mxu0 0
    %1311 = vmatpush1.bf16.xpose.msra.mxu0 0
    %1312 = vmatprep.subr.bf16.mxu0 0
    %1313 = vmatpush1.bf16.xpose.msra.mxu0 0
    %1314 = vmatprep.subr.bf16.mxu0 0
    %1315 = vmatpush1.bf16.xpose.msra.mxu0 0
    %1316 = vmatprep.subr.bf16.mxu0 0
    %1317 = vmatpush1.bf16.xpose.msra.mxu0 0
    %1318 = vmatprep.subr.bf16.mxu0 0
    %1319 = vmatpush1.bf16.xpose.msra.mxu0 0
    %1320 = vmatprep.subr.bf16.mxu0 0
    %1321 = vmatpush1.bf16.xpose.msra.mxu0 %v1304
    %1322 = vmatprep.subr.bf16.mxu0 0
    %1323 = vmatpush2.bf16.xpose.msra.mxu0 0
    %1324 = vmatprep.subr.bf16.mxu0 0
    %1325 = vmatpush2.bf16.xpose.msra.mxu0 0
    %1326 = vmatprep.subr.bf16.mxu0 0
    %1327 = vmatpush2.bf16.xpose.msra.mxu0 0
    %1328 = vmatprep.subr.bf16.mxu0 0
    %1329 = vmatpush2.bf16.xpose.msra.mxu0 0
    %1330 = vmatprep.subr.bf16.mxu0 0
    %1331 = vmatpush2.bf16.xpose.msra.mxu0 0
    %1332 = vmatprep.subr.bf16.mxu0 0
    %1333 = vmatpush2.bf16.xpose.msra.mxu0 0
    %1334 = vmatprep.subr.bf16.mxu0 0
    %1335 = vmatpush2.bf16.xpose.msra.mxu0 0
    %1336 = vmatprep.subr.bf16.mxu0 0
    %1337 = vmatpush2.bf16.xpose.msra.mxu0 0
    %1338 = vmatprep.mubr.bf16.mxu0 0
    %1339 = vmatmul.mubr.bf16.gmra.mxu0 %v1301
    %v1340 = vpop.f32.mrf.mxu0
    %v1341 = vadd.f32 0.0, %v1340
    %v1342 = vpop.f32.mrf.mxu0
    %v1343 = vpop.f32.mrf.mxu0
    %v1344 = vpop.f32.mrf.mxu0
    %1345 = vdwg.mxu0
    %v1347 = vsel %vm1161, %v591, 0
    %v1350 = vsel %vm1161, %v871, 0
    %1352 = vmatprep.subr.bf16.mxu0 0
    %1353 = vmatpush1.bf16.xpose.msra.mxu0 0
    %1354 = vmatprep.subr.bf16.mxu0 0
    %1355 = vmatpush1.bf16.xpose.msra.mxu0 0
    %1356 = vmatprep.subr.bf16.mxu0 0
    %1357 = vmatpush1.bf16.xpose.msra.mxu0 0
    %1358 = vmatprep.subr.bf16.mxu0 0
    %1359 = vmatpush1.bf16.xpose.msra.mxu0 0
    %1360 = vmatprep.subr.bf16.mxu0 0
    %1361 = vmatpush1.bf16.xpose.msra.mxu0 0
    %1362 = vmatprep.subr.bf16.mxu0 0
    %1363 = vmatpush1.bf16.xpose.msra.mxu0 0
    %1364 = vmatprep.subr.bf16.mxu0 0
    %1365 = vmatpush1.bf16.xpose.msra.mxu0 0
    %1366 = vmatprep.subr.bf16.mxu0 0
    %1367 = vmatpush1.bf16.xpose.msra.mxu0 %v1350
    %1368 = vmatprep.subr.bf16.mxu0 0
    %1369 = vmatpush2.bf16.xpose.msra.mxu0 0
    %1370 = vmatprep.subr.bf16.mxu0 0
    %1371 = vmatpush2.bf16.xpose.msra.mxu0 0
    %1372 = vmatprep.subr.bf16.mxu0 0
    %1373 = vmatpush2.bf16.xpose.msra.mxu0 0
    %1374 = vmatprep.subr.bf16.mxu0 0
    %1375 = vmatpush2.bf16.xpose.msra.mxu0 0
    %1376 = vmatprep.subr.bf16.mxu0 0
    %1377 = vmatpush2.bf16.xpose.msra.mxu0 0
    %1378 = vmatprep.subr.bf16.mxu0 0
    %1379 = vmatpush2.bf16.xpose.msra.mxu0 0
    %1380 = vmatprep.subr.bf16.mxu0 0
    %1381 = vmatpush2.bf16.xpose.msra.mxu0 0
    %1382 = vmatprep.subr.bf16.mxu0 0
    %1383 = vmatpush2.bf16.xpose.msra.mxu0 0
    %1384 = vmatprep.mubr.bf16.mxu0 0
    %1385 = vmatmul.mubr.bf16.gmra.mxu0 %v1347
    %v1386 = vpop.f32.mrf.mxu0
    %v1387 = vadd.f32 0.0, %v1386
    %v1388 = vpop.f32.mrf.mxu0
    %v1389 = vpop.f32.mrf.mxu0
    %v1390 = vpop.f32.mrf.mxu0
    %1391 = vdwg.mxu0
    %v1393 = vsel %vm1161, %v594, 0
    %v1396 = vsel %vm1161, %v874, 0
    %1398 = vmatprep.subr.bf16.mxu0 0
    %1399 = vmatpush1.bf16.xpose.msra.mxu0 0
    %1400 = vmatprep.subr.bf16.mxu0 0
    %1401 = vmatpush1.bf16.xpose.msra.mxu0 0
    %1402 = vmatprep.subr.bf16.mxu0 0
    %1403 = vmatpush1.bf16.xpose.msra.mxu0 0
    %1404 = vmatprep.subr.bf16.mxu0 0
    %1405 = vmatpush1.bf16.xpose.msra.mxu0 0
    %1406 = vmatprep.subr.bf16.mxu0 0
    %1407 = vmatpush1.bf16.xpose.msra.mxu0 0
    %1408 = vmatprep.subr.bf16.mxu0 0
    %1409 = vmatpush1.bf16.xpose.msra.mxu0 0
    %1410 = vmatprep.subr.bf16.mxu0 0
    %1411 = vmatpush1.bf16.xpose.msra.mxu0 0
    %1412 = vmatprep.subr.bf16.mxu0 0
    %1413 = vmatpush1.bf16.xpose.msra.mxu0 %v1396
    %1414 = vmatprep.subr.bf16.mxu0 0
    %1415 = vmatpush2.bf16.xpose.msra.mxu0 0
    %1416 = vmatprep.subr.bf16.mxu0 0
    %1417 = vmatpush2.bf16.xpose.msra.mxu0 0
    %1418 = vmatprep.subr.bf16.mxu0 0
    %1419 = vmatpush2.bf16.xpose.msra.mxu0 0
    %1420 = vmatprep.subr.bf16.mxu0 0
    %1421 = vmatpush2.bf16.xpose.msra.mxu0 0
    %1422 = vmatprep.subr.bf16.mxu0 0
    %1423 = vmatpush2.bf16.xpose.msra.mxu0 0
    %1424 = vmatprep.subr.bf16.mxu0 0
    %1425 = vmatpush2.bf16.xpose.msra.mxu0 0
    %1426 = vmatprep.subr.bf16.mxu0 0
    %1427 = vmatpush2.bf16.xpose.msra.mxu0 0
    %1428 = vmatprep.subr.bf16.mxu0 0
    %1429 = vmatpush2.bf16.xpose.msra.mxu0 0
    %1430 = vmatprep.mubr.bf16.mxu0 0
    %1431 = vmatmul.mubr.bf16.gmra.mxu0 %v1393
    %v1432 = vpop.f32.mrf.mxu0
    %v1433 = vadd.f32 0.0, %v1432
    %v1434 = vpop.f32.mrf.mxu0
    %v1435 = vpop.f32.mrf.mxu0
    %v1436 = vpop.f32.mrf.mxu0
    %1437 = vdwg.mxu0
    %v1439 = vsel %vm1161, %v597, 0
    %v1442 = vsel %vm1161, %v877, 0
    %1444 = vmatprep.subr.bf16.mxu0 0
    %1445 = vmatpush1.bf16.xpose.msra.mxu0 0
    %1446 = vmatprep.subr.bf16.mxu0 0
    %1447 = vmatpush1.bf16.xpose.msra.mxu0 0
    %1448 = vmatprep.subr.bf16.mxu0 0
    %1449 = vmatpush1.bf16.xpose.msra.mxu0 0
    %1450 = vmatprep.subr.bf16.mxu0 0
    %1451 = vmatpush1.bf16.xpose.msra.mxu0 0
    %1452 = vmatprep.subr.bf16.mxu0 0
    %1453 = vmatpush1.bf16.xpose.msra.mxu0 0
    %1454 = vmatprep.subr.bf16.mxu0 0
    %1455 = vmatpush1.bf16.xpose.msra.mxu0 0
    %1456 = vmatprep.subr.bf16.mxu0 0
    %1457 = vmatpush1.bf16.xpose.msra.mxu0 0
    %1458 = vmatprep.subr.bf16.mxu0 0
    %1459 = vmatpush1.bf16.xpose.msra.mxu0 %v1442
    %1460 = vmatprep.subr.bf16.mxu0 0
    %1461 = vmatpush2.bf16.xpose.msra.mxu0 0
    %1462 = vmatprep.subr.bf16.mxu0 0
    %1463 = vmatpush2.bf16.xpose.msra.mxu0 0
    %1464 = vmatprep.subr.bf16.mxu0 0
    %1465 = vmatpush2.bf16.xpose.msra.mxu0 0
    %1466 = vmatprep.subr.bf16.mxu0 0
    %1467 = vmatpush2.bf16.xpose.msra.mxu0 0
    %1468 = vmatprep.subr.bf16.mxu0 0
    %1469 = vmatpush2.bf16.xpose.msra.mxu0 0
    %1470 = vmatprep.subr.bf16.mxu0 0
    %1471 = vmatpush2.bf16.xpose.msra.mxu0 0
    %1472 = vmatprep.subr.bf16.mxu0 0
    %1473 = vmatpush2.bf16.xpose.msra.mxu0 0
    %1474 = vmatprep.subr.bf16.mxu0 0
    %1475 = vmatpush2.bf16.xpose.msra.mxu0 0
    %1476 = vmatprep.mubr.bf16.mxu0 0
    %1477 = vmatmul.mubr.bf16.gmra.mxu0 %v1439
    %v1478 = vpop.f32.mrf.mxu0
    %v1479 = vadd.f32 0.0, %v1478
    %v1480 = vpop.f32.mrf.mxu0
    %v1481 = vpop.f32.mrf.mxu0
    %v1482 = vpop.f32.mrf.mxu0
    %1483 = vdwg.mxu0
    %v1485 = vsel %vm1161, %v600, 0
    %v1488 = vsel %vm1161, %v880, 0
    %1490 = vmatprep.subr.bf16.mxu0 0
    %1491 = vmatpush1.bf16.xpose.msra.mxu0 0
    %1492 = vmatprep.subr.bf16.mxu0 0
    %1493 = vmatpush1.bf16.xpose.msra.mxu0 0
    %1494 = vmatprep.subr.bf16.mxu0 0
    %1495 = vmatpush1.bf16.xpose.msra.mxu0 0
    %1496 = vmatprep.subr.bf16.mxu0 0
    %1497 = vmatpush1.bf16.xpose.msra.mxu0 0
    %1498 = vmatprep.subr.bf16.mxu0 0
    %1499 = vmatpush1.bf16.xpose.msra.mxu0 0
    %1500 = vmatprep.subr.bf16.mxu0 0
    %1501 = vmatpush1.bf16.xpose.msra.mxu0 0
    %1502 = vmatprep.subr.bf16.mxu0 0
    %1503 = vmatpush1.bf16.xpose.msra.mxu0 0
    %1504 = vmatprep.subr.bf16.mxu0 0
    %1505 = vmatpush1.bf16.xpose.msra.mxu0 %v1488
    %1506 = vmatprep.subr.bf16.mxu0 0
    %1507 = vmatpush2.bf16.xpose.msra.mxu0 0
    %1508 = vmatprep.subr.bf16.mxu0 0
    %1509 = vmatpush2.bf16.xpose.msra.mxu0 0
    %1510 = vmatprep.subr.bf16.mxu0 0
    %1511 = vmatpush2.bf16.xpose.msra.mxu0 0
    %1512 = vmatprep.subr.bf16.mxu0 0
    %1513 = vmatpush2.bf16.xpose.msra.mxu0 0
    %1514 = vmatprep.subr.bf16.mxu0 0
    %1515 = vmatpush2.bf16.xpose.msra.mxu0 0
    %1516 = vmatprep.subr.bf16.mxu0 0
    %1517 = vmatpush2.bf16.xpose.msra.mxu0 0
    %1518 = vmatprep.subr.bf16.mxu0 0
    %1519 = vmatpush2.bf16.xpose.msra.mxu0 0
    %1520 = vmatprep.subr.bf16.mxu0 0
    %1521 = vmatpush2.bf16.xpose.msra.mxu0 0
    %1522 = vmatprep.mubr.bf16.mxu0 0
    %1523 = vmatmul.mubr.bf16.gmra.mxu0 %v1485
    %v1524 = vpop.f32.mrf.mxu0
    %v1525 = vadd.f32 0.0, %v1524
    %v1526 = vpop.f32.mrf.mxu0
    %v1527 = vpop.f32.mrf.mxu0
    %v1528 = vpop.f32.mrf.mxu0
    %1529 = vdwg.mxu0
    %v1530 = vsel %vm1161, %v1203, -inf
    %1531 = vmax.xlane.f32.xlu0 %v1530
    %v1532 = vpop.xlane.xlu0 %1531
    %v1533 = vsel %vm1161, %v1249, -inf
    %1534 = vmax.xlane.f32.xlu0 %v1533
    %v1535 = vpop.xlane.xlu0 %1534
    %v1536 = vsel %vm1161, %v1295, -inf
    %1537 = vmax.xlane.f32.xlu0 %v1536
    %v1538 = vpop.xlane.xlu0 %1537
    %v1539 = vsel %vm1161, %v1341, -inf
    %1540 = vmax.xlane.f32.xlu0 %v1539
    %v1541 = vpop.xlane.xlu0 %1540
    %v1542 = vsel %vm1161, %v1387, -inf
    %1543 = vmax.xlane.f32.xlu0 %v1542
    %v1544 = vpop.xlane.xlu0 %1543
    %v1545 = vsel %vm1161, %v1433, -inf
    %1546 = vmax.xlane.f32.xlu0 %v1545
    %v1547 = vpop.xlane.xlu0 %1546
    %v1548 = vsel %vm1161, %v1479, -inf
    %1549 = vmax.xlane.f32.xlu0 %v1548
    %v1550 = vpop.xlane.xlu0 %1549
    %v1551 = vsel %vm1161, %v1525, -inf
    %1552 = vmax.xlane.f32.xlu0 %v1551
    %v1553 = vpop.xlane.xlu0 %1552
    %v1554 = vsub.f32 %v1203, %v1532
    %v1555 = vsub.f32 %v1249, %v1535
    %v1556 = vsub.f32 %v1295, %v1538
    %v1557 = vsub.f32 %v1341, %v1541
    %v1558 = vsub.f32 %v1387, %v1544
    %v1559 = vsub.f32 %v1433, %v1547
    %v1560 = vsub.f32 %v1479, %v1550
    %v1561 = vsub.f32 %v1525, %v1553
    %v1562 = vmul.f32 %v1554, 1.442695
    %v1563 = vpow.pop %v1562
    %v1564 = vmul.f32 %v1555, 1.442695
    %v1565 = vpow.pop %v1564
    %v1566 = vmul.f32 %v1556, 1.442695
    %v1567 = vpow.pop %v1566
    %v1568 = vmul.f32 %v1557, 1.442695
    %v1569 = vpow.pop %v1568
    %v1570 = vmul.f32 %v1558, 1.442695
    %v1571 = vpow.pop %v1570
    %v1572 = vmul.f32 %v1559, 1.442695
    %v1573 = vpow.pop %v1572
    %v1574 = vmul.f32 %v1560, 1.442695
    %v1575 = vpow.pop %v1574
    %v1576 = vmul.f32 %v1561, 1.442695
    %v1577 = vpow.pop %v1576
    %v1578 = vsel %vm1161, %v1563, 0.0
    %1579 = vadd.xlane.f32.xlu0 %v1578
    %v1580 = vpop.xlane.xlu0 %1579
    %v1581 = vsel %vm1161, %v1565, 0.0
    %1582 = vadd.xlane.f32.xlu0 %v1581
    %v1583 = vpop.xlane.xlu0 %1582
    %v1584 = vsel %vm1161, %v1567, 0.0
    %1585 = vadd.xlane.f32.xlu0 %v1584
    %v1586 = vpop.xlane.xlu0 %1585
    %v1587 = vsel %vm1161, %v1569, 0.0
    %1588 = vadd.xlane.f32.xlu0 %v1587
    %v1589 = vpop.xlane.xlu0 %1588
    %v1590 = vsel %vm1161, %v1571, 0.0
    %1591 = vadd.xlane.f32.xlu0 %v1590
    %v1592 = vpop.xlane.xlu0 %1591
    %v1593 = vsel %vm1161, %v1573, 0.0
    %1594 = vadd.xlane.f32.xlu0 %v1593
    %v1595 = vpop.xlane.xlu0 %1594
    %v1596 = vsel %vm1161, %v1575, 0.0
    %1597 = vadd.xlane.f32.xlu0 %v1596
    %v1598 = vpop.xlane.xlu0 %1597
    %v1599 = vsel %vm1161, %v1577, 0.0
    %1600 = vadd.xlane.f32.xlu0 %v1599
    %v1601 = vpop.xlane.xlu0 %1600
    %v1602 = vpack.c.bf16 %v1563, %v1563
    %v1603 = vpack.c.bf16 %v1565, %v1565
    %v1604 = vpack.c.bf16 %v1567, %v1567
    %v1605 = vpack.c.bf16 %v1569, %v1569
    %v1606 = vpack.c.bf16 %v1571, %v1571
    %v1607 = vpack.c.bf16 %v1573, %v1573
    %v1608 = vpack.c.bf16 %v1575, %v1575
    %v1609 = vpack.c.bf16 %v1577, %v1577
    %v1611 = vsel %vm1161, %v1602, 0
    %vm1613 = vcmask 1043456
    %v1615 = vsel %vm1613, %v1139, 0
    %1617 = vmatprep.subr.bf16.mxu0 0
    %1618 = vmatpush1.bf16.msra.mxu0 0
    %1619 = vmatprep.subr.bf16.mxu0 0
    %1620 = vmatpush1.bf16.msra.mxu0 0
    %1621 = vmatprep.subr.bf16.mxu0 0
    %1622 = vmatpush1.bf16.msra.mxu0 0
    %1623 = vmatprep.subr.bf16.mxu0 0
    %1624 = vmatpush1.bf16.msra.mxu0 0
    %1625 = vmatprep.subr.bf16.mxu0 0
    %1626 = vmatpush1.bf16.msra.mxu0 0
    %1627 = vmatprep.subr.bf16.mxu0 0
    %1628 = vmatpush1.bf16.msra.mxu0 0
    %1629 = vmatprep.subr.bf16.mxu0 0
    %1630 = vmatpush1.bf16.msra.mxu0 0
    %1631 = vmatprep.subr.bf16.mxu0 0
    %1632 = vmatpush1.bf16.msra.mxu0 %v1615
    %1633 = vmatprep.subr.bf16.mxu0 0
    %1634 = vmatpush2.bf16.msra.mxu0 0
    %1635 = vmatprep.subr.bf16.mxu0 0
    %1636 = vmatpush2.bf16.msra.mxu0 0
    %1637 = vmatprep.subr.bf16.mxu0 0
    %1638 = vmatpush2.bf16.msra.mxu0 0
    %1639 = vmatprep.subr.bf16.mxu0 0
    %1640 = vmatpush2.bf16.msra.mxu0 0
    %1641 = vmatprep.subr.bf16.mxu0 0
    %1642 = vmatpush2.bf16.msra.mxu0 0
    %1643 = vmatprep.subr.bf16.mxu0 0
    %1644 = vmatpush2.bf16.msra.mxu0 0
    %1645 = vmatprep.subr.bf16.mxu0 0
    %1646 = vmatpush2.bf16.msra.mxu0 0
    %1647 = vmatprep.subr.bf16.mxu0 0
    %1648 = vmatpush2.bf16.msra.mxu0 0
    %1649 = vmatprep.mubr.bf16.mxu0 0
    %1650 = vmatmul.mubr.bf16.gmra.mxu0 %v1611
    %v1651 = vpop.f32.mrf.mxu0
    %v1652 = vadd.f32 0.0, %v1651
    %v1653 = vpop.f32.mrf.mxu0
    %v1654 = vpop.f32.mrf.mxu0
    %v1655 = vpop.f32.mrf.mxu0
    %1656 = vdwg.mxu0
    %v1658 = vsel %vm1161, %v1603, 0
    %v1661 = vsel %vm1613, %v1142, 0
    %1663 = vmatprep.subr.bf16.mxu0 0
    %1664 = vmatpush1.bf16.msra.mxu0 0
    %1665 = vmatprep.subr.bf16.mxu0 0
    %1666 = vmatpush1.bf16.msra.mxu0 0
    %1667 = vmatprep.subr.bf16.mxu0 0
    %1668 = vmatpush1.bf16.msra.mxu0 0
    %1669 = vmatprep.subr.bf16.mxu0 0
    %1670 = vmatpush1.bf16.msra.mxu0 0
    %1671 = vmatprep.subr.bf16.mxu0 0
    %1672 = vmatpush1.bf16.msra.mxu0 0
    %1673 = vmatprep.subr.bf16.mxu0 0
    %1674 = vmatpush1.bf16.msra.mxu0 0
    %1675 = vmatprep.subr.bf16.mxu0 0
    %1676 = vmatpush1.bf16.msra.mxu0 0
    %1677 = vmatprep.subr.bf16.mxu0 0
    %1678 = vmatpush1.bf16.msra.mxu0 %v1661
    %1679 = vmatprep.subr.bf16.mxu0 0
    %1680 = vmatpush2.bf16.msra.mxu0 0
    %1681 = vmatprep.subr.bf16.mxu0 0
    %1682 = vmatpush2.bf16.msra.mxu0 0
    %1683 = vmatprep.subr.bf16.mxu0 0
    %1684 = vmatpush2.bf16.msra.mxu0 0
    %1685 = vmatprep.subr.bf16.mxu0 0
    %1686 = vmatpush2.bf16.msra.mxu0 0
    %1687 = vmatprep.subr.bf16.mxu0 0
    %1688 = vmatpush2.bf16.msra.mxu0 0
    %1689 = vmatprep.subr.bf16.mxu0 0
    %1690 = vmatpush2.bf16.msra.mxu0 0
    %1691 = vmatprep.subr.bf16.mxu0 0
    %1692 = vmatpush2.bf16.msra.mxu0 0
    %1693 = vmatprep.subr.bf16.mxu0 0
    %1694 = vmatpush2.bf16.msra.mxu0 0
    %1695 = vmatprep.mubr.bf16.mxu0 0
    %1696 = vmatmul.mubr.bf16.gmra.mxu0 %v1658
    %v1697 = vpop.f32.mrf.mxu0
    %v1698 = vadd.f32 0.0, %v1697
    %v1699 = vpop.f32.mrf.mxu0
    %v1700 = vpop.f32.mrf.mxu0
    %v1701 = vpop.f32.mrf.mxu0
    %1702 = vdwg.mxu0
    %v1704 = vsel %vm1161, %v1604, 0
    %v1707 = vsel %vm1613, %v1145, 0
    %1709 = vmatprep.subr.bf16.mxu0 0
    %1710 = vmatpush1.bf16.msra.mxu0 0
    %1711 = vmatprep.subr.bf16.mxu0 0
    %1712 = vmatpush1.bf16.msra.mxu0 0
    %1713 = vmatprep.subr.bf16.mxu0 0
    %1714 = vmatpush1.bf16.msra.mxu0 0
    %1715 = vmatprep.subr.bf16.mxu0 0
    %1716 = vmatpush1.bf16.msra.mxu0 0
    %1717 = vmatprep.subr.bf16.mxu0 0
    %1718 = vmatpush1.bf16.msra.mxu0 0
    %1719 = vmatprep.subr.bf16.mxu0 0
    %1720 = vmatpush1.bf16.msra.mxu0 0
    %1721 = vmatprep.subr.bf16.mxu0 0
    %1722 = vmatpush1.bf16.msra.mxu0 0
    %1723 = vmatprep.subr.bf16.mxu0 0
    %1724 = vmatpush1.bf16.msra.mxu0 %v1707
    %1725 = vmatprep.subr.bf16.mxu0 0
    %1726 = vmatpush2.bf16.msra.mxu0 0
    %1727 = vmatprep.subr.bf16.mxu0 0
    %1728 = vmatpush2.bf16.msra.mxu0 0
    %1729 = vmatprep.subr.bf16.mxu0 0
    %1730 = vmatpush2.bf16.msra.mxu0 0
    %1731 = vmatprep.subr.bf16.mxu0 0
    %1732 = vmatpush2.bf16.msra.mxu0 0
    %1733 = vmatprep.subr.bf16.mxu0 0
    %1734 = vmatpush2.bf16.msra.mxu0 0
    %1735 = vmatprep.subr.bf16.mxu0 0
    %1736 = vmatpush2.bf16.msra.mxu0 0
    %1737 = vmatprep.subr.bf16.mxu0 0
    %1738 = vmatpush2.bf16.msra.mxu0 0
    %1739 = vmatprep.subr.bf16.mxu0 0
    %1740 = vmatpush2.bf16.msra.mxu0 0
    %1741 = vmatprep.mubr.bf16.mxu0 0
    %1742 = vmatmul.mubr.bf16.gmra.mxu0 %v1704
    %v1743 = vpop.f32.mrf.mxu0
    %v1744 = vadd.f32 0.0, %v1743
    %v1745 = vpop.f32.mrf.mxu0
    %v1746 = vpop.f32.mrf.mxu0
    %v1747 = vpop.f32.mrf.mxu0
    %1748 = vdwg.mxu0
    %v1750 = vsel %vm1161, %v1605, 0
    %v1753 = vsel %vm1613, %v1148, 0
    %1755 = vmatprep.subr.bf16.mxu0 0
    %1756 = vmatpush1.bf16.msra.mxu0 0
    %1757 = vmatprep.subr.bf16.mxu0 0
    %1758 = vmatpush1.bf16.msra.mxu0 0
    %1759 = vmatprep.subr.bf16.mxu0 0
    %1760 = vmatpush1.bf16.msra.mxu0 0
    %1761 = vmatprep.subr.bf16.mxu0 0
    %1762 = vmatpush1.bf16.msra.mxu0 0
    %1763 = vmatprep.subr.bf16.mxu0 0
    %1764 = vmatpush1.bf16.msra.mxu0 0
    %1765 = vmatprep.subr.bf16.mxu0 0
    %1766 = vmatpush1.bf16.msra.mxu0 0
    %1767 = vmatprep.subr.bf16.mxu0 0
    %1768 = vmatpush1.bf16.msra.mxu0 0
    %1769 = vmatprep.subr.bf16.mxu0 0
    %1770 = vmatpush1.bf16.msra.mxu0 %v1753
    %1771 = vmatprep.subr.bf16.mxu0 0
    %1772 = vmatpush2.bf16.msra.mxu0 0
    %1773 = vmatprep.subr.bf16.mxu0 0
    %1774 = vmatpush2.bf16.msra.mxu0 0
    %1775 = vmatprep.subr.bf16.mxu0 0
    %1776 = vmatpush2.bf16.msra.mxu0 0
    %1777 = vmatprep.subr.bf16.mxu0 0
    %1778 = vmatpush2.bf16.msra.mxu0 0
    %1779 = vmatprep.subr.bf16.mxu0 0
    %1780 = vmatpush2.bf16.msra.mxu0 0
    %1781 = vmatprep.subr.bf16.mxu0 0
    %1782 = vmatpush2.bf16.msra.mxu0 0
    %1783 = vmatprep.subr.bf16.mxu0 0
    %1784 = vmatpush2.bf16.msra.mxu0 0
    %1785 = vmatprep.subr.bf16.mxu0 0
    %1786 = vmatpush2.bf16.msra.mxu0 0
    %1787 = vmatprep.mubr.bf16.mxu0 0
    %1788 = vmatmul.mubr.bf16.gmra.mxu0 %v1750
    %v1789 = vpop.f32.mrf.mxu0
    %v1790 = vadd.f32 0.0, %v1789
    %v1791 = vpop.f32.mrf.mxu0
    %v1792 = vpop.f32.mrf.mxu0
    %v1793 = vpop.f32.mrf.mxu0
    %1794 = vdwg.mxu0
    %v1796 = vsel %vm1161, %v1606, 0
    %v1799 = vsel %vm1613, %v1151, 0
    %1801 = vmatprep.subr.bf16.mxu0 0
    %1802 = vmatpush1.bf16.msra.mxu0 0
    %1803 = vmatprep.subr.bf16.mxu0 0
    %1804 = vmatpush1.bf16.msra.mxu0 0
    %1805 = vmatprep.subr.bf16.mxu0 0
    %1806 = vmatpush1.bf16.msra.mxu0 0
    %1807 = vmatprep.subr.bf16.mxu0 0
    %1808 = vmatpush1.bf16.msra.mxu0 0
    %1809 = vmatprep.subr.bf16.mxu0 0
    %1810 = vmatpush1.bf16.msra.mxu0 0
    %1811 = vmatprep.subr.bf16.mxu0 0
    %1812 = vmatpush1.bf16.msra.mxu0 0
    %1813 = vmatprep.subr.bf16.mxu0 0
    %1814 = vmatpush1.bf16.msra.mxu0 0
    %1815 = vmatprep.subr.bf16.mxu0 0
    %1816 = vmatpush1.bf16.msra.mxu0 %v1799
    %1817 = vmatprep.subr.bf16.mxu0 0
    %1818 = vmatpush2.bf16.msra.mxu0 0
    %1819 = vmatprep.subr.bf16.mxu0 0
    %1820 = vmatpush2.bf16.msra.mxu0 0
    %1821 = vmatprep.subr.bf16.mxu0 0
    %1822 = vmatpush2.bf16.msra.mxu0 0
    %1823 = vmatprep.subr.bf16.mxu0 0
    %1824 = vmatpush2.bf16.msra.mxu0 0
    %1825 = vmatprep.subr.bf16.mxu0 0
    %1826 = vmatpush2.bf16.msra.mxu0 0
    %1827 = vmatprep.subr.bf16.mxu0 0
    %1828 = vmatpush2.bf16.msra.mxu0 0
    %1829 = vmatprep.subr.bf16.mxu0 0
    %1830 = vmatpush2.bf16.msra.mxu0 0
    %1831 = vmatprep.subr.bf16.mxu0 0
    %1832 = vmatpush2.bf16.msra.mxu0 0
    %1833 = vmatprep.mubr.bf16.mxu0 0
    %1834 = vmatmul.mubr.bf16.gmra.mxu0 %v1796
    %v1835 = vpop.f32.mrf.mxu0
    %v1836 = vadd.f32 0.0, %v1835
    %v1837 = vpop.f32.mrf.mxu0
    %v1838 = vpop.f32.mrf.mxu0
    %v1839 = vpop.f32.mrf.mxu0
    %1840 = vdwg.mxu0
    %v1842 = vsel %vm1161, %v1607, 0
    %v1845 = vsel %vm1613, %v1154, 0
    %1847 = vmatprep.subr.bf16.mxu0 0
    %1848 = vmatpush1.bf16.msra.mxu0 0
    %1849 = vmatprep.subr.bf16.mxu0 0
    %1850 = vmatpush1.bf16.msra.mxu0 0
    %1851 = vmatprep.subr.bf16.mxu0 0
    %1852 = vmatpush1.bf16.msra.mxu0 0
    %1853 = vmatprep.subr.bf16.mxu0 0
    %1854 = vmatpush1.bf16.msra.mxu0 0
    %1855 = vmatprep.subr.bf16.mxu0 0
    %1856 = vmatpush1.bf16.msra.mxu0 0
    %1857 = vmatprep.subr.bf16.mxu0 0
    %1858 = vmatpush1.bf16.msra.mxu0 0
    %1859 = vmatprep.subr.bf16.mxu0 0
    %1860 = vmatpush1.bf16.msra.mxu0 0
    %1861 = vmatprep.subr.bf16.mxu0 0
    %1862 = vmatpush1.bf16.msra.mxu0 %v1845
    %1863 = vmatprep.subr.bf16.mxu0 0
    %1864 = vmatpush2.bf16.msra.mxu0 0
    %1865 = vmatprep.subr.bf16.mxu0 0
    %1866 = vmatpush2.bf16.msra.mxu0 0
    %1867 = vmatprep.subr.bf16.mxu0 0
    %1868 = vmatpush2.bf16.msra.mxu0 0
    %1869 = vmatprep.subr.bf16.mxu0 0
    %1870 = vmatpush2.bf16.msra.mxu0 0
    %1871 = vmatprep.subr.bf16.mxu0 0
    %1872 = vmatpush2.bf16.msra.mxu0 0
    %1873 = vmatprep.subr.bf16.mxu0 0
    %1874 = vmatpush2.bf16.msra.mxu0 0
    %1875 = vmatprep.subr.bf16.mxu0 0
    %1876 = vmatpush2.bf16.msra.mxu0 0
    %1877 = vmatprep.subr.bf16.mxu0 0
    %1878 = vmatpush2.bf16.msra.mxu0 0
    %1879 = vmatprep.mubr.bf16.mxu0 0
    %1880 = vmatmul.mubr.bf16.gmra.mxu0 %v1842
    %v1881 = vpop.f32.mrf.mxu0
    %v1882 = vadd.f32 0.0, %v1881
    %v1883 = vpop.f32.mrf.mxu0
    %v1884 = vpop.f32.mrf.mxu0
    %v1885 = vpop.f32.mrf.mxu0
    %1886 = vdwg.mxu0
    %v1888 = vsel %vm1161, %v1608, 0
    %v1891 = vsel %vm1613, %v1157, 0
    %1893 = vmatprep.subr.bf16.mxu0 0
    %1894 = vmatpush1.bf16.msra.mxu0 0
    %1895 = vmatprep.subr.bf16.mxu0 0
    %1896 = vmatpush1.bf16.msra.mxu0 0
    %1897 = vmatprep.subr.bf16.mxu0 0
    %1898 = vmatpush1.bf16.msra.mxu0 0
    %1899 = vmatprep.subr.bf16.mxu0 0
    %1900 = vmatpush1.bf16.msra.mxu0 0
    %1901 = vmatprep.subr.bf16.mxu0 0
    %1902 = vmatpush1.bf16.msra.mxu0 0
    %1903 = vmatprep.subr.bf16.mxu0 0
    %1904 = vmatpush1.bf16.msra.mxu0 0
    %1905 = vmatprep.subr.bf16.mxu0 0
    %1906 = vmatpush1.bf16.msra.mxu0 0
    %1907 = vmatprep.subr.bf16.mxu0 0
    %1908 = vmatpush1.bf16.msra.mxu0 %v1891
    %1909 = vmatprep.subr.bf16.mxu0 0
    %1910 = vmatpush2.bf16.msra.mxu0 0
    %1911 = vmatprep.subr.bf16.mxu0 0
    %1912 = vmatpush2.bf16.msra.mxu0 0
    %1913 = vmatprep.subr.bf16.mxu0 0
    %1914 = vmatpush2.bf16.msra.mxu0 0
    %1915 = vmatprep.subr.bf16.mxu0 0
    %1916 = vmatpush2.bf16.msra.mxu0 0
    %1917 = vmatprep.subr.bf16.mxu0 0
    %1918 = vmatpush2.bf16.msra.mxu0 0
    %1919 = vmatprep.subr.bf16.mxu0 0
    %1920 = vmatpush2.bf16.msra.mxu0 0
    %1921 = vmatprep.subr.bf16.mxu0 0
    %1922 = vmatpush2.bf16.msra.mxu0 0
    %1923 = vmatprep.subr.bf16.mxu0 0
    %1924 = vmatpush2.bf16.msra.mxu0 0
    %1925 = vmatprep.mubr.bf16.mxu0 0
    %1926 = vmatmul.mubr.bf16.gmra.mxu0 %v1888
    %v1927 = vpop.f32.mrf.mxu0
    %v1928 = vadd.f32 0.0, %v1927
    %v1929 = vpop.f32.mrf.mxu0
    %v1930 = vpop.f32.mrf.mxu0
    %v1931 = vpop.f32.mrf.mxu0
    %1932 = vdwg.mxu0
    %v1934 = vsel %vm1161, %v1609, 0
    %v1937 = vsel %vm1613, %v1160, 0
    %1939 = vmatprep.subr.bf16.mxu0 0
    %1940 = vmatpush1.bf16.msra.mxu0 0
    %1941 = vmatprep.subr.bf16.mxu0 0
    %1942 = vmatpush1.bf16.msra.mxu0 0
    %1943 = vmatprep.subr.bf16.mxu0 0
    %1944 = vmatpush1.bf16.msra.mxu0 0
    %1945 = vmatprep.subr.bf16.mxu0 0
    %1946 = vmatpush1.bf16.msra.mxu0 0
    %1947 = vmatprep.subr.bf16.mxu0 0
    %1948 = vmatpush1.bf16.msra.mxu0 0
    %1949 = vmatprep.subr.bf16.mxu0 0
    %1950 = vmatpush1.bf16.msra.mxu0 0
    %1951 = vmatprep.subr.bf16.mxu0 0
    %1952 = vmatpush1.bf16.msra.mxu0 0
    %1953 = vmatprep.subr.bf16.mxu0 0
    %1954 = vmatpush1.bf16.msra.mxu0 %v1937
    %1955 = vmatprep.subr.bf16.mxu0 0
    %1956 = vmatpush2.bf16.msra.mxu0 0
    %1957 = vmatprep.subr.bf16.mxu0 0
    %1958 = vmatpush2.bf16.msra.mxu0 0
    %1959 = vmatprep.subr.bf16.mxu0 0
    %1960 = vmatpush2.bf16.msra.mxu0 0
    %1961 = vmatprep.subr.bf16.mxu0 0
    %1962 = vmatpush2.bf16.msra.mxu0 0
    %1963 = vmatprep.subr.bf16.mxu0 0
    %1964 = vmatpush2.bf16.msra.mxu0 0
    %1965 = vmatprep.subr.bf16.mxu0 0
    %1966 = vmatpush2.bf16.msra.mxu0 0
    %1967 = vmatprep.subr.bf16.mxu0 0
    %1968 = vmatpush2.bf16.msra.mxu0 0
    %1969 = vmatprep.subr.bf16.mxu0 0
    %1970 = vmatpush2.bf16.msra.mxu0 0
    %1971 = vmatprep.mubr.bf16.mxu0 0
    %1972 = vmatmul.mubr.bf16.gmra.mxu0 %v1934
    %v1973 = vpop.f32.mrf.mxu0
    %v1974 = vadd.f32 0.0, %v1973
    %v1975 = vpop.f32.mrf.mxu0
    %v1976 = vpop.f32.mrf.mxu0
    %v1977 = vpop.f32.mrf.mxu0
    %1978 = vdwg.mxu0
    %v1979 = vrcp.pop %v1580
    %v1980 = vrcp.pop %v1583
    %v1981 = vrcp.pop %v1586
    %v1982 = vrcp.pop %v1589
    %v1983 = vrcp.pop %v1592
    %v1984 = vrcp.pop %v1595
    %v1985 = vrcp.pop %v1598
    %v1986 = vrcp.pop %v1601
    %v1987 = vmul.f32 %v1652, %v1979
    %v1988 = vmul.f32 %v1698, %v1980
    %v1989 = vmul.f32 %v1744, %v1981
    %v1990 = vmul.f32 %v1790, %v1982
    %v1991 = vmul.f32 %v1836, %v1983
    %v1992 = vmul.f32 %v1882, %v1984
    %v1993 = vmul.f32 %v1928, %v1985
    %v1994 = vmul.f32 %v1974, %v1986
    %v1995 = vpack.c.bf16 %v1987, %v1987
    %v1997 = vunpack.c.l.s4 1983009808
    %v1998 = vunpack.c.0.s8 %v1997
    %v1999 = vlaneseq
    %v2000 = vshrl.u32 %v1999, 7
    %v2001 = vsub.s32 %v1998, %v2000
    %v2002 = vrot.slane %v1995, %v2001
    %v2003 = vpack.c.bf16 %v1989, %v1989
    %v2005 = vunpack.c.l.s4 1983009808
    %v2006 = vunpack.c.0.s8 %v2005
    %v2007 = vlaneseq
    %v2008 = vshrl.u32 %v2007, 7
    %v2009 = vsub.s32 %v2006, %v2008
    %v2010 = vrot.slane %v2003, %v2009
    %v2011 = vcombine.low %v2002, %v2010
    %v2012 = vcombine.high %v2002, %v2010
    %v2014 = vunpack.c.l.s4 1934713408
    %v2015 = vunpack.c.0.s8 %v2014
    %v2016 = vlaneseq
    %v2017 = vshrl.u32 %v2016, 7
    %v2018 = vsub.s32 %v2015, %v2017
    %v2019 = vrot.slane %v2011, %v2018
    %v2021 = vunpack.c.l.s4 1934713408
    %v2022 = vunpack.c.0.s8 %v2021
    %v2023 = vlaneseq
    %v2024 = vshrl.u32 %v2023, 7
    %v2025 = vsub.s32 %v2022, %v2024
    %v2026 = vrot.slane %v2012, %v2025
    %v2027 = vcombine.high %v2019, 0
    %v2028 = vcombine.high %v2026, 0
    %v2029 = vpack.c.bf16 %v1988, %v1988
    %v2031 = vunpack.c.l.s4 1983009808
    %v2032 = vunpack.c.0.s8 %v2031
    %v2033 = vlaneseq
    %v2034 = vshrl.u32 %v2033, 7
    %v2035 = vsub.s32 %v2032, %v2034
    %v2036 = vrot.slane %v2029, %v2035
    %v2037 = vpack.c.bf16 %v1990, %v1990
    %v2039 = vunpack.c.l.s4 1983009808
    %v2040 = vunpack.c.0.s8 %v2039
    %v2041 = vlaneseq
    %v2042 = vshrl.u32 %v2041, 7
    %v2043 = vsub.s32 %v2040, %v2042
    %v2044 = vrot.slane %v2037, %v2043
    %v2045 = vcombine.low %v2036, %v2044
    %v2046 = vcombine.high %v2036, %v2044
    %v2048 = vunpack.c.l.s4 1934713408
    %v2049 = vunpack.c.0.s8 %v2048
    %v2050 = vlaneseq
    %v2051 = vshrl.u32 %v2050, 7
    %v2052 = vsub.s32 %v2049, %v2051
    %v2053 = vrot.slane %v2045, %v2052
    %v2055 = vunpack.c.l.s4 1934713408
    %v2056 = vunpack.c.0.s8 %v2055
    %v2057 = vlaneseq
    %v2058 = vshrl.u32 %v2057, 7
    %v2059 = vsub.s32 %v2056, %v2058
    %v2060 = vrot.slane %v2046, %v2059
    %v2061 = vcombine.high %v2053, 0
    %v2062 = vcombine.high %v2060, 0
    %v2063 = vpack.c.bf16 %v1991, %v1991
    %v2065 = vunpack.c.l.s4 1983009808
    %v2066 = vunpack.c.0.s8 %v2065
    %v2067 = vlaneseq
    %v2068 = vshrl.u32 %v2067, 7
    %v2069 = vsub.s32 %v2066, %v2068
    %v2070 = vrot.slane %v2063, %v2069
    %v2071 = vpack.c.bf16 %v1993, %v1993
    %v2073 = vunpack.c.l.s4 1983009808
    %v2074 = vunpack.c.0.s8 %v2073
    %v2075 = vlaneseq
    %v2076 = vshrl.u32 %v2075, 7
    %v2077 = vsub.s32 %v2074, %v2076
    %v2078 = vrot.slane %v2071, %v2077
    %v2079 = vcombine.low %v2070, %v2078
    %v2080 = vcombine.high %v2070, %v2078
    %v2082 = vunpack.c.l.s4 1934713408
    %v2083 = vunpack.c.0.s8 %v2082
    %v2084 = vlaneseq
    %v2085 = vshrl.u32 %v2084, 7
    %v2086 = vsub.s32 %v2083, %v2085
    %v2087 = vrot.slane %v2079, %v2086
    %v2089 = vunpack.c.l.s4 1934713408
    %v2090 = vunpack.c.0.s8 %v2089
    %v2091 = vlaneseq
    %v2092 = vshrl.u32 %v2091, 7
    %v2093 = vsub.s32 %v2090, %v2092
    %v2094 = vrot.slane %v2080, %v2093
    %v2095 = vcombine.high %v2087, 0
    %v2096 = vcombine.high %v2094, 0
    %v2097 = vpack.c.bf16 %v1992, %v1992
    %v2099 = vunpack.c.l.s4 1983009808
    %v2100 = vunpack.c.0.s8 %v2099
    %v2101 = vlaneseq
    %v2102 = vshrl.u32 %v2101, 7
    %v2103 = vsub.s32 %v2100, %v2102
    %v2104 = vrot.slane %v2097, %v2103
    %v2105 = vpack.c.bf16 %v1994, %v1994
    %v2107 = vunpack.c.l.s4 1983009808
    %v2108 = vunpack.c.0.s8 %v2107
    %v2109 = vlaneseq
    %v2110 = vshrl.u32 %v2109, 7
    %v2111 = vsub.s32 %v2108, %v2110
    %v2112 = vrot.slane %v2105, %v2111
    %v2113 = vcombine.low %v2104, %v2112
    %v2114 = vcombine.high %v2104, %v2112
    %v2116 = vunpack.c.l.s4 1934713408
    %v2117 = vunpack.c.0.s8 %v2116
    %v2118 = vlaneseq
    %v2119 = vshrl.u32 %v2118, 7
    %v2120 = vsub.s32 %v2117, %v2119
    %v2121 = vrot.slane %v2113, %v2120
    %v2123 = vunpack.c.l.s4 1934713408
    %v2124 = vunpack.c.0.s8 %v2123
    %v2125 = vlaneseq
    %v2126 = vshrl.u32 %v2125, 7
    %v2127 = vsub.s32 %v2124, %v2126
    %v2128 = vrot.slane %v2114, %v2127
    %v2129 = vcombine.high %v2121, 0
    %v2130 = vcombine.high %v2128, 0
    %v2133 = vpack.i.b16 %v2053, %v2019
    %v2135 = vshrl.u32 %v2019, 16
    %v2136 = vshrl.u32 %v2053, 16
    %v2137 = vpack.i.b16 %v2136, %v2135
    %v2141 = vpack.i.b16 %v2061, %v2027
    %v2143 = vshrl.u32 %v2027, 16
    %v2144 = vshrl.u32 %v2061, 16
    %v2145 = vpack.i.b16 %v2144, %v2143
    %v2149 = vpack.i.b16 %v2060, %v2026
    %v2151 = vshrl.u32 %v2026, 16
    %v2152 = vshrl.u32 %v2060, 16
    %v2153 = vpack.i.b16 %v2152, %v2151
    %v2157 = vpack.i.b16 %v2062, %v2028
    %v2159 = vshrl.u32 %v2028, 16
    %v2160 = vshrl.u32 %v2062, 16
    %v2161 = vpack.i.b16 %v2160, %v2159
    %v2165 = vpack.i.b16 %v2121, %v2087
    %v2167 = vshrl.u32 %v2087, 16
    %v2168 = vshrl.u32 %v2121, 16
    %v2169 = vpack.i.b16 %v2168, %v2167
    %v2173 = vpack.i.b16 %v2129, %v2095
    %v2175 = vshrl.u32 %v2095, 16
    %v2176 = vshrl.u32 %v2129, 16
    %v2177 = vpack.i.b16 %v2176, %v2175
    %v2181 = vpack.i.b16 %v2128, %v2094
    %v2183 = vshrl.u32 %v2094, 16
    %v2184 = vshrl.u32 %v2128, 16
    %v2185 = vpack.i.b16 %v2184, %v2183
    %v2189 = vpack.i.b16 %v2130, %v2096
    %v2191 = vshrl.u32 %v2096, 16
    %v2192 = vshrl.u32 %v2130, 16
    %v2193 = vpack.i.b16 %v2192, %v2191
    %v2195 = vcombine.low %v2133, %v2149
    %v2197 = vunpack.c.l.s4 1983009808
    %v2198 = vunpack.c.0.s8 %v2197
    %v2199 = vlaneseq
    %v2200 = vshrl.u32 %v2199, 7
    %v2201 = vsub.s32 %v2198, %v2200
    %v2202 = vrot.slane %v2195, %v2201
    %v2203 = vcombine.low %v2141, %v2157
    %v2205 = vunpack.c.l.s4 1983009808
    %v2206 = vunpack.c.0.s8 %v2205
    %v2207 = vlaneseq
    %v2208 = vshrl.u32 %v2207, 7
    %v2209 = vsub.s32 %v2206, %v2208
    %v2210 = vrot.slane %v2203, %v2209
    %v2211 = vcombine.low %v2165, %v2181
    %v2213 = vunpack.c.l.s4 1983009808
    %v2214 = vunpack.c.0.s8 %v2213
    %v2215 = vlaneseq
    %v2216 = vshrl.u32 %v2215, 7
    %v2217 = vsub.s32 %v2214, %v2216
    %v2218 = vrot.slane %v2211, %v2217
    %v2219 = vcombine.low %v2173, %v2189
    %v2221 = vunpack.c.l.s4 1983009808
    %v2222 = vunpack.c.0.s8 %v2221
    %v2223 = vlaneseq
    %v2224 = vshrl.u32 %v2223, 7
    %v2225 = vsub.s32 %v2222, %v2224
    %v2226 = vrot.slane %v2219, %v2225
    %v2227 = vcombine.low %v2202, %v2210
    %v2229 = vunpack.c.l.s4 1934713408
    %v2230 = vunpack.c.0.s8 %v2229
    %v2231 = vlaneseq
    %v2232 = vshrl.u32 %v2231, 7
    %v2233 = vsub.s32 %v2230, %v2232
    %v2234 = vrot.slane %v2227, %v2233
    %v2235 = vcombine.low %v2218, %v2226
    %v2237 = vunpack.c.l.s4 1934713408
    %v2238 = vunpack.c.0.s8 %v2237
    %v2239 = vlaneseq
    %v2240 = vshrl.u32 %v2239, 7
    %v2241 = vsub.s32 %v2238, %v2240
    %v2242 = vrot.slane %v2235, %v2241
    %v2243 = vcombine.low %v2234, %v2242
    %v2244 = vcombine.high %v2234, %v2242
    %v2245 = vcombine.low %v2137, %v2153
    %v2247 = vunpack.c.l.s4 1983009808
    %v2248 = vunpack.c.0.s8 %v2247
    %v2249 = vlaneseq
    %v2250 = vshrl.u32 %v2249, 7
    %v2251 = vsub.s32 %v2248, %v2250
    %v2252 = vrot.slane %v2245, %v2251
    %v2253 = vcombine.low %v2145, %v2161
    %v2255 = vunpack.c.l.s4 1983009808
    %v2256 = vunpack.c.0.s8 %v2255
    %v2257 = vlaneseq
    %v2258 = vshrl.u32 %v2257, 7
    %v2259 = vsub.s32 %v2256, %v2258
    %v2260 = vrot.slane %v2253, %v2259
    %v2261 = vcombine.low %v2169, %v2185
    %v2263 = vunpack.c.l.s4 1983009808
    %v2264 = vunpack.c.0.s8 %v2263
    %v2265 = vlaneseq
    %v2266 = vshrl.u32 %v2265, 7
    %v2267 = vsub.s32 %v2264, %v2266
    %v2268 = vrot.slane %v2261, %v2267
    %v2269 = vcombine.low %v2177, %v2193
    %v2271 = vunpack.c.l.s4 1983009808
    %v2272 = vunpack.c.0.s8 %v2271
    %v2273 = vlaneseq
    %v2274 = vshrl.u32 %v2273, 7
    %v2275 = vsub.s32 %v2272, %v2274
    %v2276 = vrot.slane %v2269, %v2275
    %v2277 = vcombine.low %v2252, %v2260
    %v2279 = vunpack.c.l.s4 1934713408
    %v2280 = vunpack.c.0.s8 %v2279
    %v2281 = vlaneseq
    %v2282 = vshrl.u32 %v2281, 7
    %v2283 = vsub.s32 %v2280, %v2282
    %v2284 = vrot.slane %v2277, %v2283
    %v2285 = vcombine.low %v2268, %v2276
    %v2287 = vunpack.c.l.s4 1934713408
    %v2288 = vunpack.c.0.s8 %v2287
    %v2289 = vlaneseq
    %v2290 = vshrl.u32 %v2289, 7
    %v2291 = vsub.s32 %v2288, %v2290
    %v2292 = vrot.slane %v2285, %v2291
    %v2293 = vcombine.low %v2284, %v2292
    %v2294 = vcombine.high %v2284, %v2292
    %v2297 = vpack.i.b16 %v2293, %v2243
    %v2298 = vshrl.u32 %v2243, 16
    %v2299 = vshrl.u32 %v2293, 16
    %v2300 = vpack.i.b16 %v2299, %v2298
    %v2303 = vpack.i.b16 %v2294, %v2244
    %v2304 = vshrl.u32 %v2244, 16
    %v2305 = vshrl.u32 %v2294, 16
    %v2306 = vpack.i.b16 %v2305, %v2304
    %2307 = vrot.lane.b32.xlu0 %v2300, 8
    %v2308 = vpop.permute.xlu0 %2307
    %2309 = vrot.lane.b32.xlu0 %v2303, 16
    %v2310 = vpop.permute.xlu0 %2309
    %2311 = vrot.lane.b32.xlu0 %v2306, 24
    %v2312 = vpop.permute.xlu0 %2311
    %v2315 = vsel %vm1161, %v2297, %v2308
    %vm2316 = vcmask 130048
    %v2318 = vsel %vm2316, %v2315, %v2310
    %vm2319 = vcmask 195584
    %v2321 = vsel %vm2319, %v2318, %v2312
    %v2322 = vld [vmem:[#allocation10] sm:$0xf]
    %v2323 = vld [vmem:[#allocation10 + $0x4] sm:$0xf]
    %v2324 = vld [vmem:[#allocation10 + $0x8] sm:$0xf]
    %v2325 = vld [vmem:[#allocation10 + $0xc] sm:$0xf]
    %v2326 = vld [vmem:[%s6] sm:$0x1]
    %v2328 = vlaneseq
    %v2329 = vshrl.u32 %v2328, 7
    %v2330 = vsub.s32 0, %v2329
    %v2331 = vrot.slane %v2326, %v2330
    %v2337 = vunpack.c.l.b16 %v2322
    %v2338 = vunpack.c.l.b16 %v2323
    %v2339 = vunpack.c.l.b16 %v2324
    %v2340 = vunpack.c.l.b16 %v2325
    %v2341 = vpack.c.b16 %v2338, %v2337
    %v2342 = vpack.c.b16 %v2340, %v2339
    %v2345 = vsel %vm128, %v2321, 0
    %2347 = vmatprep.subr.bf16.mxu0 0
    %2348 = vmatpush1.bf16.msra.mxu0 0
    %2349 = vmatprep.subr.bf16.mxu0 0
    %2350 = vmatpush1.bf16.msra.mxu0 0
    %2351 = vmatprep.subr.bf16.mxu0 0
    %2352 = vmatpush1.bf16.msra.mxu0 0
    %2353 = vmatprep.subr.bf16.mxu0 0
    %2354 = vmatpush1.bf16.msra.mxu0 0
    %2355 = vmatprep.subr.bf16.mxu0 0
    %2356 = vmatpush1.bf16.msra.mxu0 0
    %2357 = vmatprep.subr.bf16.mxu0 0
    %2358 = vmatpush1.bf16.msra.mxu0 0
    %2359 = vmatprep.subr.bf16.mxu0 0
    %2360 = vmatpush1.bf16.msra.mxu0 %v2342
    %2361 = vmatprep.subr.bf16.mxu0 0
    %2362 = vmatpush1.bf16.msra.mxu0 %v2341
    %2363 = vmatprep.subr.bf16.mxu0 0
    %2364 = vmatpush2.bf16.msra.mxu0 0
    %2365 = vmatprep.subr.bf16.mxu0 0
    %2366 = vmatpush2.bf16.msra.mxu0 0
    %2367 = vmatprep.subr.bf16.mxu0 0
    %2368 = vmatpush2.bf16.msra.mxu0 0
    %2369 = vmatprep.subr.bf16.mxu0 0
    %2370 = vmatpush2.bf16.msra.mxu0 0
    %2371 = vmatprep.subr.bf16.mxu0 0
    %2372 = vmatpush2.bf16.msra.mxu0 0
    %2373 = vmatprep.subr.bf16.mxu0 0
    %2374 = vmatpush2.bf16.msra.mxu0 0
    %2375 = vmatprep.subr.bf16.mxu0 0
    %2376 = vmatpush2.bf16.msra.mxu0 0
    %2377 = vmatprep.subr.bf16.mxu0 0
    %2378 = vmatpush2.bf16.msra.mxu0 0
    %2379 = vmatprep.mubr.bf16.mxu0 0
    %2380 = vmatmul.mubr.bf16.gmra.mxu0 %v2345
    %v2381 = vpop.f32.mrf.mxu0
    %v2382 = vadd.f32 %v2331, %v2381
    %v2383 = vpop.f32.mrf.mxu0
    %v2384 = vpop.f32.mrf.mxu0
    %v2385 = vadd.f32 %v2331, %v2384
    %v2386 = vpop.f32.mrf.mxu0
    %2387 = vdwg.mxu0
    %2388 = vst.msk [vmem:[#allocation11] sm:$0xff] %vm128, %v2382
    %2389 = vst.msk [vmem:[#allocation11 + $0x8] sm:$0xff] %vm128, %v2385
    // Predicated region
    $region50: #{tpu_custom_call.1} parent=1 // pred_check
      _
    $region51: #{tpu_custom_call.1} parent=1 // pred_check_branch
      %2391 = sbr.rel (0) target = $region53
    $region52: #{tpu_custom_call.1} parent=1 // pred_region
      %s2393 = ssub.s32 256, 256
      %2394 = vsyncadd [#allocation4], %s2393
      %s2395 = sshll.u32 [#allocation11], 4
      %s2396 = int_to_ptr.vmem [resolvable:$true] %s2395
      %2401 = dma.vmem_to_hbm [thread:$0]  %s2396, 256, %s7, [#allocation4], 128, 128, 8
    $region53: #{tpu_custom_call.1} parent=1 // pred_fallthru
      _
    // Predicated region
    $region54: #{tpu_custom_call.1} parent=1 // pred_check
      _
    $region55: #{tpu_custom_call.1} parent=1 // pred_check_branch
      %2403 = sbr.rel (0) target = $region57
    $region56: #{tpu_custom_call.1} parent=1 // pred_region
      %2404 = dma.done [#allocation4], 256
    $region57: #{tpu_custom_call.1} parent=1 // pred_fallthru
      _
    %2405 = vsyncpa [#allocation3], 1
    %2406 = vsyncpa [#allocation6], 1
    %2407 = vsyncpa [#allocation9], 1
    %2408 = vsyncpa [#allocation4], 1

// kernel: tpu_custom_call.1
$region0: #{tpu_custom_call.1}
  #allocation0 [shape = 'u32[]', space=smem, size = 0x4, offset = 0x4, fixed_abs, tag = 'smem constant byte address 0x4 - core index']
  #allocation1 [shape = 'u32[144,128]{1,0:T(1,128)}', space=vmem, size = 0x12000, scoped, tag = 'internal scratch']
  %s0 = inlined_call_operand.hbm [shape: bf16[2,8,32], index: 0, kind: input, shape index: {}]
  %s1 = inlined_call_operand.hbm [shape: bf16[2,8,32], index: 1, kind: input, shape index: {}]
  %s2 = inlined_call_operand.hbm [shape: bf16[2,8,32], index: 2, kind: input, shape index: {}]
  %s3 = inlined_call_operand.hbm [shape: bf16[3,32,32], index: 3, kind: input, shape index: {}]
  %s4 = inlined_call_operand.vmem [shape: f32[3,32], index: 4, kind: input, shape index: {}]
  %s5 = inlined_call_operand.hbm [shape: bf16[32,32], index: 5, kind: input, shape index: {}]
  %s6 = inlined_call_operand.vmem [shape: f32[1,32], index: 6, kind: input, shape index: {}]
  %s7 = inlined_call_operand.hbm [shape: f32[2,8,32], index: 7, kind: output, shape index: {}]
  %s8 = sld [smem:[#allocation0]]
  $region58: #{tpu_custom_call.1} parent=0
    _
  %s10 = ssub.s32 1, %s8
  %s11 = scalar_select 0, %s10, %s8
  $region1: #{tpu_custom_call.1} parent=0
    #allocation2 [shape = 'u8[4096]{0}', space=vmem, size = 0x1000, scoped, tag = 'input window, operand 0, single buffered']
    #allocation3 [shape = 's32[1]{0}', space=sflag, size = 0x4, scoped, tag = 'scoped memory for tpu_custom_call.1']
    #allocation4 [shape = 's32[1]{0}', space=sflag, size = 0x4, scoped, tag = 'scoped memory for tpu_custom_call.1']
    #allocation5 [shape = 'u8[4096]{0}', space=vmem, size = 0x1000, scoped, tag = 'input window, operand 1, single buffered']
    #allocation6 [shape = 's32[1]{0}', space=sflag, size = 0x4, scoped, tag = 'scoped memory for tpu_custom_call.1']
    #allocation7 [shape = 'u8[4096]{0}', space=vmem, size = 0x1000, scoped, tag = 'input window, operand 2, single buffered']
    #allocation8 [shape = 'u8[24576]{0}', space=vmem, size = 0x6000, scoped, tag = 'input window, operand 3, single buffered']
    #allocation9 [shape = 's32[1]{0}', space=sflag, size = 0x4, scoped, tag = 'scoped memory for tpu_custom_call.1']
    #allocation10 [shape = 'u8[8192]{0}', space=vmem, size = 0x2000, scoped, tag = 'input window, operand 5, single buffered']
    #allocation11 [shape = 'u8[8192]{0}', space=vmem, size = 0x2000, scoped, tag = 'output window, operand 0, single buffered']
    %12 = vsyncpa [#allocation3], 0
    %13 = vsyncpa [#allocation6], 0
    %14 = vsyncpa [#allocation9], 0
    %15 = vsyncpa [#allocation4], 0
    // Predicated region
    $region2: #{tpu_custom_call.1} parent=1 // pred_check
      _
    $region3: #{tpu_custom_call.1} parent=1 // pred_check_branch
      %17 = sbr.rel (0) target = $region5
    $region4: #{tpu_custom_call.1} parent=1 // pred_region
      %s19 = ssub.s32 128, 128
      %20 = vsyncadd [#allocation3], %s19
      %s21 = sshll.u32 [#allocation2], 4
      %s22 = int_to_ptr.vmem [resolvable:$true] %s21
      %27 = dma.hbm_to_vmem [thread:$0]  %s0, 128, %s22, [#allocation3], 64, 64, 4
    $region5: #{tpu_custom_call.1} parent=1 // pred_fallthru
      _
    // Predicated region
    $region6: #{tpu_custom_call.1} parent=1 // pred_check
      _
    $region7: #{tpu_custom_call.1} parent=1 // pred_check_branch
      %29 = sbr.rel (0) target = $region9
    $region8: #{tpu_custom_call.1} parent=1 // pred_region
      %s31 = ssub.s32 128, 128
      %32 = vsyncadd [#allocation6], %s31
      %s33 = sshll.u32 [#allocation5], 4
      %s34 = int_to_ptr.vmem [resolvable:$true] %s33
      %39 = dma.hbm_to_vmem [thread:$0]  %s1, 128, %s34, [#allocation6], 64, 64, 4
    $region9: #{tpu_custom_call.1} parent=1 // pred_fallthru
      _
    // Predicated region
    $region10: #{tpu_custom_call.1} parent=1 // pred_check
      _
    $region11: #{tpu_custom_call.1} parent=1 // pred_check_branch
      %41 = sbr.rel (0) target = $region13
    $region12: #{tpu_custom_call.1} parent=1 // pred_region
      %s43 = ssub.s32 128, 128
      %44 = vsyncadd [#allocation6], %s43
      %s45 = sshll.u32 [#allocation7], 4
      %s46 = int_to_ptr.vmem [resolvable:$true] %s45
      %51 = dma.hbm_to_vmem [thread:$0]  %s2, 128, %s46, [#allocation6], 64, 64, 4
    $region13: #{tpu_custom_call.1} parent=1 // pred_fallthru
      _
    // Predicated region
    $region14: #{tpu_custom_call.1} parent=1 // pred_check
      _
    $region15: #{tpu_custom_call.1} parent=1 // pred_check_branch
      %53 = sbr.rel (0) target = $region17
    $region16: #{tpu_custom_call.1} parent=1 // pred_region
      %s55 = ssub.s32 768, 768
      %56 = vsyncadd [#allocation9], %s55
      %s57 = sshll.u32 [#allocation8], 4
      %s58 = int_to_ptr.vmem [resolvable:$true] %s57
      %63 = dma.hbm_to_vmem [thread:$0]  %s3, 768, %s58, [#allocation9], 64, 64, 4
    $region17: #{tpu_custom_call.1} parent=1 // pred_fallthru
      _
    // Predicated region
    $region18: #{tpu_custom_call.1} parent=1 // pred_check
      _
    $region19: #{tpu_custom_call.1} parent=1 // pred_check_branch
      %65 = sbr.rel (0) target = $region21
    $region20: #{tpu_custom_call.1} parent=1 // pred_region
      _
    $region21: #{tpu_custom_call.1} parent=1 // pred_fallthru
      _
    // Predicated region
    $region22: #{tpu_custom_call.1} parent=1 // pred_check
      _
    $region23: #{tpu_custom_call.1} parent=1 // pred_check_branch
      %67 = sbr.rel (0) target = $region25
    $region24: #{tpu_custom_call.1} parent=1 // pred_region
      %s69 = ssub.s32 256, 256
      %70 = vsyncadd [#allocation9], %s69
      %s71 = sshll.u32 [#allocation10], 4
      %s72 = int_to_ptr.vmem [resolvable:$true] %s71
      %77 = dma.hbm_to_vmem [thread:$0]  %s5, 256, %s72, [#allocation9], 64, 64, 4
    $region25: #{tpu_custom_call.1} parent=1 // pred_fallthru
      _
    // Predicated region
    $region26: #{tpu_custom_call.1} parent=1 // pred_check
      _
    $region27: #{tpu_custom_call.1} parent=1 // pred_check_branch
      %79 = sbr.rel (0) target = $region29
    $region28: #{tpu_custom_call.1} parent=1 // pred_region
      _
    $region29: #{tpu_custom_call.1} parent=1 // pred_fallthru
      _
    // Predicated region
    $region30: #{tpu_custom_call.1} parent=1 // pred_check
      _
    $region31: #{tpu_custom_call.1} parent=1 // pred_check_branch
      %81 = sbr.rel (0) target = $region33
    $region32: #{tpu_custom_call.1} parent=1 // pred_region
      %82 = dma.done [#allocation3], 128
    $region33: #{tpu_custom_call.1} parent=1 // pred_fallthru
      _
    // Predicated region
    $region34: #{tpu_custom_call.1} parent=1 // pred_check
      _
    $region35: #{tpu_custom_call.1} parent=1 // pred_check_branch
      %84 = sbr.rel (0) target = $region37
    $region36: #{tpu_custom_call.1} parent=1 // pred_region
      %85 = dma.done [#allocation6], 128
    $region37: #{tpu_custom_call.1} parent=1 // pred_fallthru
      _
    // Predicated region
    $region38: #{tpu_custom_call.1} parent=1 // pred_check
      _
    $region39: #{tpu_custom_call.1} parent=1 // pred_check_branch
      %87 = sbr.rel (0) target = $region41
    $region40: #{tpu_custom_call.1} parent=1 // pred_region
      %88 = dma.done [#allocation6], 128
    $region41: #{tpu_custom_call.1} parent=1 // pred_fallthru
      _
    // Predicated region
    $region42: #{tpu_custom_call.1} parent=1 // pred_check
      _
    $region43: #{tpu_custom_call.1} parent=1 // pred_check_branch
      %90 = sbr.rel (0) target = $region45
    $region44: #{tpu_custom_call.1} parent=1 // pred_region
      %91 = dma.done [#allocation9], 768
    $region45: #{tpu_custom_call.1} parent=1 // pred_fallthru
      _
    // Predicated region
    $region46: #{tpu_custom_call.1} parent=1 // pred_check
      _
    $region47: #{tpu_custom_call.1} parent=1 // pred_check_branch
      %93 = sbr.rel (0) target = $region49
    $region48: #{tpu_custom_call.1} parent=1 // pred_region
      %94 = dma.done [#allocation9], 256
    $region49: #{tpu_custom_call.1} parent=1 // pred_fallthru
      _
    %v96 = vld [vmem:[#allocation2] sm:$0xf]
    %v97 = vld [vmem:[#allocation2 + $0x4] sm:$0xf]
    %v98 = vld [vmem:[#allocation5] sm:$0xf]
    %v99 = vld [vmem:[#allocation5 + $0x4] sm:$0xf]
    %v100 = vld [vmem:[#allocation7] sm:$0xf]
    %v101 = vld [vmem:[#allocation7 + $0x4] sm:$0xf]
    %v102 = vld [vmem:[#allocation8] sm:$0xf]
    %v103 = vld [vmem:[#allocation8 + $0x4] sm:$0xf]
    %v104 = vld [vmem:[#allocation8 + $0x8] sm:$0xf]
    %v105 = vld [vmem:[#allocation8 + $0xc] sm:$0xf]
    %v106 = vld [vmem:[%s4] sm:$0x1]
    %v107 = vlaneseq
    %v108 = vshrl.u32 %v107, 7
    %v109 = vsub.s32 0, %v108
    %v110 = vrot.slane %v106, %v109
    %v113 = vunpack.c.l.b16 %v96
    %v114 = vunpack.c.l.b16 %v97
    %v115 = vpack.c.b16 %v114, %v113
    %v120 = vunpack.c.l.b16 %v102
    %v121 = vunpack.c.l.b16 %v103
    %v122 = vunpack.c.l.b16 %v104
    %v123 = vunpack.c.l.b16 %v105
    %v124 = vpack.c.b16 %v121, %v120
    %v125 = vpack.c.b16 %v123, %v122
    %vm128 = vcmask 261120
    %v130 = vsel %vm128, %v115, 0
    %132 = vmatprep.subr.bf16.mxu0 0
    %133 = vmatpush1.bf16.msra.mxu0 0
    %134 = vmatprep.subr.bf16.mxu0 0
    %135 = vmatpush1.bf16.msra.mxu0 0
    %136 = vmatprep.subr.bf16.mxu0 0
    %137 = vmatpush1.bf16.msra.mxu0 0
    %138 = vmatprep.subr.bf16.mxu0 0
    %139 = vmatpush1.bf16.msra.mxu0 0
    %140 = vmatprep.subr.bf16.mxu0 0
    %141 = vmatpush1.bf16.msra.mxu0 0
    %142 = vmatprep.subr.bf16.mxu0 0
    %143 = vmatpush1.bf16.msra.mxu0 0
    %144 = vmatprep.subr.bf16.mxu0 0
    %145 = vmatpush1.bf16.msra.mxu0 %v125
    %146 = vmatprep.subr.bf16.mxu0 0
    %147 = vmatpush1.bf16.msra.mxu0 %v124
    %148 = vmatprep.subr.bf16.mxu0 0
    %149 = vmatpush2.bf16.msra.mxu0 0
    %150 = vmatprep.subr.bf16.mxu0 0
    %151 = vmatpush2.bf16.msra.mxu0 0
    %152 = vmatprep.subr.bf16.mxu0 0
    %153 = vmatpush2.bf16.msra.mxu0 0
    %154 = vmatprep.subr.bf16.mxu0 0
    %155 = vmatpush2.bf16.msra.mxu0 0
    %156 = vmatprep.subr.bf16.mxu0 0
    %157 = vmatpush2.bf16.msra.mxu0 0
    %158 = vmatprep.subr.bf16.mxu0 0
    %159 = vmatpush2.bf16.msra.mxu0 0
    %160 = vmatprep.subr.bf16.mxu0 0
    %161 = vmatpush2.bf16.msra.mxu0 0
    %162 = vmatprep.subr.bf16.mxu0 0
    %163 = vmatpush2.bf16.msra.mxu0 0
    %164 = vmatprep.mubr.bf16.mxu0 0
    %165 = vmatmul.mubr.bf16.gmra.mxu0 %v130
    %v166 = vpop.f32.mrf.mxu0
    %v167 = vadd.f32 %v110, %v166
    %v168 = vpop.f32.mrf.mxu0
    %v169 = vpop.f32.mrf.mxu0
    %v170 = vadd.f32 %v110, %v169
    %v171 = vpop.f32.mrf.mxu0
    %172 = vdwg.mxu0
    %s173 = scalar_lea.vmem [#allocation8], 16
    %v174 = vld [vmem:[%s173] sm:$0xf]
    %v175 = vld [vmem:[%s173 + $0x4] sm:$0xf]
    %v176 = vld [vmem:[%s173 + $0x8] sm:$0xf]
    %v177 = vld [vmem:[%s173 + $0xc] sm:$0xf]
    %v178 = vld [vmem:[%s4 + $0x1] sm:$0x1]
    %v179 = vlaneseq
    %v180 = vshrl.u32 %v179, 7
    %v181 = vsub.s32 0, %v180
    %v182 = vrot.slane %v178, %v181
    %v185 = vunpack.c.l.b16 %v98
    %v186 = vunpack.c.l.b16 %v99
    %v187 = vpack.c.b16 %v186, %v185
    %v192 = vunpack.c.l.b16 %v174
    %v193 = vunpack.c.l.b16 %v175
    %v194 = vunpack.c.l.b16 %v176
    %v195 = vunpack.c.l.b16 %v177
    %v196 = vpack.c.b16 %v193, %v192
    %v197 = vpack.c.b16 %v195, %v194
    %v201 = vsel %vm128, %v187, 0
    %203 = vmatprep.subr.bf16.mxu0 0
    %204 = vmatpush1.bf16.msra.mxu0 0
    %205 = vmatprep.subr.bf16.mxu0 0
    %206 = vmatpush1.bf16.msra.mxu0 0
    %207 = vmatprep.subr.bf16.mxu0 0
    %208 = vmatpush1.bf16.msra.mxu0 0
    %209 = vmatprep.subr.bf16.mxu0 0
    %210 = vmatpush1.bf16.msra.mxu0 0
    %211 = vmatprep.subr.bf16.mxu0 0
    %212 = vmatpush1.bf16.msra.mxu0 0
    %213 = vmatprep.subr.bf16.mxu0 0
    %214 = vmatpush1.bf16.msra.mxu0 0
    %215 = vmatprep.subr.bf16.mxu0 0
    %216 = vmatpush1.bf16.msra.mxu0 %v197
    %217 = vmatprep.subr.bf16.mxu0 0
    %218 = vmatpush1.bf16.msra.mxu0 %v196
    %219 = vmatprep.subr.bf16.mxu0 0
    %220 = vmatpush2.bf16.msra.mxu0 0
    %221 = vmatprep.subr.bf16.mxu0 0
    %222 = vmatpush2.bf16.msra.mxu0 0
    %223 = vmatprep.subr.bf16.mxu0 0
    %224 = vmatpush2.bf16.msra.mxu0 0
    %225 = vmatprep.subr.bf16.mxu0 0
    %226 = vmatpush2.bf16.msra.mxu0 0
    %227 = vmatprep.subr.bf16.mxu0 0
    %228 = vmatpush2.bf16.msra.mxu0 0
    %229 = vmatprep.subr.bf16.mxu0 0
    %230 = vmatpush2.bf16.msra.mxu0 0
    %231 = vmatprep.subr.bf16.mxu0 0
    %232 = vmatpush2.bf16.msra.mxu0 0
    %233 = vmatprep.subr.bf16.mxu0 0
    %234 = vmatpush2.bf16.msra.mxu0 0
    %235 = vmatprep.mubr.bf16.mxu0 0
    %236 = vmatmul.mubr.bf16.gmra.mxu0 %v201
    %v237 = vpop.f32.mrf.mxu0
    %v238 = vadd.f32 %v182, %v237
    %v239 = vpop.f32.mrf.mxu0
    %v240 = vpop.f32.mrf.mxu0
    %v241 = vadd.f32 %v182, %v240
    %v242 = vpop.f32.mrf.mxu0
    %243 = vdwg.mxu0
    %s244 = scalar_lea.vmem [#allocation8], 32
    %v245 = vld [vmem:[%s244] sm:$0xf]
    %v246 = vld [vmem:[%s244 + $0x4] sm:$0xf]
    %v247 = vld [vmem:[%s244 + $0x8] sm:$0xf]
    %v248 = vld [vmem:[%s244 + $0xc] sm:$0xf]
    %v249 = vld [vmem:[%s4 + $0x2] sm:$0x1]
    %v250 = vlaneseq
    %v251 = vshrl.u32 %v250, 7
    %v252 = vsub.s32 0, %v251
    %v253 = vrot.slane %v249, %v252
    %v256 = vunpack.c.l.b16 %v100
    %v257 = vunpack.c.l.b16 %v101
    %v258 = vpack.c.b16 %v257, %v256
    %v263 = vunpack.c.l.b16 %v245
    %v264 = vunpack.c.l.b16 %v246
    %v265 = vunpack.c.l.b16 %v247
    %v266 = vunpack.c.l.b16 %v248
    %v267 = vpack.c.b16 %v264, %v263
    %v268 = vpack.c.b16 %v266, %v265
    %v272 = vsel %vm128, %v258, 0
    %274 = vmatprep.subr.bf16.mxu0 0
    %275 = vmatpush1.bf16.msra.mxu0 0
    %276 = vmatprep.subr.bf16.mxu0 0
    %277 = vmatpush1.bf16.msra.mxu0 0
    %278 = vmatprep.subr.bf16.mxu0 0
    %279 = vmatpush1.bf16.msra.mxu0 0
    %280 = vmatprep.subr.bf16.mxu0 0
    %281 = vmatpush1.bf16.msra.mxu0 0
    %282 = vmatprep.subr.bf16.mxu0 0
    %283 = vmatpush1.bf16.msra.mxu0 0
    %284 = vmatprep.subr.bf16.mxu0 0
    %285 = vmatpush1.bf16.msra.mxu0 0
    %286 = vmatprep.subr.bf16.mxu0 0
    %287 = vmatpush1.bf16.msra.mxu0 %v268
    %288 = vmatprep.subr.bf16.mxu0 0
    %289 = vmatpush1.bf16.msra.mxu0 %v267
    %290 = vmatprep.subr.bf16.mxu0 0
    %291 = vmatpush2.bf16.msra.mxu0 0
    %292 = vmatprep.subr.bf16.mxu0 0
    %293 = vmatpush2.bf16.msra.mxu0 0
    %294 = vmatprep.subr.bf16.mxu0 0
    %295 = vmatpush2.bf16.msra.mxu0 0
    %296 = vmatprep.subr.bf16.mxu0 0
    %297 = vmatpush2.bf16.msra.mxu0 0
    %298 = vmatprep.subr.bf16.mxu0 0
    %299 = vmatpush2.bf16.msra.mxu0 0
    %300 = vmatprep.subr.bf16.mxu0 0
    %301 = vmatpush2.bf16.msra.mxu0 0
    %302 = vmatprep.subr.bf16.mxu0 0
    %303 = vmatpush2.bf16.msra.mxu0 0
    %304 = vmatprep.subr.bf16.mxu0 0
    %305 = vmatpush2.bf16.msra.mxu0 0
    %306 = vmatprep.mubr.bf16.mxu0 0
    %307 = vmatmul.mubr.bf16.gmra.mxu0 %v272
    %v308 = vpop.f32.mrf.mxu0
    %v309 = vadd.f32 %v253, %v308
    %v310 = vpop.f32.mrf.mxu0
    %v311 = vpop.f32.mrf.mxu0
    %v312 = vadd.f32 %v253, %v311
    %v313 = vpop.f32.mrf.mxu0
    %314 = vdwg.mxu0
    %v315 = vpack.c.bf16 %v170, %v167
    %317 = vrot.lane.b32.xlu0 %v315, 120
    %v318 = vpop.permute.xlu0 %317
    %319 = vrot.lane.b32.xlu0 %v315, 112
    %v320 = vpop.permute.xlu0 %319
    %321 = vrot.lane.b32.xlu0 %v315, 104
    %v322 = vpop.permute.xlu0 %321
    %v325 = vpack.i.b16 %v318, %v315
    %v327 = vshrl.u32 %v315, 16
    %v328 = vshrl.u32 %v318, 16
    %v329 = vpack.i.b16 %v328, %v327
    %v333 = vpack.i.b16 %v322, %v320
    %v335 = vshrl.u32 %v320, 16
    %v336 = vshrl.u32 %v322, 16
    %v337 = vpack.i.b16 %v336, %v335
    %v340 = vpack.i.b16 0, 0
    %v342 = vshrl.u32 0, 16
    %v343 = vpack.i.b16 %v342, %v342
    %v345 = vcombine.high %v325, %v340
    %v347 = vunpack.c.l.s4 1983009808
    %v348 = vunpack.c.0.s8 %v347
    %v349 = vlaneseq
    %v350 = vshrl.u32 %v349, 7
    %v351 = vsub.s32 %v348, %v350
    %v352 = vrot.slane %v325, %v351
    %v354 = vunpack.c.l.s4 1983009808
    %v355 = vunpack.c.0.s8 %v354
    %v356 = vlaneseq
    %v357 = vshrl.u32 %v356, 7
    %v358 = vsub.s32 %v355, %v357
    %v359 = vrot.slane %v345, %v358
    %v360 = vcombine.high %v333, %v340
    %v362 = vunpack.c.l.s4 1983009808
    %v363 = vunpack.c.0.s8 %v362
    %v364 = vlaneseq
    %v365 = vshrl.u32 %v364, 7
    %v366 = vsub.s32 %v363, %v365
    %v367 = vrot.slane %v333, %v366
    %v369 = vunpack.c.l.s4 1983009808
    %v370 = vunpack.c.0.s8 %v369
    %v371 = vlaneseq
    %v372 = vshrl.u32 %v371, 7
    %v373 = vsub.s32 %v370, %v372
    %v374 = vrot.slane %v360, %v373
    %v375 = vcombine.low %v352, %v367
    %v376 = vcombine.high %v352, %v367
    %v378 = vunpack.c.l.s4 1934713408
    %v379 = vunpack.c.0.s8 %v378
    %v380 = vlaneseq
    %v381 = vshrl.u32 %v380, 7
    %v382 = vsub.s32 %v379, %v381
    %v383 = vrot.slane %v375, %v382
    %v385 = vunpack.c.l.s4 1934713408
    %v386 = vunpack.c.0.s8 %v385
    %v387 = vlaneseq
    %v388 = vshrl.u32 %v387, 7
    %v389 = vsub.s32 %v386, %v388
    %v390 = vrot.slane %v376, %v389
    %v391 = vcombine.low %v359, %v374
    %v392 = vcombine.high %v359, %v374
    %v394 = vunpack.c.l.s4 1934713408
    %v395 = vunpack.c.0.s8 %v394
    %v396 = vlaneseq
    %v397 = vshrl.u32 %v396, 7
    %v398 = vsub.s32 %v395, %v397
    %v399 = vrot.slane %v391, %v398
    %v401 = vunpack.c.l.s4 1934713408
    %v402 = vunpack.c.0.s8 %v401
    %v403 = vlaneseq
    %v404 = vshrl.u32 %v403, 7
    %v405 = vsub.s32 %v402, %v404
    %v406 = vrot.slane %v392, %v405
    %v407 = vcombine.high %v383, 0
    %v408 = vcombine.high %v390, 0
    %v409 = vcombine.high %v399, 0
    %v410 = vcombine.high %v406, 0
    %v411 = vcombine.high %v329, %v343
    %v413 = vunpack.c.l.s4 1983009808
    %v414 = vunpack.c.0.s8 %v413
    %v415 = vlaneseq
    %v416 = vshrl.u32 %v415, 7
    %v417 = vsub.s32 %v414, %v416
    %v418 = vrot.slane %v329, %v417
    %v420 = vunpack.c.l.s4 1983009808
    %v421 = vunpack.c.0.s8 %v420
    %v422 = vlaneseq
    %v423 = vshrl.u32 %v422, 7
    %v424 = vsub.s32 %v421, %v423
    %v425 = vrot.slane %v411, %v424
    %v426 = vcombine.high %v337, %v343
    %v428 = vunpack.c.l.s4 1983009808
    %v429 = vunpack.c.0.s8 %v428
    %v430 = vlaneseq
    %v431 = vshrl.u32 %v430, 7
    %v432 = vsub.s32 %v429, %v431
    %v433 = vrot.slane %v337, %v432
    %v435 = vunpack.c.l.s4 1983009808
    %v436 = vunpack.c.0.s8 %v435
    %v437 = vlaneseq
    %v438 = vshrl.u32 %v437, 7
    %v439 = vsub.s32 %v436, %v438
    %v440 = vrot.slane %v426, %v439
    %v441 = vcombine.low %v418, %v433
    %v442 = vcombine.high %v418, %v433
    %v444 = vunpack.c.l.s4 1934713408
    %v445 = vunpack.c.0.s8 %v444
    %v446 = vlaneseq
    %v447 = vshrl.u32 %v446, 7
    %v448 = vsub.s32 %v445, %v447
    %v449 = vrot.slane %v441, %v448
    %v451 = vunpack.c.l.s4 1934713408
    %v452 = vunpack.c.0.s8 %v451
    %v453 = vlaneseq
    %v454 = vshrl.u32 %v453, 7
    %v455 = vsub.s32 %v452, %v454
    %v456 = vrot.slane %v442, %v455
    %v457 = vcombine.low %v425, %v440
    %v458 = vcombine.high %v425, %v440
    %v460 = vunpack.c.l.s4 1934713408
    %v461 = vunpack.c.0.s8 %v460
    %v462 = vlaneseq
    %v463 = vshrl.u32 %v462, 7
    %v464 = vsub.s32 %v461, %v463
    %v465 = vrot.slane %v457, %v464
    %v467 = vunpack.c.l.s4 1934713408
    %v468 = vunpack.c.0.s8 %v467
    %v469 = vlaneseq
    %v470 = vshrl.u32 %v469, 7
    %v471 = vsub.s32 %v468, %v470
    %v472 = vrot.slane %v458, %v471
    %v473 = vcombine.high %v449, 0
    %v474 = vcombine.high %v456, 0
    %v475 = vcombine.high %v465, 0
    %v476 = vcombine.high %v472, 0
    %v477 = vcombine.low %v383, %v390
    %v479 = vunpack.c.l.s4 1983009808
    %v480 = vunpack.c.0.s8 %v479
    %v481 = vlaneseq
    %v482 = vshrl.u32 %v481, 7
    %v483 = vsub.s32 %v480, %v482
    %v484 = vrot.slane %v477, %v483
    %v485 = vcombine.low %v407, %v408
    %v487 = vunpack.c.l.s4 1983009808
    %v488 = vunpack.c.0.s8 %v487
    %v489 = vlaneseq
    %v490 = vshrl.u32 %v489, 7
    %v491 = vsub.s32 %v488, %v490
    %v492 = vrot.slane %v485, %v491
    %v493 = vcombine.low %v484, %v492
    %v495 = vunpack.c.l.s4 1934713408
    %v496 = vunpack.c.0.s8 %v495
    %v497 = vlaneseq
    %v498 = vshrl.u32 %v497, 7
    %v499 = vsub.s32 %v496, %v498
    %v500 = vrot.slane %v493, %v499
    %v501 = vcombine.high %v500, 0
    %v502 = vcombine.low %v449, %v456
    %v504 = vunpack.c.l.s4 1983009808
    %v505 = vunpack.c.0.s8 %v504
    %v506 = vlaneseq
    %v507 = vshrl.u32 %v506, 7
    %v508 = vsub.s32 %v505, %v507
    %v509 = vrot.slane %v502, %v508
    %v510 = vcombine.low %v473, %v474
    %v512 = vunpack.c.l.s4 1983009808
    %v513 = vunpack.c.0.s8 %v512
    %v514 = vlaneseq
    %v515 = vshrl.u32 %v514, 7
    %v516 = vsub.s32 %v513, %v515
    %v517 = vrot.slane %v510, %v516
    %v518 = vcombine.low %v509, %v517
    %v520 = vunpack.c.l.s4 1934713408
    %v521 = vunpack.c.0.s8 %v520
    %v522 = vlaneseq
    %v523 = vshrl.u32 %v522, 7
    %v524 = vsub.s32 %v521, %v523
    %v525 = vrot.slane %v518, %v524
    %v526 = vcombine.high %v525, 0
    %v527 = vcombine.low %v399, %v406
    %v529 = vunpack.c.l.s4 1983009808
    %v530 = vunpack.c.0.s8 %v529
    %v531 = vlaneseq
    %v532 = vshrl.u32 %v531, 7
    %v533 = vsub.s32 %v530, %v532
    %v534 = vrot.slane %v527, %v533
    %v535 = vcombine.low %v409, %v410
    %v537 = vunpack.c.l.s4 1983009808
    %v538 = vunpack.c.0.s8 %v537
    %v539 = vlaneseq
    %v540 = vshrl.u32 %v539, 7
    %v541 = vsub.s32 %v538, %v540
    %v542 = vrot.slane %v535, %v541
    %v543 = vcombine.low %v534, %v542
    %v545 = vunpack.c.l.s4 1934713408
    %v546 = vunpack.c.0.s8 %v545
    %v547 = vlaneseq
    %v548 = vshrl.u32 %v547, 7
    %v549 = vsub.s32 %v546, %v548
    %v550 = vrot.slane %v543, %v549
    %v551 = vcombine.high %v550, 0
    %v552 = vcombine.low %v465, %v472
    %v554 = vunpack.c.l.s4 1983009808
    %v555 = vunpack.c.0.s8 %v554
    %v556 = vlaneseq
    %v557 = vshrl.u32 %v556, 7
    %v558 = vsub.s32 %v555, %v557
    %v559 = vrot.slane %v552, %v558
    %v560 = vcombine.low %v475, %v476
    %v562 = vunpack.c.l.s4 1983009808
    %v563 = vunpack.c.0.s8 %v562
    %v564 = vlaneseq
    %v565 = vshrl.u32 %v564, 7
    %v566 = vsub.s32 %v563, %v565
    %v567 = vrot.slane %v560, %v566
    %v568 = vcombine.low %v559, %v567
    %v570 = vunpack.c.l.s4 1934713408
    %v571 = vunpack.c.0.s8 %v570
    %v572 = vlaneseq
    %v573 = vshrl.u32 %v572, 7
    %v574 = vsub.s32 %v571, %v573
    %v575 = vrot.slane %v568, %v574
    %v576 = vcombine.high %v575, 0
    %v579 = vpack.i.b16 %v525, %v500
    %v580 = vshrl.u32 %v500, 16
    %v581 = vshrl.u32 %v525, 16
    %v582 = vpack.i.b16 %v581, %v580
    %v585 = vpack.i.b16 %v526, %v501
    %v586 = vshrl.u32 %v501, 16
    %v587 = vshrl.u32 %v526, 16
    %v588 = vpack.i.b16 %v587, %v586
    %v591 = vpack.i.b16 %v575, %v550
    %v592 = vshrl.u32 %v550, 16
    %v593 = vshrl.u32 %v575, 16
    %v594 = vpack.i.b16 %v593, %v592
    %v597 = vpack.i.b16 %v576, %v551
    %v598 = vshrl.u32 %v551, 16
    %v599 = vshrl.u32 %v576, 16
    %v600 = vpack.i.b16 %v599, %v598
    %v601 = vpack.c.bf16 %v241, %v238
    %603 = vrot.lane.b32.xlu0 %v601, 120
    %v604 = vpop.permute.xlu0 %603
    %605 = vrot.lane.b32.xlu0 %v601, 112
    %v606 = vpop.permute.xlu0 %605
    %607 = vrot.lane.b32.xlu0 %v601, 104
    %v608 = vpop.permute.xlu0 %607
    %v611 = vpack.i.b16 %v604, %v601
    %v613 = vshrl.u32 %v601, 16
    %v614 = vshrl.u32 %v604, 16
    %v615 = vpack.i.b16 %v614, %v613
    %v619 = vpack.i.b16 %v608, %v606
    %v621 = vshrl.u32 %v606, 16
    %v622 = vshrl.u32 %v608, 16
    %v623 = vpack.i.b16 %v622, %v621
    %v625 = vcombine.high %v611, %v340
    %v627 = vunpack.c.l.s4 1983009808
    %v628 = vunpack.c.0.s8 %v627
    %v629 = vlaneseq
    %v630 = vshrl.u32 %v629, 7
    %v631 = vsub.s32 %v628, %v630
    %v632 = vrot.slane %v611, %v631
    %v634 = vunpack.c.l.s4 1983009808
    %v635 = vunpack.c.0.s8 %v634
    %v636 = vlaneseq
    %v637 = vshrl.u32 %v636, 7
    %v638 = vsub.s32 %v635, %v637
    %v639 = vrot.slane %v625, %v638
    %v640 = vcombine.high %v619, %v340
    %v642 = vunpack.c.l.s4 1983009808
    %v643 = vunpack.c.0.s8 %v642
    %v644 = vlaneseq
    %v645 = vshrl.u32 %v644, 7
    %v646 = vsub.s32 %v643, %v645
    %v647 = vrot.slane %v619, %v646
    %v649 = vunpack.c.l.s4 1983009808
    %v650 = vunpack.c.0.s8 %v649
    %v651 = vlaneseq
    %v652 = vshrl.u32 %v651, 7
    %v653 = vsub.s32 %v650, %v652
    %v654 = vrot.slane %v640, %v653
    %v655 = vcombine.low %v632, %v647
    %v656 = vcombine.high %v632, %v647
    %v658 = vunpack.c.l.s4 1934713408
    %v659 = vunpack.c.0.s8 %v658
    %v660 = vlaneseq
    %v661 = vshrl.u32 %v660, 7
    %v662 = vsub.s32 %v659, %v661
    %v663 = vrot.slane %v655, %v662
    %v665 = vunpack.c.l.s4 1934713408
    %v666 = vunpack.c.0.s8 %v665
    %v667 = vlaneseq
    %v668 = vshrl.u32 %v667, 7
    %v669 = vsub.s32 %v666, %v668
    %v670 = vrot.slane %v656, %v669
    %v671 = vcombine.low %v639, %v654
    %v672 = vcombine.high %v639, %v654
    %v674 = vunpack.c.l.s4 1934713408
    %v675 = vunpack.c.0.s8 %v674
    %v676 = vlaneseq
    %v677 = vshrl.u32 %v676, 7
    %v678 = vsub.s32 %v675, %v677
    %v679 = vrot.slane %v671, %v678
    %v681 = vunpack.c.l.s4 1934713408
    %v682 = vunpack.c.0.s8 %v681
    %v683 = vlaneseq
    %v684 = vshrl.u32 %v683, 7
    %v685 = vsub.s32 %v682, %v684
    %v686 = vrot.slane %v672, %v685
    %v687 = vcombine.high %v663, 0
    %v688 = vcombine.high %v670, 0
    %v689 = vcombine.high %v679, 0
    %v690 = vcombine.high %v686, 0
    %v691 = vcombine.high %v615, %v343
    %v693 = vunpack.c.l.s4 1983009808
    %v694 = vunpack.c.0.s8 %v693
    %v695 = vlaneseq
    %v696 = vshrl.u32 %v695, 7
    %v697 = vsub.s32 %v694, %v696
    %v698 = vrot.slane %v615, %v697
    %v700 = vunpack.c.l.s4 1983009808
    %v701 = vunpack.c.0.s8 %v700
    %v702 = vlaneseq
    %v703 = vshrl.u32 %v702, 7
    %v704 = vsub.s32 %v701, %v703
    %v705 = vrot.slane %v691, %v704
    %v706 = vcombine.high %v623, %v343
    %v708 = vunpack.c.l.s4 1983009808
    %v709 = vunpack.c.0.s8 %v708
    %v710 = vlaneseq
    %v711 = vshrl.u32 %v710, 7
    %v712 = vsub.s32 %v709, %v711
    %v713 = vrot.slane %v623, %v712
    %v715 = vunpack.c.l.s4 1983009808
    %v716 = vunpack.c.0.s8 %v715
    %v717 = vlaneseq
    %v718 = vshrl.u32 %v717, 7
    %v719 = vsub.s32 %v716, %v718
    %v720 = vrot.slane %v706, %v719
    %v721 = vcombine.low %v698, %v713
    %v722 = vcombine.high %v698, %v713
    %v724 = vunpack.c.l.s4 1934713408
    %v725 = vunpack.c.0.s8 %v724
    %v726 = vlaneseq
    %v727 = vshrl.u32 %v726, 7
    %v728 = vsub.s32 %v725, %v727
    %v729 = vrot.slane %v721, %v728
    %v731 = vunpack.c.l.s4 1934713408
    %v732 = vunpack.c.0.s8 %v731
    %v733 = vlaneseq
    %v734 = vshrl.u32 %v733, 7
    %v735 = vsub.s32 %v732, %v734
    %v736 = vrot.slane %v722, %v735
    %v737 = vcombine.low %v705, %v720
    %v738 = vcombine.high %v705, %v720
    %v740 = vunpack.c.l.s4 1934713408
    %v741 = vunpack.c.0.s8 %v740
    %v742 = vlaneseq
    %v743 = vshrl.u32 %v742, 7
    %v744 = vsub.s32 %v741, %v743
    %v745 = vrot.slane %v737, %v744
    %v747 = vunpack.c.l.s4 1934713408
    %v748 = vunpack.c.0.s8 %v747
    %v749 = vlaneseq
    %v750 = vshrl.u32 %v749, 7
    %v751 = vsub.s32 %v748, %v750
    %v752 = vrot.slane %v738, %v751
    %v753 = vcombine.high %v729, 0
    %v754 = vcombine.high %v736, 0
    %v755 = vcombine.high %v745, 0
    %v756 = vcombine.high %v752, 0
    %v757 = vcombine.low %v663, %v670
    %v759 = vunpack.c.l.s4 1983009808
    %v760 = vunpack.c.0.s8 %v759
    %v761 = vlaneseq
    %v762 = vshrl.u32 %v761, 7
    %v763 = vsub.s32 %v760, %v762
    %v764 = vrot.slane %v757, %v763
    %v765 = vcombine.low %v687, %v688
    %v767 = vunpack.c.l.s4 1983009808
    %v768 = vunpack.c.0.s8 %v767
    %v769 = vlaneseq
    %v770 = vshrl.u32 %v769, 7
    %v771 = vsub.s32 %v768, %v770
    %v772 = vrot.slane %v765, %v771
    %v773 = vcombine.low %v764, %v772
    %v775 = vunpack.c.l.s4 1934713408
    %v776 = vunpack.c.0.s8 %v775
    %v777 = vlaneseq
    %v778 = vshrl.u32 %v777, 7
    %v779 = vsub.s32 %v776, %v778
    %v780 = vrot.slane %v773, %v779
    %v781 = vcombine.high %v780, 0
    %v782 = vcombine.low %v729, %v736
    %v784 = vunpack.c.l.s4 1983009808
    %v785 = vunpack.c.0.s8 %v784
    %v786 = vlaneseq
    %v787 = vshrl.u32 %v786, 7
    %v788 = vsub.s32 %v785, %v787
    %v789 = vrot.slane %v782, %v788
    %v790 = vcombine.low %v753, %v754
    %v792 = vunpack.c.l.s4 1983009808
    %v793 = vunpack.c.0.s8 %v792
    %v794 = vlaneseq
    %v795 = vshrl.u32 %v794, 7
    %v796 = vsub.s32 %v793, %v795
    %v797 = vrot.slane %v790, %v796
    %v798 = vcombine.low %v789, %v797
    %v800 = vunpack.c.l.s4 1934713408
    %v801 = vunpack.c.0.s8 %v800
    %v802 = vlaneseq
    %v803 = vshrl.u32 %v802, 7
    %v804 = vsub.s32 %v801, %v803
    %v805 = vrot.slane %v798, %v804
    %v806 = vcombine.high %v805, 0
    %v807 = vcombine.low %v679, %v686
    %v809 = vunpack.c.l.s4 1983009808
    %v810 = vunpack.c.0.s8 %v809
    %v811 = vlaneseq
    %v812 = vshrl.u32 %v811, 7
    %v813 = vsub.s32 %v810, %v812
    %v814 = vrot.slane %v807, %v813
    %v815 = vcombine.low %v689, %v690
    %v817 = vunpack.c.l.s4 1983009808
    %v818 = vunpack.c.0.s8 %v817
    %v819 = vlaneseq
    %v820 = vshrl.u32 %v819, 7
    %v821 = vsub.s32 %v818, %v820
    %v822 = vrot.slane %v815, %v821
    %v823 = vcombine.low %v814, %v822
    %v825 = vunpack.c.l.s4 1934713408
    %v826 = vunpack.c.0.s8 %v825
    %v827 = vlaneseq
    %v828 = vshrl.u32 %v827, 7
    %v829 = vsub.s32 %v826, %v828
    %v830 = vrot.slane %v823, %v829
    %v831 = vcombine.high %v830, 0
    %v832 = vcombine.low %v745, %v752
    %v834 = vunpack.c.l.s4 1983009808
    %v835 = vunpack.c.0.s8 %v834
    %v836 = vlaneseq
    %v837 = vshrl.u32 %v836, 7
    %v838 = vsub.s32 %v835, %v837
    %v839 = vrot.slane %v832, %v838
    %v840 = vcombine.low %v755, %v756
    %v842 = vunpack.c.l.s4 1983009808
    %v843 = vunpack.c.0.s8 %v842
    %v844 = vlaneseq
    %v845 = vshrl.u32 %v844, 7
    %v846 = vsub.s32 %v843, %v845
    %v847 = vrot.slane %v840, %v846
    %v848 = vcombine.low %v839, %v847
    %v850 = vunpack.c.l.s4 1934713408
    %v851 = vunpack.c.0.s8 %v850
    %v852 = vlaneseq
    %v853 = vshrl.u32 %v852, 7
    %v854 = vsub.s32 %v851, %v853
    %v855 = vrot.slane %v848, %v854
    %v856 = vcombine.high %v855, 0
    %v859 = vpack.i.b16 %v805, %v780
    %v860 = vshrl.u32 %v780, 16
    %v861 = vshrl.u32 %v805, 16
    %v862 = vpack.i.b16 %v861, %v860
    %v865 = vpack.i.b16 %v806, %v781
    %v866 = vshrl.u32 %v781, 16
    %v867 = vshrl.u32 %v806, 16
    %v868 = vpack.i.b16 %v867, %v866
    %v871 = vpack.i.b16 %v855, %v830
    %v872 = vshrl.u32 %v830, 16
    %v873 = vshrl.u32 %v855, 16
    %v874 = vpack.i.b16 %v873, %v872
    %v877 = vpack.i.b16 %v856, %v831
    %v878 = vshrl.u32 %v831, 16
    %v879 = vshrl.u32 %v856, 16
    %v880 = vpack.i.b16 %v879, %v878
    %v881 = vpack.c.bf16 %v312, %v309
    %883 = vrot.lane.b32.xlu0 %v881, 120
    %v884 = vpop.permute.xlu0 %883
    %885 = vrot.lane.b32.xlu0 %v881, 112
    %v886 = vpop.permute.xlu0 %885
    %887 = vrot.lane.b32.xlu0 %v881, 104
    %v888 = vpop.permute.xlu0 %887
    %v891 = vpack.i.b16 %v884, %v881
    %v893 = vshrl.u32 %v881, 16
    %v894 = vshrl.u32 %v884, 16
    %v895 = vpack.i.b16 %v894, %v893
    %v899 = vpack.i.b16 %v888, %v886
    %v901 = vshrl.u32 %v886, 16
    %v902 = vshrl.u32 %v888, 16
    %v903 = vpack.i.b16 %v902, %v901
    %v905 = vcombine.high %v891, %v340
    %v907 = vunpack.c.l.s4 1983009808
    %v908 = vunpack.c.0.s8 %v907
    %v909 = vlaneseq
    %v910 = vshrl.u32 %v909, 7
    %v911 = vsub.s32 %v908, %v910
    %v912 = vrot.slane %v891, %v911
    %v914 = vunpack.c.l.s4 1983009808
    %v915 = vunpack.c.0.s8 %v914
    %v916 = vlaneseq
    %v917 = vshrl.u32 %v916, 7
    %v918 = vsub.s32 %v915, %v917
    %v919 = vrot.slane %v905, %v918
    %v920 = vcombine.high %v899, %v340
    %v922 = vunpack.c.l.s4 1983009808
    %v923 = vunpack.c.0.s8 %v922
    %v924 = vlaneseq
    %v925 = vshrl.u32 %v924, 7
    %v926 = vsub.s32 %v923, %v925
    %v927 = vrot.slane %v899, %v926
    %v929 = vunpack.c.l.s4 1983009808
    %v930 = vunpack.c.0.s8 %v929
    %v931 = vlaneseq
    %v932 = vshrl.u32 %v931, 7
    %v933 = vsub.s32 %v930, %v932
    %v934 = vrot.slane %v920, %v933
    %v935 = vcombine.low %v912, %v927
    %v936 = vcombine.high %v912, %v927
    %v938 = vunpack.c.l.s4 1934713408
    %v939 = vunpack.c.0.s8 %v938
    %v940 = vlaneseq
    %v941 = vshrl.u32 %v940, 7
    %v942 = vsub.s32 %v939, %v941
    %v943 = vrot.slane %v935, %v942
    %v945 = vunpack.c.l.s4 1934713408
    %v946 = vunpack.c.0.s8 %v945
    %v947 = vlaneseq
    %v948 = vshrl.u32 %v947, 7
    %v949 = vsub.s32 %v946, %v948
    %v950 = vrot.slane %v936, %v949
    %v951 = vcombine.low %v919, %v934
    %v952 = vcombine.high %v919, %v934
    %v954 = vunpack.c.l.s4 1934713408
    %v955 = vunpack.c.0.s8 %v954
    %v956 = vlaneseq
    %v957 = vshrl.u32 %v956, 7
    %v958 = vsub.s32 %v955, %v957
    %v959 = vrot.slane %v951, %v958
    %v961 = vunpack.c.l.s4 1934713408
    %v962 = vunpack.c.0.s8 %v961
    %v963 = vlaneseq
    %v964 = vshrl.u32 %v963, 7
    %v965 = vsub.s32 %v962, %v964
    %v966 = vrot.slane %v952, %v965
    %v967 = vcombine.high %v943, 0
    %v968 = vcombine.high %v950, 0
    %v969 = vcombine.high %v959, 0
    %v970 = vcombine.high %v966, 0
    %v971 = vcombine.high %v895, %v343
    %v973 = vunpack.c.l.s4 1983009808
    %v974 = vunpack.c.0.s8 %v973
    %v975 = vlaneseq
    %v976 = vshrl.u32 %v975, 7
    %v977 = vsub.s32 %v974, %v976
    %v978 = vrot.slane %v895, %v977
    %v980 = vunpack.c.l.s4 1983009808
    %v981 = vunpack.c.0.s8 %v980
    %v982 = vlaneseq
    %v983 = vshrl.u32 %v982, 7
    %v984 = vsub.s32 %v981, %v983
    %v985 = vrot.slane %v971, %v984
    %v986 = vcombine.high %v903, %v343
    %v988 = vunpack.c.l.s4 1983009808
    %v989 = vunpack.c.0.s8 %v988
    %v990 = vlaneseq
    %v991 = vshrl.u32 %v990, 7
    %v992 = vsub.s32 %v989, %v991
    %v993 = vrot.slane %v903, %v992
    %v995 = vunpack.c.l.s4 1983009808
    %v996 = vunpack.c.0.s8 %v995
    %v997 = vlaneseq
    %v998 = vshrl.u32 %v997, 7
    %v999 = vsub.s32 %v996, %v998
    %v1000 = vrot.slane %v986, %v999
    %v1001 = vcombine.low %v978, %v993
    %v1002 = vcombine.high %v978, %v993
    %v1004 = vunpack.c.l.s4 1934713408
    %v1005 = vunpack.c.0.s8 %v1004
    %v1006 = vlaneseq
    %v1007 = vshrl.u32 %v1006, 7
    %v1008 = vsub.s32 %v1005, %v1007
    %v1009 = vrot.slane %v1001, %v1008
    %v1011 = vunpack.c.l.s4 1934713408
    %v1012 = vunpack.c.0.s8 %v1011
    %v1013 = vlaneseq
    %v1014 = vshrl.u32 %v1013, 7
    %v1015 = vsub.s32 %v1012, %v1014
    %v1016 = vrot.slane %v1002, %v1015
    %v1017 = vcombine.low %v985, %v1000
    %v1018 = vcombine.high %v985, %v1000
    %v1020 = vunpack.c.l.s4 1934713408
    %v1021 = vunpack.c.0.s8 %v1020
    %v1022 = vlaneseq
    %v1023 = vshrl.u32 %v1022, 7
    %v1024 = vsub.s32 %v1021, %v1023
    %v1025 = vrot.slane %v1017, %v1024
    %v1027 = vunpack.c.l.s4 1934713408
    %v1028 = vunpack.c.0.s8 %v1027
    %v1029 = vlaneseq
    %v1030 = vshrl.u32 %v1029, 7
    %v1031 = vsub.s32 %v1028, %v1030
    %v1032 = vrot.slane %v1018, %v1031
    %v1033 = vcombine.high %v1009, 0
    %v1034 = vcombine.high %v1016, 0
    %v1035 = vcombine.high %v1025, 0
    %v1036 = vcombine.high %v1032, 0
    %v1037 = vcombine.low %v943, %v950
    %v1039 = vunpack.c.l.s4 1983009808
    %v1040 = vunpack.c.0.s8 %v1039
    %v1041 = vlaneseq
    %v1042 = vshrl.u32 %v1041, 7
    %v1043 = vsub.s32 %v1040, %v1042
    %v1044 = vrot.slane %v1037, %v1043
    %v1045 = vcombine.low %v967, %v968
    %v1047 = vunpack.c.l.s4 1983009808
    %v1048 = vunpack.c.0.s8 %v1047
    %v1049 = vlaneseq
    %v1050 = vshrl.u32 %v1049, 7
    %v1051 = vsub.s32 %v1048, %v1050
    %v1052 = vrot.slane %v1045, %v1051
    %v1053 = vcombine.low %v1044, %v1052
    %v1055 = vunpack.c.l.s4 1934713408
    %v1056 = vunpack.c.0.s8 %v1055
    %v1057 = vlaneseq
    %v1058 = vshrl.u32 %v1057, 7
    %v1059 = vsub.s32 %v1056, %v1058
    %v1060 = vrot.slane %v1053, %v1059
    %v1061 = vcombine.high %v1060, 0
    %v1062 = vcombine.low %v1009, %v1016
    %v1064 = vunpack.c.l.s4 1983009808
    %v1065 = vunpack.c.0.s8 %v1064
    %v1066 = vlaneseq
    %v1067 = vshrl.u32 %v1066, 7
    %v1068 = vsub.s32 %v1065, %v1067
    %v1069 = vrot.slane %v1062, %v1068
    %v1070 = vcombine.low %v1033, %v1034
    %v1072 = vunpack.c.l.s4 1983009808
    %v1073 = vunpack.c.0.s8 %v1072
    %v1074 = vlaneseq
    %v1075 = vshrl.u32 %v1074, 7
    %v1076 = vsub.s32 %v1073, %v1075
    %v1077 = vrot.slane %v1070, %v1076
    %v1078 = vcombine.low %v1069, %v1077
    %v1080 = vunpack.c.l.s4 1934713408
    %v1081 = vunpack.c.0.s8 %v1080
    %v1082 = vlaneseq
    %v1083 = vshrl.u32 %v1082, 7
    %v1084 = vsub.s32 %v1081, %v1083
    %v1085 = vrot.slane %v1078, %v1084
    %v1086 = vcombine.high %v1085, 0
    %v1087 = vcombine.low %v959, %v966
    %v1089 = vunpack.c.l.s4 1983009808
    %v1090 = vunpack.c.0.s8 %v1089
    %v1091 = vlaneseq
    %v1092 = vshrl.u32 %v1091, 7
    %v1093 = vsub.s32 %v1090, %v1092
    %v1094 = vrot.slane %v1087, %v1093
    %v1095 = vcombine.low %v969, %v970
    %v1097 = vunpack.c.l.s4 1983009808
    %v1098 = vunpack.c.0.s8 %v1097
    %v1099 = vlaneseq
    %v1100 = vshrl.u32 %v1099, 7
    %v1101 = vsub.s32 %v1098, %v1100
    %v1102 = vrot.slane %v1095, %v1101
    %v1103 = vcombine.low %v1094, %v1102
    %v1105 = vunpack.c.l.s4 1934713408
    %v1106 = vunpack.c.0.s8 %v1105
    %v1107 = vlaneseq
    %v1108 = vshrl.u32 %v1107, 7
    %v1109 = vsub.s32 %v1106, %v1108
    %v1110 = vrot.slane %v1103, %v1109
    %v1111 = vcombine.high %v1110, 0
    %v1112 = vcombine.low %v1025, %v1032
    %v1114 = vunpack.c.l.s4 1983009808
    %v1115 = vunpack.c.0.s8 %v1114
    %v1116 = vlaneseq
    %v1117 = vshrl.u32 %v1116, 7
    %v1118 = vsub.s32 %v1115, %v1117
    %v1119 = vrot.slane %v1112, %v1118
    %v1120 = vcombine.low %v1035, %v1036
    %v1122 = vunpack.c.l.s4 1983009808
    %v1123 = vunpack.c.0.s8 %v1122
    %v1124 = vlaneseq
    %v1125 = vshrl.u32 %v1124, 7
    %v1126 = vsub.s32 %v1123, %v1125
    %v1127 = vrot.slane %v1120, %v1126
    %v1128 = vcombine.low %v1119, %v1127
    %v1130 = vunpack.c.l.s4 1934713408
    %v1131 = vunpack.c.0.s8 %v1130
    %v1132 = vlaneseq
    %v1133 = vshrl.u32 %v1132, 7
    %v1134 = vsub.s32 %v1131, %v1133
    %v1135 = vrot.slane %v1128, %v1134
    %v1136 = vcombine.high %v1135, 0
    %v1139 = vpack.i.b16 %v1085, %v1060
    %v1140 = vshrl.u32 %v1060, 16
    %v1141 = vshrl.u32 %v1085, 16
    %v1142 = vpack.i.b16 %v1141, %v1140
    %v1145 = vpack.i.b16 %v1086, %v1061
    %v1146 = vshrl.u32 %v1061, 16
    %v1147 = vshrl.u32 %v1086, 16
    %v1148 = vpack.i.b16 %v1147, %v1146
    %v1151 = vpack.i.b16 %v1135, %v1110
    %v1152 = vshrl.u32 %v1110, 16
    %v1153 = vshrl.u32 %v1135, 16
    %v1154 = vpack.i.b16 %v1153, %v1152
    %v1157 = vpack.i.b16 %v1136, %v1111
    %v1158 = vshrl.u32 %v1111, 16
    %v1159 = vshrl.u32 %v1136, 16
    %v1160 = vpack.i.b16 %v1159, %v1158
    %vm1161 = vcmask 64512
    %v1163 = vsel %vm1161, %v579, 0
    %v1166 = vsel %vm1161, %v859, 0
    %1168 = vmatprep.subr.bf16.mxu0 0
    %1169 = vmatpush1.bf16.xpose.msra.mxu0 0
    %1170 = vmatprep.subr.bf16.mxu0 0
    %1171 = vmatpush1.bf16.xpose.msra.mxu0 0
    %1172 = vmatprep.subr.bf16.mxu0 0
    %1173 = vmatpush1.bf16.xpose.msra.mxu0 0
    %1174 = vmatprep.subr.bf16.mxu0 0
    %1175 = vmatpush1.bf16.xpose.msra.mxu0 0
    %1176 = vmatprep.subr.bf16.mxu0 0
    %1177 = vmatpush1.bf16.xpose.msra.mxu0 0
    %1178 = vmatprep.subr.bf16.mxu0 0
    %1179 = vmatpush1.bf16.xpose.msra.mxu0 0
    %1180 = vmatprep.subr.bf16.mxu0 0
    %1181 = vmatpush1.bf16.xpose.msra.mxu0 0
    %1182 = vmatprep.subr.bf16.mxu0 0
    %1183 = vmatpush1.bf16.xpose.msra.mxu0 %v1166
    %1184 = vmatprep.subr.bf16.mxu0 0
    %1185 = vmatpush2.bf16.xpose.msra.mxu0 0
    %1186 = vmatprep.subr.bf16.mxu0 0
    %1187 = vmatpush2.bf16.xpose.msra.mxu0 0
    %1188 = vmatprep.subr.bf16.mxu0 0
    %1189 = vmatpush2.bf16.xpose.msra.mxu0 0
    %1190 = vmatprep.subr.bf16.mxu0 0
    %1191 = vmatpush2.bf16.xpose.msra.mxu0 0
    %1192 = vmatprep.subr.bf16.mxu0 0
    %1193 = vmatpush2.bf16.xpose.msra.mxu0 0
    %1194 = vmatprep.subr.bf16.mxu0 0
    %1195 = vmatpush2.bf16.xpose.msra.mxu0 0
    %1196 = vmatprep.subr.bf16.mxu0 0
    %1197 = vmatpush2.bf16.xpose.msra.mxu0 0
    %1198 = vmatprep.subr.bf16.mxu0 0
    %1199 = vmatpush2.bf16.xpose.msra.mxu0 0
    %1200 = vmatprep.mubr.bf16.mxu0 0
    %1201 = vmatmul.mubr.bf16.gmra.mxu0 %v1163
    %v1202 = vpop.f32.mrf.mxu0
    %v1203 = vadd.f32 0.0, %v1202
    %v1204 = vpop.f32.mrf.mxu0
    %v1205 = vpop.f32.mrf.mxu0
    %v1206 = vpop.f32.mrf.mxu0
    %1207 = vdwg.mxu0
    %v1209 = vsel %vm1161, %v582, 0
    %v1212 = vsel %vm1161, %v862, 0
    %1214 = vmatprep.subr.bf16.mxu0 0
    %1215 = vmatpush1.bf16.xpose.msra.mxu0 0
    %1216 = vmatprep.subr.bf16.mxu0 0
    %1217 = vmatpush1.bf16.xpose.msra.mxu0 0
    %1218 = vmatprep.subr.bf16.mxu0 0
    %1219 = vmatpush1.bf16.xpose.msra.mxu0 0
    %1220 = vmatprep.subr.bf16.mxu0 0
    %1221 = vmatpush1.bf16.xpose.msra.mxu0 0
    %1222 = vmatprep.subr.bf16.mxu0 0
    %1223 = vmatpush1.bf16.xpose.msra.mxu0 0
    %1224 = vmatprep.subr.bf16.mxu0 0
    %1225 = vmatpush1.bf16.xpose.msra.mxu0 0
    %1226 = vmatprep.subr.bf16.mxu0 0
    %1227 = vmatpush1.bf16.xpose.msra.mxu0 0
    %1228 = vmatprep.subr.bf16.mxu0 0
    %1229 = vmatpush1.bf16.xpose.msra.mxu0 %v1212
    %1230 = vmatprep.subr.bf16.mxu0 0
    %1231 = vmatpush2.bf16.xpose.msra.mxu0 0
    %1232 = vmatprep.subr.bf16.mxu0 0
    %1233 = vmatpush2.bf16.xpose.msra.mxu0 0
    %1234 = vmatprep.subr.bf16.mxu0 0
    %1235 = vmatpush2.bf16.xpose.msra.mxu0 0
    %1236 = vmatprep.subr.bf16.mxu0 0
    %1237 = vmatpush2.bf16.xpose.msra.mxu0 0
    %1238 = vmatprep.subr.bf16.mxu0 0
    %1239 = vmatpush2.bf16.xpose.msra.mxu0 0
    %1240 = vmatprep.subr.bf16.mxu0 0
    %1241 = vmatpush2.bf16.xpose.msra.mxu0 0
    %1242 = vmatprep.subr.bf16.mxu0 0
    %1243 = vmatpush2.bf16.xpose.msra.mxu0 0
    %1244 = vmatprep.subr.bf16.mxu0 0
    %1245 = vmatpush2.bf16.xpose.msra.mxu0 0
    %1246 = vmatprep.mubr.bf16.mxu0 0
    %1247 = vmatmul.mubr.bf16.gmra.mxu0 %v1209
    %v1248 = vpop.f32.mrf.mxu0
    %v1249 = vadd.f32 0.0, %v1248
    %v1250 = vpop.f32.mrf.mxu0
    %v1251 = vpop.f32.mrf.mxu0
    %v1252 = vpop.f32.mrf.mxu0
    %1253 = vdwg.mxu0
    %v1255 = vsel %vm1161, %v585, 0
    %v1258 = vsel %vm1161, %v865, 0
    %1260 = vmatprep.subr.bf16.mxu0 0
    %1261 = vmatpush1.bf16.xpose.msra.mxu0 0
    %1262 = vmatprep.subr.bf16.mxu0 0
    %1263 = vmatpush1.bf16.xpose.msra.mxu0 0
    %1264 = vmatprep.subr.bf16.mxu0 0
    %1265 = vmatpush1.bf16.xpose.msra.mxu0 0
    %1266 = vmatprep.subr.bf16.mxu0 0
    %1267 = vmatpush1.bf16.xpose.msra.mxu0 0
    %1268 = vmatprep.subr.bf16.mxu0 0
    %1269 = vmatpush1.bf16.xpose.msra.mxu0 0
    %1270 = vmatprep.subr.bf16.mxu0 0
    %1271 = vmatpush1.bf16.xpose.msra.mxu0 0
    %1272 = vmatprep.subr.bf16.mxu0 0
    %1273 = vmatpush1.bf16.xpose.msra.mxu0 0
    %1274 = vmatprep.subr.bf16.mxu0 0
    %1275 = vmatpush1.bf16.xpose.msra.mxu0 %v1258
    %1276 = vmatprep.subr.bf16.mxu0 0
    %1277 = vmatpush2.bf16.xpose.msra.mxu0 0
    %1278 = vmatprep.subr.bf16.mxu0 0
    %1279 = vmatpush2.bf16.xpose.msra.mxu0 0
    %1280 = vmatprep.subr.bf16.mxu0 0
    %1281 = vmatpush2.bf16.xpose.msra.mxu0 0
    %1282 = vmatprep.subr.bf16.mxu0 0
    %1283 = vmatpush2.bf16.xpose.msra.mxu0 0
    %1284 = vmatprep.subr.bf16.mxu0 0
    %1285 = vmatpush2.bf16.xpose.msra.mxu0 0
    %1286 = vmatprep.subr.bf16.mxu0 0
    %1287 = vmatpush2.bf16.xpose.msra.mxu0 0
    %1288 = vmatprep.subr.bf16.mxu0 0
    %1289 = vmatpush2.bf16.xpose.msra.mxu0 0
    %1290 = vmatprep.subr.bf16.mxu0 0
    %1291 = vmatpush2.bf16.xpose.msra.mxu0 0
    %1292 = vmatprep.mubr.bf16.mxu0 0
    %1293 = vmatmul.mubr.bf16.gmra.mxu0 %v1255
    %v1294 = vpop.f32.mrf.mxu0
    %v1295 = vadd.f32 0.0, %v1294
    %v1296 = vpop.f32.mrf.mxu0
    %v1297 = vpop.f32.mrf.mxu0
    %v1298 = vpop.f32.mrf.mxu0
    %1299 = vdwg.mxu0
    %v1301 = vsel %vm1161, %v588, 0
    %v1304 = vsel %vm1161, %v868, 0
    %1306 = vmatprep.subr.bf16.mxu0 0
    %1307 = vmatpush1.bf16.xpose.msra.mxu0 0
    %1308 = vmatprep.subr.bf16.mxu0 0
    %1309 = vmatpush1.bf16.xpose.msra.mxu0 0
    %1310 = vmatprep.subr.bf16.mxu0 0
    %1311 = vmatpush1.bf16.xpose.msra.mxu0 0
    %1312 = vmatprep.subr.bf16.mxu0 0
    %1313 = vmatpush1.bf16.xpose.msra.mxu0 0
    %1314 = vmatprep.subr.bf16.mxu0 0
    %1315 = vmatpush1.bf16.xpose.msra.mxu0 0
    %1316 = vmatprep.subr.bf16.mxu0 0
    %1317 = vmatpush1.bf16.xpose.msra.mxu0 0
    %1318 = vmatprep.subr.bf16.mxu0 0
    %1319 = vmatpush1.bf16.xpose.msra.mxu0 0
    %1320 = vmatprep.subr.bf16.mxu0 0
    %1321 = vmatpush1.bf16.xpose.msra.mxu0 %v1304
    %1322 = vmatprep.subr.bf16.mxu0 0
    %1323 = vmatpush2.bf16.xpose.msra.mxu0 0
    %1324 = vmatprep.subr.bf16.mxu0 0
    %1325 = vmatpush2.bf16.xpose.msra.mxu0 0
    %1326 = vmatprep.subr.bf16.mxu0 0
    %1327 = vmatpush2.bf16.xpose.msra.mxu0 0
    %1328 = vmatprep.subr.bf16.mxu0 0
    %1329 = vmatpush2.bf16.xpose.msra.mxu0 0
    %1330 = vmatprep.subr.bf16.mxu0 0
    %1331 = vmatpush2.bf16.xpose.msra.mxu0 0
    %1332 = vmatprep.subr.bf16.mxu0 0
    %1333 = vmatpush2.bf16.xpose.msra.mxu0 0
    %1334 = vmatprep.subr.bf16.mxu0 0
    %1335 = vmatpush2.bf16.xpose.msra.mxu0 0
    %1336 = vmatprep.subr.bf16.mxu0 0
    %1337 = vmatpush2.bf16.xpose.msra.mxu0 0
    %1338 = vmatprep.mubr.bf16.mxu0 0
    %1339 = vmatmul.mubr.bf16.gmra.mxu0 %v1301
    %v1340 = vpop.f32.mrf.mxu0
    %v1341 = vadd.f32 0.0, %v1340
    %v1342 = vpop.f32.mrf.mxu0
    %v1343 = vpop.f32.mrf.mxu0
    %v1344 = vpop.f32.mrf.mxu0
    %1345 = vdwg.mxu0
    %v1347 = vsel %vm1161, %v591, 0
    %v1350 = vsel %vm1161, %v871, 0
    %1352 = vmatprep.subr.bf16.mxu0 0
    %1353 = vmatpush1.bf16.xpose.msra.mxu0 0
    %1354 = vmatprep.subr.bf16.mxu0 0
    %1355 = vmatpush1.bf16.xpose.msra.mxu0 0
    %1356 = vmatprep.subr.bf16.mxu0 0
    %1357 = vmatpush1.bf16.xpose.msra.mxu0 0
    %1358 = vmatprep.subr.bf16.mxu0 0
    %1359 = vmatpush1.bf16.xpose.msra.mxu0 0
    %1360 = vmatprep.subr.bf16.mxu0 0
    %1361 = vmatpush1.bf16.xpose.msra.mxu0 0
    %1362 = vmatprep.subr.bf16.mxu0 0
    %1363 = vmatpush1.bf16.xpose.msra.mxu0 0
    %1364 = vmatprep.subr.bf16.mxu0 0
    %1365 = vmatpush1.bf16.xpose.msra.mxu0 0
    %1366 = vmatprep.subr.bf16.mxu0 0
    %1367 = vmatpush1.bf16.xpose.msra.mxu0 %v1350
    %1368 = vmatprep.subr.bf16.mxu0 0
    %1369 = vmatpush2.bf16.xpose.msra.mxu0 0
    %1370 = vmatprep.subr.bf16.mxu0 0
    %1371 = vmatpush2.bf16.xpose.msra.mxu0 0
    %1372 = vmatprep.subr.bf16.mxu0 0
    %1373 = vmatpush2.bf16.xpose.msra.mxu0 0
    %1374 = vmatprep.subr.bf16.mxu0 0
    %1375 = vmatpush2.bf16.xpose.msra.mxu0 0
    %1376 = vmatprep.subr.bf16.mxu0 0
    %1377 = vmatpush2.bf16.xpose.msra.mxu0 0
    %1378 = vmatprep.subr.bf16.mxu0 0
    %1379 = vmatpush2.bf16.xpose.msra.mxu0 0
    %1380 = vmatprep.subr.bf16.mxu0 0
    %1381 = vmatpush2.bf16.xpose.msra.mxu0 0
    %1382 = vmatprep.subr.bf16.mxu0 0
    %1383 = vmatpush2.bf16.xpose.msra.mxu0 0
    %1384 = vmatprep.mubr.bf16.mxu0 0
    %1385 = vmatmul.mubr.bf16.gmra.mxu0 %v1347
    %v1386 = vpop.f32.mrf.mxu0
    %v1387 = vadd.f32 0.0, %v1386
    %v1388 = vpop.f32.mrf.mxu0
    %v1389 = vpop.f32.mrf.mxu0
    %v1390 = vpop.f32.mrf.mxu0
    %1391 = vdwg.mxu0
    %v1393 = vsel %vm1161, %v594, 0
    %v1396 = vsel %vm1161, %v874, 0
    %1398 = vmatprep.subr.bf16.mxu0 0
    %1399 = vmatpush1.bf16.xpose.msra.mxu0 0
    %1400 = vmatprep.subr.bf16.mxu0 0
    %1401 = vmatpush1.bf16.xpose.msra.mxu0 0
    %1402 = vmatprep.subr.bf16.mxu0 0
    %1403 = vmatpush1.bf16.xpose.msra.mxu0 0
    %1404 = vmatprep.subr.bf16.mxu0 0
    %1405 = vmatpush1.bf16.xpose.msra.mxu0 0
    %1406 = vmatprep.subr.bf16.mxu0 0
    %1407 = vmatpush1.bf16.xpose.msra.mxu0 0
    %1408 = vmatprep.subr.bf16.mxu0 0
    %1409 = vmatpush1.bf16.xpose.msra.mxu0 0
    %1410 = vmatprep.subr.bf16.mxu0 0
    %1411 = vmatpush1.bf16.xpose.msra.mxu0 0
    %1412 = vmatprep.subr.bf16.mxu0 0
    %1413 = vmatpush1.bf16.xpose.msra.mxu0 %v1396
    %1414 = vmatprep.subr.bf16.mxu0 0
    %1415 = vmatpush2.bf16.xpose.msra.mxu0 0
    %1416 = vmatprep.subr.bf16.mxu0 0
    %1417 = vmatpush2.bf16.xpose.msra.mxu0 0
    %1418 = vmatprep.subr.bf16.mxu0 0
    %1419 = vmatpush2.bf16.xpose.msra.mxu0 0
    %1420 = vmatprep.subr.bf16.mxu0 0
    %1421 = vmatpush2.bf16.xpose.msra.mxu0 0
    %1422 = vmatprep.subr.bf16.mxu0 0
    %1423 = vmatpush2.bf16.xpose.msra.mxu0 0
    %1424 = vmatprep.subr.bf16.mxu0 0
    %1425 = vmatpush2.bf16.xpose.msra.mxu0 0
    %1426 = vmatprep.subr.bf16.mxu0 0
    %1427 = vmatpush2.bf16.xpose.msra.mxu0 0
    %1428 = vmatprep.subr.bf16.mxu0 0
    %1429 = vmatpush2.bf16.xpose.msra.mxu0 0
    %1430 = vmatprep.mubr.bf16.mxu0 0
    %1431 = vmatmul.mubr.bf16.gmra.mxu0 %v1393
    %v1432 = vpop.f32.mrf.mxu0
    %v1433 = vadd.f32 0.0, %v1432
    %v1434 = vpop.f32.mrf.mxu0
    %v1435 = vpop.f32.mrf.mxu0
    %v1436 = vpop.f32.mrf.mxu0
    %1437 = vdwg.mxu0
    %v1439 = vsel %vm1161, %v597, 0
    %v1442 = vsel %vm1161, %v877, 0
    %1444 = vmatprep.subr.bf16.mxu0 0
    %1445 = vmatpush1.bf16.xpose.msra.mxu0 0
    %1446 = vmatprep.subr.bf16.mxu0 0
    %1447 = vmatpush1.bf16.xpose.msra.mxu0 0
    %1448 = vmatprep.subr.bf16.mxu0 0
    %1449 = vmatpush1.bf16.xpose.msra.mxu0 0
    %1450 = vmatprep.subr.bf16.mxu0 0
    %1451 = vmatpush1.bf16.xpose.msra.mxu0 0
    %1452 = vmatprep.subr.bf16.mxu0 0
    %1453 = vmatpush1.bf16.xpose.msra.mxu0 0
    %1454 = vmatprep.subr.bf16.mxu0 0
    %1455 = vmatpush1.bf16.xpose.msra.mxu0 0
    %1456 = vmatprep.subr.bf16.mxu0 0
    %1457 = vmatpush1.bf16.xpose.msra.mxu0 0
    %1458 = vmatprep.subr.bf16.mxu0 0
    %1459 = vmatpush1.bf16.xpose.msra.mxu0 %v1442
    %1460 = vmatprep.subr.bf16.mxu0 0
    %1461 = vmatpush2.bf16.xpose.msra.mxu0 0
    %1462 = vmatprep.subr.bf16.mxu0 0
    %1463 = vmatpush2.bf16.xpose.msra.mxu0 0
    %1464 = vmatprep.subr.bf16.mxu0 0
    %1465 = vmatpush2.bf16.xpose.msra.mxu0 0
    %1466 = vmatprep.subr.bf16.mxu0 0
    %1467 = vmatpush2.bf16.xpose.msra.mxu0 0
    %1468 = vmatprep.subr.bf16.mxu0 0
    %1469 = vmatpush2.bf16.xpose.msra.mxu0 0
    %1470 = vmatprep.subr.bf16.mxu0 0
    %1471 = vmatpush2.bf16.xpose.msra.mxu0 0
    %1472 = vmatprep.subr.bf16.mxu0 0
    %1473 = vmatpush2.bf16.xpose.msra.mxu0 0
    %1474 = vmatprep.subr.bf16.mxu0 0
    %1475 = vmatpush2.bf16.xpose.msra.mxu0 0
    %1476 = vmatprep.mubr.bf16.mxu0 0
    %1477 = vmatmul.mubr.bf16.gmra.mxu0 %v1439
    %v1478 = vpop.f32.mrf.mxu0
    %v1479 = vadd.f32 0.0, %v1478
    %v1480 = vpop.f32.mrf.mxu0
    %v1481 = vpop.f32.mrf.mxu0
    %v1482 = vpop.f32.mrf.mxu0
    %1483 = vdwg.mxu0
    %v1485 = vsel %vm1161, %v600, 0
    %v1488 = vsel %vm1161, %v880, 0
    %1490 = vmatprep.subr.bf16.mxu0 0
    %1491 = vmatpush1.bf16.xpose.msra.mxu0 0
    %1492 = vmatprep.subr.bf16.mxu0 0
    %1493 = vmatpush1.bf16.xpose.msra.mxu0 0
    %1494 = vmatprep.subr.bf16.mxu0 0
    %1495 = vmatpush1.bf16.xpose.msra.mxu0 0
    %1496 = vmatprep.subr.bf16.mxu0 0
    %1497 = vmatpush1.bf16.xpose.msra.mxu0 0
    %1498 = vmatprep.subr.bf16.mxu0 0
    %1499 = vmatpush1.bf16.xpose.msra.mxu0 0
    %1500 = vmatprep.subr.bf16.mxu0 0
    %1501 = vmatpush1.bf16.xpose.msra.mxu0 0
    %1502 = vmatprep.subr.bf16.mxu0 0
    %1503 = vmatpush1.bf16.xpose.msra.mxu0 0
    %1504 = vmatprep.subr.bf16.mxu0 0
    %1505 = vmatpush1.bf16.xpose.msra.mxu0 %v1488
    %1506 = vmatprep.subr.bf16.mxu0 0
    %1507 = vmatpush2.bf16.xpose.msra.mxu0 0
    %1508 = vmatprep.subr.bf16.mxu0 0
    %1509 = vmatpush2.bf16.xpose.msra.mxu0 0
    %1510 = vmatprep.subr.bf16.mxu0 0
    %1511 = vmatpush2.bf16.xpose.msra.mxu0 0
    %1512 = vmatprep.subr.bf16.mxu0 0
    %1513 = vmatpush2.bf16.xpose.msra.mxu0 0
    %1514 = vmatprep.subr.bf16.mxu0 0
    %1515 = vmatpush2.bf16.xpose.msra.mxu0 0
    %1516 = vmatprep.subr.bf16.mxu0 0
    %1517 = vmatpush2.bf16.xpose.msra.mxu0 0
    %1518 = vmatprep.subr.bf16.mxu0 0
    %1519 = vmatpush2.bf16.xpose.msra.mxu0 0
    %1520 = vmatprep.subr.bf16.mxu0 0
    %1521 = vmatpush2.bf16.xpose.msra.mxu0 0
    %1522 = vmatprep.mubr.bf16.mxu0 0
    %1523 = vmatmul.mubr.bf16.gmra.mxu0 %v1485
    %v1524 = vpop.f32.mrf.mxu0
    %v1525 = vadd.f32 0.0, %v1524
    %v1526 = vpop.f32.mrf.mxu0
    %v1527 = vpop.f32.mrf.mxu0
    %v1528 = vpop.f32.mrf.mxu0
    %1529 = vdwg.mxu0
    %v1530 = vsel %vm1161, %v1203, -inf
    %1531 = vmax.xlane.f32.xlu0 %v1530
    %v1532 = vpop.xlane.xlu0 %1531
    %v1533 = vsel %vm1161, %v1249, -inf
    %1534 = vmax.xlane.f32.xlu0 %v1533
    %v1535 = vpop.xlane.xlu0 %1534
    %v1536 = vsel %vm1161, %v1295, -inf
    %1537 = vmax.xlane.f32.xlu0 %v1536
    %v1538 = vpop.xlane.xlu0 %1537
    %v1539 = vsel %vm1161, %v1341, -inf
    %1540 = vmax.xlane.f32.xlu0 %v1539
    %v1541 = vpop.xlane.xlu0 %1540
    %v1542 = vsel %vm1161, %v1387, -inf
    %1543 = vmax.xlane.f32.xlu0 %v1542
    %v1544 = vpop.xlane.xlu0 %1543
    %v1545 = vsel %vm1161, %v1433, -inf
    %1546 = vmax.xlane.f32.xlu0 %v1545
    %v1547 = vpop.xlane.xlu0 %1546
    %v1548 = vsel %vm1161, %v1479, -inf
    %1549 = vmax.xlane.f32.xlu0 %v1548
    %v1550 = vpop.xlane.xlu0 %1549
    %v1551 = vsel %vm1161, %v1525, -inf
    %1552 = vmax.xlane.f32.xlu0 %v1551
    %v1553 = vpop.xlane.xlu0 %1552
    %v1554 = vsub.f32 %v1203, %v1532
    %v1555 = vsub.f32 %v1249, %v1535
    %v1556 = vsub.f32 %v1295, %v1538
    %v1557 = vsub.f32 %v1341, %v1541
    %v1558 = vsub.f32 %v1387, %v1544
    %v1559 = vsub.f32 %v1433, %v1547
    %v1560 = vsub.f32 %v1479, %v1550
    %v1561 = vsub.f32 %v1525, %v1553
    %v1562 = vmul.f32 %v1554, 1.442695
    %v1563 = vpow.pop %v1562
    %v1564 = vmul.f32 %v1555, 1.442695
    %v1565 = vpow.pop %v1564
    %v1566 = vmul.f32 %v1556, 1.442695
    %v1567 = vpow.pop %v1566
    %v1568 = vmul.f32 %v1557, 1.442695
    %v1569 = vpow.pop %v1568
    %v1570 = vmul.f32 %v1558, 1.442695
    %v1571 = vpow.pop %v1570
    %v1572 = vmul.f32 %v1559, 1.442695
    %v1573 = vpow.pop %v1572
    %v1574 = vmul.f32 %v1560, 1.442695
    %v1575 = vpow.pop %v1574
    %v1576 = vmul.f32 %v1561, 1.442695
    %v1577 = vpow.pop %v1576
    %v1578 = vsel %vm1161, %v1563, 0.0
    %1579 = vadd.xlane.f32.xlu0 %v1578
    %v1580 = vpop.xlane.xlu0 %1579
    %v1581 = vsel %vm1161, %v1565, 0.0
    %1582 = vadd.xlane.f32.xlu0 %v1581
    %v1583 = vpop.xlane.xlu0 %1582
    %v1584 = vsel %vm1161, %v1567, 0.0
    %1585 = vadd.xlane.f32.xlu0 %v1584
    %v1586 = vpop.xlane.xlu0 %1585
    %v1587 = vsel %vm1161, %v1569, 0.0
    %1588 = vadd.xlane.f32.xlu0 %v1587
    %v1589 = vpop.xlane.xlu0 %1588
    %v1590 = vsel %vm1161, %v1571, 0.0
    %1591 = vadd.xlane.f32.xlu0 %v1590
    %v1592 = vpop.xlane.xlu0 %1591
    %v1593 = vsel %vm1161, %v1573, 0.0
    %1594 = vadd.xlane.f32.xlu0 %v1593
    %v1595 = vpop.xlane.xlu0 %1594
    %v1596 = vsel %vm1161, %v1575, 0.0
    %1597 = vadd.xlane.f32.xlu0 %v1596
    %v1598 = vpop.xlane.xlu0 %1597
    %v1599 = vsel %vm1161, %v1577, 0.0
    %1600 = vadd.xlane.f32.xlu0 %v1599
    %v1601 = vpop.xlane.xlu0 %1600
    %v1602 = vpack.c.bf16 %v1563, %v1563
    %v1603 = vpack.c.bf16 %v1565, %v1565
    %v1604 = vpack.c.bf16 %v1567, %v1567
    %v1605 = vpack.c.bf16 %v1569, %v1569
    %v1606 = vpack.c.bf16 %v1571, %v1571
    %v1607 = vpack.c.bf16 %v1573, %v1573
    %v1608 = vpack.c.bf16 %v1575, %v1575
    %v1609 = vpack.c.bf16 %v1577, %v1577
    %v1611 = vsel %vm1161, %v1602, 0
    %vm1613 = vcmask 1043456
    %v1615 = vsel %vm1613, %v1139, 0
    %1617 = vmatprep.subr.bf16.mxu0 0
    %1618 = vmatpush1.bf16.msra.mxu0 0
    %1619 = vmatprep.subr.bf16.mxu0 0
    %1620 = vmatpush1.bf16.msra.mxu0 0
    %1621 = vmatprep.subr.bf16.mxu0 0
    %1622 = vmatpush1.bf16.msra.mxu0 0
    %1623 = vmatprep.subr.bf16.mxu0 0
    %1624 = vmatpush1.bf16.msra.mxu0 0
    %1625 = vmatprep.subr.bf16.mxu0 0
    %1626 = vmatpush1.bf16.msra.mxu0 0
    %1627 = vmatprep.subr.bf16.mxu0 0
    %1628 = vmatpush1.bf16.msra.mxu0 0
    %1629 = vmatprep.subr.bf16.mxu0 0
    %1630 = vmatpush1.bf16.msra.mxu0 0
    %1631 = vmatprep.subr.bf16.mxu0 0
    %1632 = vmatpush1.bf16.msra.mxu0 %v1615
    %1633 = vmatprep.subr.bf16.mxu0 0
    %1634 = vmatpush2.bf16.msra.mxu0 0
    %1635 = vmatprep.subr.bf16.mxu0 0
    %1636 = vmatpush2.bf16.msra.mxu0 0
    %1637 = vmatprep.subr.bf16.mxu0 0
    %1638 = vmatpush2.bf16.msra.mxu0 0
    %1639 = vmatprep.subr.bf16.mxu0 0
    %1640 = vmatpush2.bf16.msra.mxu0 0
    %1641 = vmatprep.subr.bf16.mxu0 0
    %1642 = vmatpush2.bf16.msra.mxu0 0
    %1643 = vmatprep.subr.bf16.mxu0 0
    %1644 = vmatpush2.bf16.msra.mxu0 0
    %1645 = vmatprep.subr.bf16.mxu0 0
    %1646 = vmatpush2.bf16.msra.mxu0 0
    %1647 = vmatprep.subr.bf16.mxu0 0
    %1648 = vmatpush2.bf16.msra.mxu0 0
    %1649 = vmatprep.mubr.bf16.mxu0 0
    %1650 = vmatmul.mubr.bf16.gmra.mxu0 %v1611
    %v1651 = vpop.f32.mrf.mxu0
    %v1652 = vadd.f32 0.0, %v1651
    %v1653 = vpop.f32.mrf.mxu0
    %v1654 = vpop.f32.mrf.mxu0
    %v1655 = vpop.f32.mrf.mxu0
    %1656 = vdwg.mxu0
    %v1658 = vsel %vm1161, %v1603, 0
    %v1661 = vsel %vm1613, %v1142, 0
    %1663 = vmatprep.subr.bf16.mxu0 0
    %1664 = vmatpush1.bf16.msra.mxu0 0
    %1665 = vmatprep.subr.bf16.mxu0 0
    %1666 = vmatpush1.bf16.msra.mxu0 0
    %1667 = vmatprep.subr.bf16.mxu0 0
    %1668 = vmatpush1.bf16.msra.mxu0 0
    %1669 = vmatprep.subr.bf16.mxu0 0
    %1670 = vmatpush1.bf16.msra.mxu0 0
    %1671 = vmatprep.subr.bf16.mxu0 0
    %1672 = vmatpush1.bf16.msra.mxu0 0
    %1673 = vmatprep.subr.bf16.mxu0 0
    %1674 = vmatpush1.bf16.msra.mxu0 0
    %1675 = vmatprep.subr.bf16.mxu0 0
    %1676 = vmatpush1.bf16.msra.mxu0 0
    %1677 = vmatprep.subr.bf16.mxu0 0
    %1678 = vmatpush1.bf16.msra.mxu0 %v1661
    %1679 = vmatprep.subr.bf16.mxu0 0
    %1680 = vmatpush2.bf16.msra.mxu0 0
    %1681 = vmatprep.subr.bf16.mxu0 0
    %1682 = vmatpush2.bf16.msra.mxu0 0
    %1683 = vmatprep.subr.bf16.mxu0 0
    %1684 = vmatpush2.bf16.msra.mxu0 0
    %1685 = vmatprep.subr.bf16.mxu0 0
    %1686 = vmatpush2.bf16.msra.mxu0 0
    %1687 = vmatprep.subr.bf16.mxu0 0
    %1688 = vmatpush2.bf16.msra.mxu0 0
    %1689 = vmatprep.subr.bf16.mxu0 0
    %1690 = vmatpush2.bf16.msra.mxu0 0
    %1691 = vmatprep.subr.bf16.mxu0 0
    %1692 = vmatpush2.bf16.msra.mxu0 0
    %1693 = vmatprep.subr.bf16.mxu0 0
    %1694 = vmatpush2.bf16.msra.mxu0 0
    %1695 = vmatprep.mubr.bf16.mxu0 0
    %1696 = vmatmul.mubr.bf16.gmra.mxu0 %v1658
    %v1697 = vpop.f32.mrf.mxu0
    %v1698 = vadd.f32 0.0, %v1697
    %v1699 = vpop.f32.mrf.mxu0
    %v1700 = vpop.f32.mrf.mxu0
    %v1701 = vpop.f32.mrf.mxu0
    %1702 = vdwg.mxu0
    %v1704 = vsel %vm1161, %v1604, 0
    %v1707 = vsel %vm1613, %v1145, 0
    %1709 = vmatprep.subr.bf16.mxu0 0
    %1710 = vmatpush1.bf16.msra.mxu0 0
    %1711 = vmatprep.subr.bf16.mxu0 0
    %1712 = vmatpush1.bf16.msra.mxu0 0
    %1713 = vmatprep.subr.bf16.mxu0 0
    %1714 = vmatpush1.bf16.msra.mxu0 0
    %1715 = vmatprep.subr.bf16.mxu0 0
    %1716 = vmatpush1.bf16.msra.mxu0 0
    %1717 = vmatprep.subr.bf16.mxu0 0
    %1718 = vmatpush1.bf16.msra.mxu0 0
    %1719 = vmatprep.subr.bf16.mxu0 0
    %1720 = vmatpush1.bf16.msra.mxu0 0
    %1721 = vmatprep.subr.bf16.mxu0 0
    %1722 = vmatpush1.bf16.msra.mxu0 0
    %1723 = vmatprep.subr.bf16.mxu0 0
    %1724 = vmatpush1.bf16.msra.mxu0 %v1707
    %1725 = vmatprep.subr.bf16.mxu0 0
    %1726 = vmatpush2.bf16.msra.mxu0 0
    %1727 = vmatprep.subr.bf16.mxu0 0
    %1728 = vmatpush2.bf16.msra.mxu0 0
    %1729 = vmatprep.subr.bf16.mxu0 0
    %1730 = vmatpush2.bf16.msra.mxu0 0
    %1731 = vmatprep.subr.bf16.mxu0 0
    %1732 = vmatpush2.bf16.msra.mxu0 0
    %1733 = vmatprep.subr.bf16.mxu0 0
    %1734 = vmatpush2.bf16.msra.mxu0 0
    %1735 = vmatprep.subr.bf16.mxu0 0
    %1736 = vmatpush2.bf16.msra.mxu0 0
    %1737 = vmatprep.subr.bf16.mxu0 0
    %1738 = vmatpush2.bf16.msra.mxu0 0
    %1739 = vmatprep.subr.bf16.mxu0 0
    %1740 = vmatpush2.bf16.msra.mxu0 0
    %1741 = vmatprep.mubr.bf16.mxu0 0
    %1742 = vmatmul.mubr.bf16.gmra.mxu0 %v1704
    %v1743 = vpop.f32.mrf.mxu0
    %v1744 = vadd.f32 0.0, %v1743
    %v1745 = vpop.f32.mrf.mxu0
    %v1746 = vpop.f32.mrf.mxu0
    %v1747 = vpop.f32.mrf.mxu0
    %1748 = vdwg.mxu0
    %v1750 = vsel %vm1161, %v1605, 0
    %v1753 = vsel %vm1613, %v1148, 0
    %1755 = vmatprep.subr.bf16.mxu0 0
    %1756 = vmatpush1.bf16.msra.mxu0 0
    %1757 = vmatprep.subr.bf16.mxu0 0
    %1758 = vmatpush1.bf16.msra.mxu0 0
    %1759 = vmatprep.subr.bf16.mxu0 0
    %1760 = vmatpush1.bf16.msra.mxu0 0
    %1761 = vmatprep.subr.bf16.mxu0 0
    %1762 = vmatpush1.bf16.msra.mxu0 0
    %1763 = vmatprep.subr.bf16.mxu0 0
    %1764 = vmatpush1.bf16.msra.mxu0 0
    %1765 = vmatprep.subr.bf16.mxu0 0
    %1766 = vmatpush1.bf16.msra.mxu0 0
    %1767 = vmatprep.subr.bf16.mxu0 0
    %1768 = vmatpush1.bf16.msra.mxu0 0
    %1769 = vmatprep.subr.bf16.mxu0 0
    %1770 = vmatpush1.bf16.msra.mxu0 %v1753
    %1771 = vmatprep.subr.bf16.mxu0 0
    %1772 = vmatpush2.bf16.msra.mxu0 0
    %1773 = vmatprep.subr.bf16.mxu0 0
    %1774 = vmatpush2.bf16.msra.mxu0 0
    %1775 = vmatprep.subr.bf16.mxu0 0
    %1776 = vmatpush2.bf16.msra.mxu0 0
    %1777 = vmatprep.subr.bf16.mxu0 0
    %1778 = vmatpush2.bf16.msra.mxu0 0
    %1779 = vmatprep.subr.bf16.mxu0 0
    %1780 = vmatpush2.bf16.msra.mxu0 0
    %1781 = vmatprep.subr.bf16.mxu0 0
    %1782 = vmatpush2.bf16.msra.mxu0 0
    %1783 = vmatprep.subr.bf16.mxu0 0
    %1784 = vmatpush2.bf16.msra.mxu0 0
    %1785 = vmatprep.subr.bf16.mxu0 0
    %1786 = vmatpush2.bf16.msra.mxu0 0
    %1787 = vmatprep.mubr.bf16.mxu0 0
    %1788 = vmatmul.mubr.bf16.gmra.mxu0 %v1750
    %v1789 = vpop.f32.mrf.mxu0
    %v1790 = vadd.f32 0.0, %v1789
    %v1791 = vpop.f32.mrf.mxu0
    %v1792 = vpop.f32.mrf.mxu0
    %v1793 = vpop.f32.mrf.mxu0
    %1794 = vdwg.mxu0
    %v1796 = vsel %vm1161, %v1606, 0
    %v1799 = vsel %vm1613, %v1151, 0
    %1801 = vmatprep.subr.bf16.mxu0 0
    %1802 = vmatpush1.bf16.msra.mxu0 0
    %1803 = vmatprep.subr.bf16.mxu0 0
    %1804 = vmatpush1.bf16.msra.mxu0 0
    %1805 = vmatprep.subr.bf16.mxu0 0
    %1806 = vmatpush1.bf16.msra.mxu0 0
    %1807 = vmatprep.subr.bf16.mxu0 0
    %1808 = vmatpush1.bf16.msra.mxu0 0
    %1809 = vmatprep.subr.bf16.mxu0 0
    %1810 = vmatpush1.bf16.msra.mxu0 0
    %1811 = vmatprep.subr.bf16.mxu0 0
    %1812 = vmatpush1.bf16.msra.mxu0 0
    %1813 = vmatprep.subr.bf16.mxu0 0
    %1814 = vmatpush1.bf16.msra.mxu0 0
    %1815 = vmatprep.subr.bf16.mxu0 0
    %1816 = vmatpush1.bf16.msra.mxu0 %v1799
    %1817 = vmatprep.subr.bf16.mxu0 0
    %1818 = vmatpush2.bf16.msra.mxu0 0
    %1819 = vmatprep.subr.bf16.mxu0 0
    %1820 = vmatpush2.bf16.msra.mxu0 0
    %1821 = vmatprep.subr.bf16.mxu0 0
    %1822 = vmatpush2.bf16.msra.mxu0 0
    %1823 = vmatprep.subr.bf16.mxu0 0
    %1824 = vmatpush2.bf16.msra.mxu0 0
    %1825 = vmatprep.subr.bf16.mxu0 0
    %1826 = vmatpush2.bf16.msra.mxu0 0
    %1827 = vmatprep.subr.bf16.mxu0 0
    %1828 = vmatpush2.bf16.msra.mxu0 0
    %1829 = vmatprep.subr.bf16.mxu0 0
    %1830 = vmatpush2.bf16.msra.mxu0 0
    %1831 = vmatprep.subr.bf16.mxu0 0
    %1832 = vmatpush2.bf16.msra.mxu0 0
    %1833 = vmatprep.mubr.bf16.mxu0 0
    %1834 = vmatmul.mubr.bf16.gmra.mxu0 %v1796
    %v1835 = vpop.f32.mrf.mxu0
    %v1836 = vadd.f32 0.0, %v1835
    %v1837 = vpop.f32.mrf.mxu0
    %v1838 = vpop.f32.mrf.mxu0
    %v1839 = vpop.f32.mrf.mxu0
    %1840 = vdwg.mxu0
    %v1842 = vsel %vm1161, %v1607, 0
    %v1845 = vsel %vm1613, %v1154, 0
    %1847 = vmatprep.subr.bf16.mxu0 0
    %1848 = vmatpush1.bf16.msra.mxu0 0
    %1849 = vmatprep.subr.bf16.mxu0 0
    %1850 = vmatpush1.bf16.msra.mxu0 0
    %1851 = vmatprep.subr.bf16.mxu0 0
    %1852 = vmatpush1.bf16.msra.mxu0 0
    %1853 = vmatprep.subr.bf16.mxu0 0
    %1854 = vmatpush1.bf16.msra.mxu0 0
    %1855 = vmatprep.subr.bf16.mxu0 0
    %1856 = vmatpush1.bf16.msra.mxu0 0
    %1857 = vmatprep.subr.bf16.mxu0 0
    %1858 = vmatpush1.bf16.msra.mxu0 0
    %1859 = vmatprep.subr.bf16.mxu0 0
    %1860 = vmatpush1.bf16.msra.mxu0 0
    %1861 = vmatprep.subr.bf16.mxu0 0
    %1862 = vmatpush1.bf16.msra.mxu0 %v1845
    %1863 = vmatprep.subr.bf16.mxu0 0
    %1864 = vmatpush2.bf16.msra.mxu0 0
    %1865 = vmatprep.subr.bf16.mxu0 0
    %1866 = vmatpush2.bf16.msra.mxu0 0
    %1867 = vmatprep.subr.bf16.mxu0 0
    %1868 = vmatpush2.bf16.msra.mxu0 0
    %1869 = vmatprep.subr.bf16.mxu0 0
    %1870 = vmatpush2.bf16.msra.mxu0 0
    %1871 = vmatprep.subr.bf16.mxu0 0
    %1872 = vmatpush2.bf16.msra.mxu0 0
    %1873 = vmatprep.subr.bf16.mxu0 0
    %1874 = vmatpush2.bf16.msra.mxu0 0
    %1875 = vmatprep.subr.bf16.mxu0 0
    %1876 = vmatpush2.bf16.msra.mxu0 0
    %1877 = vmatprep.subr.bf16.mxu0 0
    %1878 = vmatpush2.bf16.msra.mxu0 0
    %1879 = vmatprep.mubr.bf16.mxu0 0
    %1880 = vmatmul.mubr.bf16.gmra.mxu0 %v1842
    %v1881 = vpop.f32.mrf.mxu0
    %v1882 = vadd.f32 0.0, %v1881
    %v1883 = vpop.f32.mrf.mxu0
    %v1884 = vpop.f32.mrf.mxu0
    %v1885 = vpop.f32.mrf.mxu0
    %1886 = vdwg.mxu0
    %v1888 = vsel %vm1161, %v1608, 0
    %v1891 = vsel %vm1613, %v1157, 0
    %1893 = vmatprep.subr.bf16.mxu0 0
    %1894 = vmatpush1.bf16.msra.mxu0 0
    %1895 = vmatprep.subr.bf16.mxu0 0
    %1896 = vmatpush1.bf16.msra.mxu0 0
    %1897 = vmatprep.subr.bf16.mxu0 0
    %1898 = vmatpush1.bf16.msra.mxu0 0
    %1899 = vmatprep.subr.bf16.mxu0 0
    %1900 = vmatpush1.bf16.msra.mxu0 0
    %1901 = vmatprep.subr.bf16.mxu0 0
    %1902 = vmatpush1.bf16.msra.mxu0 0
    %1903 = vmatprep.subr.bf16.mxu0 0
    %1904 = vmatpush1.bf16.msra.mxu0 0
    %1905 = vmatprep.subr.bf16.mxu0 0
    %1906 = vmatpush1.bf16.msra.mxu0 0
    %1907 = vmatprep.subr.bf16.mxu0 0
    %1908 = vmatpush1.bf16.msra.mxu0 %v1891
    %1909 = vmatprep.subr.bf16.mxu0 0
    %1910 = vmatpush2.bf16.msra.mxu0 0
    %1911 = vmatprep.subr.bf16.mxu0 0
    %1912 = vmatpush2.bf16.msra.mxu0 0
    %1913 = vmatprep.subr.bf16.mxu0 0
    %1914 = vmatpush2.bf16.msra.mxu0 0
    %1915 = vmatprep.subr.bf16.mxu0 0
    %1916 = vmatpush2.bf16.msra.mxu0 0
    %1917 = vmatprep.subr.bf16.mxu0 0
    %1918 = vmatpush2.bf16.msra.mxu0 0
    %1919 = vmatprep.subr.bf16.mxu0 0
    %1920 = vmatpush2.bf16.msra.mxu0 0
    %1921 = vmatprep.subr.bf16.mxu0 0
    %1922 = vmatpush2.bf16.msra.mxu0 0
    %1923 = vmatprep.subr.bf16.mxu0 0
    %1924 = vmatpush2.bf16.msra.mxu0 0
    %1925 = vmatprep.mubr.bf16.mxu0 0
    %1926 = vmatmul.mubr.bf16.gmra.mxu0 %v1888
    %v1927 = vpop.f32.mrf.mxu0
    %v1928 = vadd.f32 0.0, %v1927
    %v1929 = vpop.f32.mrf.mxu0
    %v1930 = vpop.f32.mrf.mxu0
    %v1931 = vpop.f32.mrf.mxu0
    %1932 = vdwg.mxu0
    %v1934 = vsel %vm1161, %v1609, 0
    %v1937 = vsel %vm1613, %v1160, 0
    %1939 = vmatprep.subr.bf16.mxu0 0
    %1940 = vmatpush1.bf16.msra.mxu0 0
    %1941 = vmatprep.subr.bf16.mxu0 0
    %1942 = vmatpush1.bf16.msra.mxu0 0
    %1943 = vmatprep.subr.bf16.mxu0 0
    %1944 = vmatpush1.bf16.msra.mxu0 0
    %1945 = vmatprep.subr.bf16.mxu0 0
    %1946 = vmatpush1.bf16.msra.mxu0 0
    %1947 = vmatprep.subr.bf16.mxu0 0
    %1948 = vmatpush1.bf16.msra.mxu0 0
    %1949 = vmatprep.subr.bf16.mxu0 0
    %1950 = vmatpush1.bf16.msra.mxu0 0
    %1951 = vmatprep.subr.bf16.mxu0 0
    %1952 = vmatpush1.bf16.msra.mxu0 0
    %1953 = vmatprep.subr.bf16.mxu0 0
    %1954 = vmatpush1.bf16.msra.mxu0 %v1937
    %1955 = vmatprep.subr.bf16.mxu0 0
    %1956 = vmatpush2.bf16.msra.mxu0 0
    %1957 = vmatprep.subr.bf16.mxu0 0
    %1958 = vmatpush2.bf16.msra.mxu0 0
    %1959 = vmatprep.subr.bf16.mxu0 0
    %1960 = vmatpush2.bf16.msra.mxu0 0
    %1961 = vmatprep.subr.bf16.mxu0 0
    %1962 = vmatpush2.bf16.msra.mxu0 0
    %1963 = vmatprep.subr.bf16.mxu0 0
    %1964 = vmatpush2.bf16.msra.mxu0 0
    %1965 = vmatprep.subr.bf16.mxu0 0
    %1966 = vmatpush2.bf16.msra.mxu0 0
    %1967 = vmatprep.subr.bf16.mxu0 0
    %1968 = vmatpush2.bf16.msra.mxu0 0
    %1969 = vmatprep.subr.bf16.mxu0 0
    %1970 = vmatpush2.bf16.msra.mxu0 0
    %1971 = vmatprep.mubr.bf16.mxu0 0
    %1972 = vmatmul.mubr.bf16.gmra.mxu0 %v1934
    %v1973 = vpop.f32.mrf.mxu0
    %v1974 = vadd.f32 0.0, %v1973
    %v1975 = vpop.f32.mrf.mxu0
    %v1976 = vpop.f32.mrf.mxu0
    %v1977 = vpop.f32.mrf.mxu0
    %1978 = vdwg.mxu0
    %v1979 = vrcp.pop %v1580
    %v1980 = vrcp.pop %v1583
    %v1981 = vrcp.pop %v1586
    %v1982 = vrcp.pop %v1589
    %v1983 = vrcp.pop %v1592
    %v1984 = vrcp.pop %v1595
    %v1985 = vrcp.pop %v1598
    %v1986 = vrcp.pop %v1601
    %v1987 = vmul.f32 %v1652, %v1979
    %v1988 = vmul.f32 %v1698, %v1980
    %v1989 = vmul.f32 %v1744, %v1981
    %v1990 = vmul.f32 %v1790, %v1982
    %v1991 = vmul.f32 %v1836, %v1983
    %v1992 = vmul.f32 %v1882, %v1984
    %v1993 = vmul.f32 %v1928, %v1985
    %v1994 = vmul.f32 %v1974, %v1986
    %v1995 = vpack.c.bf16 %v1987, %v1987
    %v1997 = vunpack.c.l.s4 1983009808
    %v1998 = vunpack.c.0.s8 %v1997
    %v1999 = vlaneseq
    %v2000 = vshrl.u32 %v1999, 7
    %v2001 = vsub.s32 %v1998, %v2000
    %v2002 = vrot.slane %v1995, %v2001
    %v2003 = vpack.c.bf16 %v1989, %v1989
    %v2005 = vunpack.c.l.s4 1983009808
    %v2006 = vunpack.c.0.s8 %v2005
    %v2007 = vlaneseq
    %v2008 = vshrl.u32 %v2007, 7
    %v2009 = vsub.s32 %v2006, %v2008
    %v2010 = vrot.slane %v2003, %v2009
    %v2011 = vcombine.low %v2002, %v2010
    %v2012 = vcombine.high %v2002, %v2010
    %v2014 = vunpack.c.l.s4 1934713408
    %v2015 = vunpack.c.0.s8 %v2014
    %v2016 = vlaneseq
    %v2017 = vshrl.u32 %v2016, 7
    %v2018 = vsub.s32 %v2015, %v2017
    %v2019 = vrot.slane %v2011, %v2018
    %v2021 = vunpack.c.l.s4 1934713408
    %v2022 = vunpack.c.0.s8 %v2021
    %v2023 = vlaneseq
    %v2024 = vshrl.u32 %v2023, 7
    %v2025 = vsub.s32 %v2022, %v2024
    %v2026 = vrot.slane %v2012, %v2025
    %v2027 = vcombine.high %v2019, 0
    %v2028 = vcombine.high %v2026, 0
    %v2029 = vpack.c.bf16 %v1988, %v1988
    %v2031 = vunpack.c.l.s4 1983009808
    %v2032 = vunpack.c.0.s8 %v2031
    %v2033 = vlaneseq
    %v2034 = vshrl.u32 %v2033, 7
    %v2035 = vsub.s32 %v2032, %v2034
    %v2036 = vrot.slane %v2029, %v2035
    %v2037 = vpack.c.bf16 %v1990, %v1990
    %v2039 = vunpack.c.l.s4 1983009808
    %v2040 = vunpack.c.0.s8 %v2039
    %v2041 = vlaneseq
    %v2042 = vshrl.u32 %v2041, 7
    %v2043 = vsub.s32 %v2040, %v2042
    %v2044 = vrot.slane %v2037, %v2043
    %v2045 = vcombine.low %v2036, %v2044
    %v2046 = vcombine.high %v2036, %v2044
    %v2048 = vunpack.c.l.s4 1934713408
    %v2049 = vunpack.c.0.s8 %v2048
    %v2050 = vlaneseq
    %v2051 = vshrl.u32 %v2050, 7
    %v2052 = vsub.s32 %v2049, %v2051
    %v2053 = vrot.slane %v2045, %v2052
    %v2055 = vunpack.c.l.s4 1934713408
    %v2056 = vunpack.c.0.s8 %v2055
    %v2057 = vlaneseq
    %v2058 = vshrl.u32 %v2057, 7
    %v2059 = vsub.s32 %v2056, %v2058
    %v2060 = vrot.slane %v2046, %v2059
    %v2061 = vcombine.high %v2053, 0
    %v2062 = vcombine.high %v2060, 0
    %v2063 = vpack.c.bf16 %v1991, %v1991
    %v2065 = vunpack.c.l.s4 1983009808
    %v2066 = vunpack.c.0.s8 %v2065
    %v2067 = vlaneseq
    %v2068 = vshrl.u32 %v2067, 7
    %v2069 = vsub.s32 %v2066, %v2068
    %v2070 = vrot.slane %v2063, %v2069
    %v2071 = vpack.c.bf16 %v1993, %v1993
    %v2073 = vunpack.c.l.s4 1983009808
    %v2074 = vunpack.c.0.s8 %v2073
    %v2075 = vlaneseq
    %v2076 = vshrl.u32 %v2075, 7
    %v2077 = vsub.s32 %v2074, %v2076
    %v2078 = vrot.slane %v2071, %v2077
    %v2079 = vcombine.low %v2070, %v2078
    %v2080 = vcombine.high %v2070, %v2078
    %v2082 = vunpack.c.l.s4 1934713408
    %v2083 = vunpack.c.0.s8 %v2082
    %v2084 = vlaneseq
    %v2085 = vshrl.u32 %v2084, 7
    %v2086 = vsub.s32 %v2083, %v2085
    %v2087 = vrot.slane %v2079, %v2086
    %v2089 = vunpack.c.l.s4 1934713408
    %v2090 = vunpack.c.0.s8 %v2089
    %v2091 = vlaneseq
    %v2092 = vshrl.u32 %v2091, 7
    %v2093 = vsub.s32 %v2090, %v2092
    %v2094 = vrot.slane %v2080, %v2093
    %v2095 = vcombine.high %v2087, 0
    %v2096 = vcombine.high %v2094, 0
    %v2097 = vpack.c.bf16 %v1992, %v1992
    %v2099 = vunpack.c.l.s4 1983009808
    %v2100 = vunpack.c.0.s8 %v2099
    %v2101 = vlaneseq
    %v2102 = vshrl.u32 %v2101, 7
    %v2103 = vsub.s32 %v2100, %v2102
    %v2104 = vrot.slane %v2097, %v2103
    %v2105 = vpack.c.bf16 %v1994, %v1994
    %v2107 = vunpack.c.l.s4 1983009808
    %v2108 = vunpack.c.0.s8 %v2107
    %v2109 = vlaneseq
    %v2110 = vshrl.u32 %v2109, 7
    %v2111 = vsub.s32 %v2108, %v2110
    %v2112 = vrot.slane %v2105, %v2111
    %v2113 = vcombine.low %v2104, %v2112
    %v2114 = vcombine.high %v2104, %v2112
    %v2116 = vunpack.c.l.s4 1934713408
    %v2117 = vunpack.c.0.s8 %v2116
    %v2118 = vlaneseq
    %v2119 = vshrl.u32 %v2118, 7
    %v2120 = vsub.s32 %v2117, %v2119
    %v2121 = vrot.slane %v2113, %v2120
    %v2123 = vunpack.c.l.s4 1934713408
    %v2124 = vunpack.c.0.s8 %v2123
    %v2125 = vlaneseq
    %v2126 = vshrl.u32 %v2125, 7
    %v2127 = vsub.s32 %v2124, %v2126
    %v2128 = vrot.slane %v2114, %v2127
    %v2129 = vcombine.high %v2121, 0
    %v2130 = vcombine.high %v2128, 0
    %v2133 = vpack.i.b16 %v2053, %v2019
    %v2135 = vshrl.u32 %v2019, 16
    %v2136 = vshrl.u32 %v2053, 16
    %v2137 = vpack.i.b16 %v2136, %v2135
    %v2141 = vpack.i.b16 %v2061, %v2027
    %v2143 = vshrl.u32 %v2027, 16
    %v2144 = vshrl.u32 %v2061, 16
    %v2145 = vpack.i.b16 %v2144, %v2143
    %v2149 = vpack.i.b16 %v2060, %v2026
    %v2151 = vshrl.u32 %v2026, 16
    %v2152 = vshrl.u32 %v2060, 16
    %v2153 = vpack.i.b16 %v2152, %v2151
    %v2157 = vpack.i.b16 %v2062, %v2028
    %v2159 = vshrl.u32 %v2028, 16
    %v2160 = vshrl.u32 %v2062, 16
    %v2161 = vpack.i.b16 %v2160, %v2159
    %v2165 = vpack.i.b16 %v2121, %v2087
    %v2167 = vshrl.u32 %v2087, 16
    %v2168 = vshrl.u32 %v2121, 16
    %v2169 = vpack.i.b16 %v2168, %v2167
    %v2173 = vpack.i.b16 %v2129, %v2095
    %v2175 = vshrl.u32 %v2095, 16
    %v2176 = vshrl.u32 %v2129, 16
    %v2177 = vpack.i.b16 %v2176, %v2175
    %v2181 = vpack.i.b16 %v2128, %v2094
    %v2183 = vshrl.u32 %v2094, 16
    %v2184 = vshrl.u32 %v2128, 16
    %v2185 = vpack.i.b16 %v2184, %v2183
    %v2189 = vpack.i.b16 %v2130, %v2096
    %v2191 = vshrl.u32 %v2096, 16
    %v2192 = vshrl.u32 %v2130, 16
    %v2193 = vpack.i.b16 %v2192, %v2191
    %v2195 = vcombine.low %v2133, %v2149
    %v2197 = vunpack.c.l.s4 1983009808
    %v2198 = vunpack.c.0.s8 %v2197
    %v2199 = vlaneseq
    %v2200 = vshrl.u32 %v2199, 7
    %v2201 = vsub.s32 %v2198, %v2200
    %v2202 = vrot.slane %v2195, %v2201
    %v2203 = vcombine.low %v2141, %v2157
    %v2205 = vunpack.c.l.s4 1983009808
    %v2206 = vunpack.c.0.s8 %v2205
    %v2207 = vlaneseq
    %v2208 = vshrl.u32 %v2207, 7
    %v2209 = vsub.s32 %v2206, %v2208
    %v2210 = vrot.slane %v2203, %v2209
    %v2211 = vcombine.low %v2165, %v2181
    %v2213 = vunpack.c.l.s4 1983009808
    %v2214 = vunpack.c.0.s8 %v2213
    %v2215 = vlaneseq
    %v2216 = vshrl.u32 %v2215, 7
    %v2217 = vsub.s32 %v2214, %v2216
    %v2218 = vrot.slane %v2211, %v2217
    %v2219 = vcombine.low %v2173, %v2189
    %v2221 = vunpack.c.l.s4 1983009808
    %v2222 = vunpack.c.0.s8 %v2221
    %v2223 = vlaneseq
    %v2224 = vshrl.u32 %v2223, 7
    %v2225 = vsub.s32 %v2222, %v2224
    %v2226 = vrot.slane %v2219, %v2225
    %v2227 = vcombine.low %v2202, %v2210
    %v2229 = vunpack.c.l.s4 1934713408
    %v2230 = vunpack.c.0.s8 %v2229
    %v2231 = vlaneseq
    %v2232 = vshrl.u32 %v2231, 7
    %v2233 = vsub.s32 %v2230, %v2232
    %v2234 = vrot.slane %v2227, %v2233
    %v2235 = vcombine.low %v2218, %v2226
    %v2237 = vunpack.c.l.s4 1934713408
    %v2238 = vunpack.c.0.s8 %v2237
    %v2239 = vlaneseq
    %v2240 = vshrl.u32 %v2239, 7
    %v2241 = vsub.s32 %v2238, %v2240
    %v2242 = vrot.slane %v2235, %v2241
    %v2243 = vcombine.low %v2234, %v2242
    %v2244 = vcombine.high %v2234, %v2242
    %v2245 = vcombine.low %v2137, %v2153
    %v2247 = vunpack.c.l.s4 1983009808
    %v2248 = vunpack.c.0.s8 %v2247
    %v2249 = vlaneseq
    %v2250 = vshrl.u32 %v2249, 7
    %v2251 = vsub.s32 %v2248, %v2250
    %v2252 = vrot.slane %v2245, %v2251
    %v2253 = vcombine.low %v2145, %v2161
    %v2255 = vunpack.c.l.s4 1983009808
    %v2256 = vunpack.c.0.s8 %v2255
    %v2257 = vlaneseq
    %v2258 = vshrl.u32 %v2257, 7
    %v2259 = vsub.s32 %v2256, %v2258
    %v2260 = vrot.slane %v2253, %v2259
    %v2261 = vcombine.low %v2169, %v2185
    %v2263 = vunpack.c.l.s4 1983009808
    %v2264 = vunpack.c.0.s8 %v2263
    %v2265 = vlaneseq
    %v2266 = vshrl.u32 %v2265, 7
    %v2267 = vsub.s32 %v2264, %v2266
    %v2268 = vrot.slane %v2261, %v2267
    %v2269 = vcombine.low %v2177, %v2193
    %v2271 = vunpack.c.l.s4 1983009808
    %v2272 = vunpack.c.0.s8 %v2271
    %v2273 = vlaneseq
    %v2274 = vshrl.u32 %v2273, 7
    %v2275 = vsub.s32 %v2272, %v2274
    %v2276 = vrot.slane %v2269, %v2275
    %v2277 = vcombine.low %v2252, %v2260
    %v2279 = vunpack.c.l.s4 1934713408
    %v2280 = vunpack.c.0.s8 %v2279
    %v2281 = vlaneseq
    %v2282 = vshrl.u32 %v2281, 7
    %v2283 = vsub.s32 %v2280, %v2282
    %v2284 = vrot.slane %v2277, %v2283
    %v2285 = vcombine.low %v2268, %v2276
    %v2287 = vunpack.c.l.s4 1934713408
    %v2288 = vunpack.c.0.s8 %v2287
    %v2289 = vlaneseq
    %v2290 = vshrl.u32 %v2289, 7
    %v2291 = vsub.s32 %v2288, %v2290
    %v2292 = vrot.slane %v2285, %v2291
    %v2293 = vcombine.low %v2284, %v2292
    %v2294 = vcombine.high %v2284, %v2292
    %v2297 = vpack.i.b16 %v2293, %v2243
    %v2298 = vshrl.u32 %v2243, 16
    %v2299 = vshrl.u32 %v2293, 16
    %v2300 = vpack.i.b16 %v2299, %v2298
    %v2303 = vpack.i.b16 %v2294, %v2244
    %v2304 = vshrl.u32 %v2244, 16
    %v2305 = vshrl.u32 %v2294, 16
    %v2306 = vpack.i.b16 %v2305, %v2304
    %2307 = vrot.lane.b32.xlu0 %v2300, 8
    %v2308 = vpop.permute.xlu0 %2307
    %2309 = vrot.lane.b32.xlu0 %v2303, 16
    %v2310 = vpop.permute.xlu0 %2309
    %2311 = vrot.lane.b32.xlu0 %v2306, 24
    %v2312 = vpop.permute.xlu0 %2311
    %v2315 = vsel %vm1161, %v2297, %v2308
    %vm2316 = vcmask 130048
    %v2318 = vsel %vm2316, %v2315, %v2310
    %vm2319 = vcmask 195584
    %v2321 = vsel %vm2319, %v2318, %v2312
    %v2322 = vld [vmem:[#allocation10] sm:$0xf]
    %v2323 = vld [vmem:[#allocation10 + $0x4] sm:$0xf]
    %v2324 = vld [vmem:[#allocation10 + $0x8] sm:$0xf]
    %v2325 = vld [vmem:[#allocation10 + $0xc] sm:$0xf]
    %v2326 = vld [vmem:[%s6] sm:$0x1]
    %v2328 = vlaneseq
    %v2329 = vshrl.u32 %v2328, 7
    %v2330 = vsub.s32 0, %v2329
    %v2331 = vrot.slane %v2326, %v2330
    %v2337 = vunpack.c.l.b16 %v2322
    %v2338 = vunpack.c.l.b16 %v2323
    %v2339 = vunpack.c.l.b16 %v2324
    %v2340 = vunpack.c.l.b16 %v2325
    %v2341 = vpack.c.b16 %v2338, %v2337
    %v2342 = vpack.c.b16 %v2340, %v2339
    %v2345 = vsel %vm128, %v2321, 0
    %2347 = vmatprep.subr.bf16.mxu0 0
    %2348 = vmatpush1.bf16.msra.mxu0 0
    %2349 = vmatprep.subr.bf16.mxu0 0
    %2350 = vmatpush1.bf16.msra.mxu0 0
    %2351 = vmatprep.subr.bf16.mxu0 0
    %2352 = vmatpush1.bf16.msra.mxu0 0
    %2353 = vmatprep.subr.bf16.mxu0 0
    %2354 = vmatpush1.bf16.msra.mxu0 0
    %2355 = vmatprep.subr.bf16.mxu0 0
    %2356 = vmatpush1.bf16.msra.mxu0 0
    %2357 = vmatprep.subr.bf16.mxu0 0
    %2358 = vmatpush1.bf16.msra.mxu0 0
    %2359 = vmatprep.subr.bf16.mxu0 0
    %2360 = vmatpush1.bf16.msra.mxu0 %v2342
    %2361 = vmatprep.subr.bf16.mxu0 0
    %2362 = vmatpush1.bf16.msra.mxu0 %v2341
    %2363 = vmatprep.subr.bf16.mxu0 0
    %2364 = vmatpush2.bf16.msra.mxu0 0
    %2365 = vmatprep.subr.bf16.mxu0 0
    %2366 = vmatpush2.bf16.msra.mxu0 0
    %2367 = vmatprep.subr.bf16.mxu0 0
    %2368 = vmatpush2.bf16.msra.mxu0 0
    %2369 = vmatprep.subr.bf16.mxu0 0
    %2370 = vmatpush2.bf16.msra.mxu0 0
    %2371 = vmatprep.subr.bf16.mxu0 0
    %2372 = vmatpush2.bf16.msra.mxu0 0
    %2373 = vmatprep.subr.bf16.mxu0 0
    %2374 = vmatpush2.bf16.msra.mxu0 0
    %2375 = vmatprep.subr.bf16.mxu0 0
    %2376 = vmatpush2.bf16.msra.mxu0 0
    %2377 = vmatprep.subr.bf16.mxu0 0
    %2378 = vmatpush2.bf16.msra.mxu0 0
    %2379 = vmatprep.mubr.bf16.mxu0 0
    %2380 = vmatmul.mubr.bf16.gmra.mxu0 %v2345
    %v2381 = vpop.f32.mrf.mxu0
    %v2382 = vadd.f32 %v2331, %v2381
    %v2383 = vpop.f32.mrf.mxu0
    %v2384 = vpop.f32.mrf.mxu0
    %v2385 = vadd.f32 %v2331, %v2384
    %v2386 = vpop.f32.mrf.mxu0
    %2387 = vdwg.mxu0
    %2388 = vst.msk [vmem:[#allocation11] sm:$0xff] %vm128, %v2382
    %2389 = vst.msk [vmem:[#allocation11 + $0x8] sm:$0xff] %vm128, %v2385
    // Predicated region
    $region50: #{tpu_custom_call.1} parent=1 // pred_check
      _
    $region51: #{tpu_custom_call.1} parent=1 // pred_check_branch
      %2391 = sbr.rel (0) target = $region53
    $region52: #{tpu_custom_call.1} parent=1 // pred_region
      %s2393 = ssub.s32 256, 256
      %2394 = vsyncadd [#allocation4], %s2393
      %s2395 = sshll.u32 [#allocation11], 4
      %s2396 = int_to_ptr.vmem [resolvable:$true] %s2395
      %2401 = dma.vmem_to_hbm [thread:$0]  %s2396, 256, %s7, [#allocation4], 128, 128, 8
    $region53: #{tpu_custom_call.1} parent=1 // pred_fallthru
      _
    // Predicated region
    $region54: #{tpu_custom_call.1} parent=1 // pred_check
      _
    $region55: #{tpu_custom_call.1} parent=1 // pred_check_branch
      %2403 = sbr.rel (0) target = $region57
    $region56: #{tpu_custom_call.1} parent=1 // pred_region
      %2404 = dma.done [#allocation4], 256
    $region57: #{tpu_custom_call.1} parent=1 // pred_fallthru
      _
    %2405 = vsyncpa [#allocation3], 1
    %2406 = vsyncpa [#allocation6], 1
    %2407 = vsyncpa [#allocation9], 1
    %2408 = vsyncpa [#allocation4], 1

</llo_original>
